<compile_context>
chip_gen: v7x
topology: tpu7x:2x2x1
jax: 0.10.0
libtpu: 0.0.40
codegen_flags: <defaults>
</compile_context>

<pallas_src>
import functools
import math

import jax
import jax.numpy as jnp
import numpy as np
from jax.experimental import pallas as pl
from jax.experimental.pallas import tpu as pltpu


# ----------------------------- Pallas kernel -------------------------------
def encoder_kernel(
    x_ref, kv_ref,
    wqkv_ref, bqkv_ref,
    wo_ref, bo_ref, g1_ref, be1_ref,
    w1_ref, bf1_ref, w2_ref, bf2_ref, g2_ref, be2_ref,
    out_ref,
    ctx_scr,                      # VMEM (S, D) scratch (matmul dtype) for head contexts
    *, n_head, n_layer, matmul_dtype,
):
    S, D = x_ref.shape[1], x_ref.shape[2]
    d_ff = w1_ref.shape[1]
    dh = D // n_head
    mm = matmul_dtype

    ffn_chunk = min(d_ff, 512)                     # static FFN tiling along d_ff
    n_ffn_chunks = (d_ff + ffn_chunk - 1) // ffn_chunk

    # ---- hoisted once per grid step (constant across layers and heads) ----
    # key-padding additive bias, broadcast ONCE to (S, S): 0 attendable, -1e9 masked.
    neg_bias = jnp.broadcast_to(jnp.where(kv_ref[0] > 0.0, 0.0, -1e9), (S, S))

    # Weights already arrive in matmul dtype from the wrapper (no per-step casts).
    wqkv = wqkv_ref[...]
    wo = wo_ref[...]
    bqkv, bo = bqkv_ref[...], bo_ref[...]
    g1, be1, g2, be2 = g1_ref[...], be1_ref[...], g2_ref[...], be2_ref[...]
    bf2 = bf2_ref[...]

    def layer_norm(t, g, b):                       # one-pass statistics, f32
        mu = jnp.mean(t, axis=-1, keepdims=True)
        var = jnp.mean(t * t, axis=-1, keepdims=True) - mu * mu
        return (t - mu) * jax.lax.rsqrt(var + 1e-5) * g + b

    def one_layer(x):                              # x: (S, D) f32
        xm = x.astype(mm)

        # --- fused Q|K|V projection: one (S,D)@(D,3D) MXU pass (scale folded in wq) ---
        qkv = jnp.dot(xm, wqkv, preferred_element_type=jnp.float32) + bqkv
        q, k, v = qkv[:, :D], qkv[:, D:2 * D], qkv[:, 2 * D:]

        # --- multi-head self-attention (static head unroll) ---
        for h in range(n_head):
            sl = slice(h * dh, (h + 1) * dh)
            qh = q[:, sl].astype(mm)
            kh = k[:, sl].astype(mm)
            vh = v[:, sl].astype(mm)
            s = jax.lax.dot_general(               # (S, S) = qh @ kh^T (already scaled)
                qh, kh, (((1,), (1,)), ((), ())),
                preferred_element_type=jnp.float32)
            s = s + neg_bias
            s = s - jnp.max(s, axis=-1, keepdims=True)
            p = jnp.exp(s)
            denom = jnp.sum(p, axis=-1, keepdims=True)
            ctx = jnp.dot(p.astype(mm), vh, preferred_element_type=jnp.float32)
            # exact normalization AFTER the PV matmul: S*dh divides instead of S*S muls
            ctx_scr[:, sl] = (ctx / denom).astype(ctx_scr.dtype)

        # output projection: single K=D matmul over the packed per-head contexts
        attn = jnp.dot(ctx_scr[...], wo, preferred_element_type=jnp.float32) + bo

        # --- residual + LayerNorm 1 ---
        y = layer_norm(x + attn, g1, be1)

        # --- position-wise FFN, tiled along d_ff so (S, d_ff) never materializes ---
        ym = y.astype(mm)
        f = jnp.zeros((S, D), jnp.float32)
        for c in range(n_ffn_chunks):              # static chunk loop
            c0 = c * ffn_chunk
            c1 = min(d_ff, c0 + ffn_chunk)
            hid = jnp.dot(ym, w1_ref[:, c0:c1], preferred_element_type=jnp.float32)
            hid = jnp.maximum(hid + bf1_ref[:, c0:c1], 0.0)
            f = f + jnp.dot(hid.astype(mm), w2_ref[c0:c1, :],
                            preferred_element_type=jnp.float32)
        f = f + bf2

        # --- residual + LayerNorm 2 ---
        return layer_norm(y + f, g2, be2)

    # ---- fused layer stack: activation stays in VMEM/vregs across layers.
    # fori_loop(unroll=True) bounds live ranges while keeping scheduler visibility;
    # weights are identical across layers (deepcopy semantics) so no re-indexing.
    x0 = x_ref[0].astype(jnp.float32)
    z = jax.lax.fori_loop(0, n_layer, lambda l, xv: one_layer(xv), x0, unroll=True)

    out_ref[0] = z.astype(out_ref.dtype)


# ------------------------------ wrapper -------------------------------------
def encoder_forward(src, key_valid, params, n_layer, n_head,
                    matmul_dtype=jnp.float32):
    """Runs the full n_layer encoder stack in a single pallas_call.

    src:       (B, S, D) activations.
    key_valid: (B, S) float mask, 1.0 = key attendable, 0.0 = padded (the key-padding
               form of src_mask; the (B,S,S) broadcast is rebuilt in-kernel as an
               additive bias, avoiding the O(S^2) mask DMA).
    """
    B, S, D = src.shape
    d_ff = params["w1"].shape[1]
    dh = D // n_head
    scale = 1.0 / math.sqrt(dh)
    mm = matmul_dtype

    # Fold the 1/sqrt(dh) attention scale into wq/bq and fuse Q|K|V into one weight.
    wqkv = jnp.concatenate(
        [params["wq"] * scale, params["wk"], params["wv"]], axis=1).astype(mm)
    bqkv = jnp.concatenate(
        [params["bq"] * scale, params["bk"], params["bv"]], axis=1)
    wo = params["wo"].astype(mm)
    w1 = params["w1"].astype(mm)
    w2 = params["w2"].astype(mm)

    def _const(shape):  # whole-array block, same block every grid step (stays resident)
        return pl.BlockSpec(shape, lambda b: (0,) * len(shape))

    in_specs = [
        pl.BlockSpec((1, S, D), lambda b: (b, 0, 0)),   # x
        pl.BlockSpec((1, 1, S), lambda b: (b, 0, 0)),   # key_valid (B,1,S)
        _const((D, 3 * D)), _const((1, 3 * D)),         # wqkv, bqkv
        _const((D, D)), _const((1, D)),                 # wo, bo
        _const((1, D)), _const((1, D)),                 # ln1 gamma, beta
        _const((D, d_ff)), _const((1, d_ff)),           # w1, b1
        _const((d_ff, D)), _const((1, D)),              # w2, b2
        _const((1, D)), _const((1, D)),                 # ln2 gamma, beta
    ]

    # Generation-aware VMEM budget: resident weights + per-step working set, clamped
    # below the physical capacity (64 MiB on v7x) with headroom for internal scratch.
    wbytes = jnp.dtype(mm).itemsize
    ffn_chunk = min(d_ff, 512)
    weight_bytes = wbytes * (4 * D * D + 2 * D * d_ff) + 4 * (10 * D + d_ff + 3 * D)
    act_bytes = 4 * (12 * S * D + 3 * S * S + 2 * S * ffn_chunk + S)
    want = 6 * (weight_bytes + act_bytes)
    try:
        cap = pltpu.get_tpu_info().vmem_capacity_bytes
    except Exception:
        cap = 64 * 2**20
    vmem_limit = int(max(32 * 2**20, min(want, cap - 12 * 2**20)))

    kernel = functools.partial(encoder_kernel, n_head=n_head, n_layer=n_layer,
                               matmul_dtype=matmul_dtype)
    return pl.pallas_call(
        kernel,
        out_shape=jax.ShapeDtypeStruct((B, S, D), src.dtype),
        grid=(B,),
        in_specs=in_specs,
        out_specs=pl.BlockSpec((1, S, D), lambda b: (b, 0, 0)),
        scratch_shapes=[pltpu.VMEM((S, D), matmul_dtype)],
        compiler_params=pltpu.CompilerParams(
            dimension_semantics=("parallel",),
            vmem_limit_bytes=vmem_limit,
        ),
    )(
        src, key_valid.reshape(B, 1, S),
        wqkv, bqkv,
        wo, params["bo"],
        params["g1"], params["be1"],
        w1, params["bf1"], w2, params["bf2"],
        params["g2"], params["be2"],
    )


# ------------------------- pure-JAX reference -------------------------------
def encoder_layer_ref(x, mask, p, n_head):
    B, S, D = x.shape
    dh = D // n_head
    q = x @ p["wq"] + p["bq"]
    k = x @ p["wk"] + p["bk"]
    v = x @ p["wv"] + p["bv"]

    def heads(t):  # (B,S,D) -> (B,H,S,dh)
        return t.reshape(B, S, n_head, dh).transpose(0, 2, 1, 3)

    qh, kh, vh = heads(q), heads(k), heads(v)
    sc = jnp.einsum("bhqd,bhkd->bhqk", qh, kh) / math.sqrt(dh)
    sc = jnp.where(mask[:, None] > 0, sc, -1e9)
    sc = sc - sc.max(-1, keepdims=True)
    pr = jnp.exp(sc)
    pr = pr / pr.sum(-1, keepdims=True)
    ctx = jnp.einsum("bhqk,bhkd->bhqd", pr, vh).transpose(0, 2, 1, 3).reshape(B, S, D)
    attn = ctx @ p["wo"] + p["bo"]

    def ln(t, g, b):
        mu = t.mean(-1, keepdims=True)
        var = ((t - mu) ** 2).mean(-1, keepdims=True)
        return (t - mu) * jax.lax.rsqrt(var + 1e-5) * g + b

    y = ln(x + attn, p["g1"], p["be1"])
    f = jnp.maximum(y @ p["w1"] + p["bf1"], 0.0) @ p["w2"] + p["bf2"]
    return ln(y + f, p["g2"], p["be2"])


def encoder_ref(src, mask, params, n_layer, n_head):
    out = src
    for _ in range(n_layer):
        out = encoder_layer_ref(out, mask, params, n_head)
    return out


# --------------------------------- main --------------------------------------
if __name__ == "__main__":
    B, S, D, H, DFF, N_LAYER = 2, 8, 32, 4, 64, 2

    key = jax.random.PRNGKey(0)
    ks = jax.random.split(key, 10)
    scale = 1.0 / math.sqrt(D)
    params = {
        "wq": jax.random.normal(ks[0], (D, D), jnp.float32) * scale,
        "wk": jax.random.normal(ks[1], (D, D), jnp.float32) * scale,
        "wv": jax.random.normal(ks[2], (D, D), jnp.float32) * scale,
        "wo": jax.random.normal(ks[3], (D, D), jnp.float32) * scale,
        "bq": jnp.zeros((1, D), jnp.float32),
        "bk": jnp.zeros((1, D), jnp.float32),
        "bv": jnp.zeros((1, D), jnp.float32),
        "bo": jnp.zeros((1, D), jnp.float32),
        "g1": jnp.ones((1, D), jnp.float32),
        "be1": jnp.zeros((1, D), jnp.float32),
        "w1": jax.random.normal(ks[4], (D, DFF), jnp.float32) * scale,
        "bf1": jnp.zeros((1, DFF), jnp.float32),
        "w2": jax.random.normal(ks[5], (DFF, D), jnp.float32) * (1.0 / math.sqrt(DFF)),
        "bf2": jnp.zeros((1, D), jnp.float32),
        "g2": jnp.ones((1, D), jnp.float32),
        "be2": jnp.zeros((1, D), jnp.float32),
    }

    src = jax.random.normal(ks[6], (B, S, D), jnp.float32)
    # padding-style key mask: batch 0 attends to all 8 positions, batch 1 to first 6
    lengths = jnp.array([8, 6])
    key_valid = (jnp.arange(S)[None, :] < lengths[:, None]).astype(jnp.float32)  # (B,S)
    src_mask = jnp.broadcast_to(key_valid[:, None, :], (B, S, S))                # (B,S,S)

    # f32 MXU path — tight check against the pure-JAX reference (exact softmax divide).
    out = encoder_forward(src, key_valid, params, N_LAYER, H)
    out = jax.block_until_ready(out)
    ref = encoder_ref(src, src_mask, params, N_LAYER, H)
    np.testing.assert_allclose(np.asarray(out), np.asarray(ref), rtol=2e-3, atol=2e-3)

    # bf16 MXU-operand path (production setting on v5e/v6e/v7x): bf16 weights passed
    # from the wrapper, f32 accumulation / LayerNorm / softmax — checked loosely.
    out_bf16 = encoder_forward(src, key_valid, params, N_LAYER, H,
                               matmul_dtype=jnp.bfloat16)
    out_bf16 = jax.block_until_ready(out_bf16)
    assert bool(jnp.all(jnp.isfinite(out_bf16)))
    np.testing.assert_allclose(np.asarray(out_bf16), np.asarray(ref),
                               rtol=1e-1, atol=1e-1)

    print("KERNEL_OK")
</pallas_src>

<mosaic_0001>
module attributes {stable_mosaic.version = 11 : i64} {
  func.func @encoder_kernel(%arg0: i32, %arg1: memref<1x8x32xf32, #tpu.memory_space<vmem>>, %arg2: memref<1x1x8xf32, #tpu.memory_space<vmem>>, %arg3: memref<32x96xf32, #tpu.memory_space<vmem>>, %arg4: memref<1x96xf32, #tpu.memory_space<vmem>>, %arg5: memref<32x32xf32, #tpu.memory_space<vmem>>, %arg6: memref<1x32xf32, #tpu.memory_space<vmem>>, %arg7: memref<1x32xf32, #tpu.memory_space<vmem>>, %arg8: memref<1x32xf32, #tpu.memory_space<vmem>>, %arg9: memref<32x64xf32, #tpu.memory_space<vmem>>, %arg10: memref<1x64xf32, #tpu.memory_space<vmem>>, %arg11: memref<64x32xf32, #tpu.memory_space<vmem>>, %arg12: memref<1x32xf32, #tpu.memory_space<vmem>>, %arg13: memref<1x32xf32, #tpu.memory_space<vmem>>, %arg14: memref<1x32xf32, #tpu.memory_space<vmem>>, %arg15: memref<1x8x32xf32, #tpu.memory_space<vmem>>, %arg16: memref<8x32xf32, #tpu.memory_space<vmem>>) attributes {dimension_semantics = [#tpu.dimension_semantics<parallel>], iteration_bounds = array<i64: 2>, scalar_prefetch = 0 : i64, scratch_operands = 1 : i64, tpu.core_type = #tpu.core_type<tc>, window_params = [{transform_indices = @transform_0, window_bounds = array<i64: 1, 8, 32>}, {transform_indices = @transform_1, window_bounds = array<i64: 1, 1, 8>}, {pipeline_mode = #tpu.pipeline_mode<synchronous>, transform_indices = @transform_2, window_bounds = array<i64: 32, 96>}, {pipeline_mode = #tpu.pipeline_mode<synchronous>, transform_indices = @transform_3, window_bounds = array<i64: 1, 96>}, {pipeline_mode = #tpu.pipeline_mode<synchronous>, transform_indices = @transform_4, window_bounds = array<i64: 32, 32>}, {pipeline_mode = #tpu.pipeline_mode<synchronous>, transform_indices = @transform_5, window_bounds = array<i64: 1, 32>}, {pipeline_mode = #tpu.pipeline_mode<synchronous>, transform_indices = @transform_6, window_bounds = array<i64: 1, 32>}, {pipeline_mode = #tpu.pipeline_mode<synchronous>, transform_indices = @transform_7, window_bounds = array<i64: 1, 32>}, {pipeline_mode = #tpu.pipeline_mode<synchronous>, transform_indices = @transform_8, window_bounds = array<i64: 32, 64>}, {pipeline_mode = #tpu.pipeline_mode<synchronous>, transform_indices = @transform_9, window_bounds = array<i64: 1, 64>}, {pipeline_mode = #tpu.pipeline_mode<synchronous>, transform_indices = @transform_10, window_bounds = array<i64: 64, 32>}, {pipeline_mode = #tpu.pipeline_mode<synchronous>, transform_indices = @transform_11, window_bounds = array<i64: 1, 32>}, {pipeline_mode = #tpu.pipeline_mode<synchronous>, transform_indices = @transform_12, window_bounds = array<i64: 1, 32>}, {pipeline_mode = #tpu.pipeline_mode<synchronous>, transform_indices = @transform_13, window_bounds = array<i64: 1, 32>}, {transform_indices = @transform_14, window_bounds = array<i64: 1, 8, 32>}]} {
    %c0 = arith.constant 0 : index
    %c0_0 = arith.constant 0 : index
    %c0_1 = arith.constant 0 : index
    %0 = vector.load %arg2[%c0, %c0_0, %c0_1] : memref<1x1x8xf32, #tpu.memory_space<vmem>>, vector<1x1x8xf32>
    %1 = vector.shape_cast %0 : vector<1x1x8xf32> to vector<1x8xf32>
    %cst = arith.constant 0.000000e+00 : f32
    %2 = vector.broadcast %cst : f32 to vector<1x8xf32>
    %3 = arith.cmpf ogt, %1, %2 : vector<1x8xf32>
    %cst_2 = arith.constant 0.000000e+00 : f32
    %cst_3 = arith.constant -1.000000e+09 : f32
    %4 = vector.broadcast %cst_2 : f32 to vector<1x8xf32>
    %5 = vector.broadcast %cst_3 : f32 to vector<1x8xf32>
    %6 = arith.select %3, %4, %5 : vector<1x8xi1>, vector<1x8xf32>
    %7 = vector.shape_cast %6 : vector<1x8xf32> to vector<1x8xf32>
    %8 = vector.broadcast %7 : vector<1x8xf32> to vector<8x8xf32>
    %c0_4 = arith.constant 0 : index
    %c0_5 = arith.constant 0 : index
    %9 = vector.load %arg3[%c0_4, %c0_5] : memref<32x96xf32, #tpu.memory_space<vmem>>, vector<32x96xf32>
    %c0_6 = arith.constant 0 : index
    %c0_7 = arith.constant 0 : index
    %10 = vector.load %arg5[%c0_6, %c0_7] : memref<32x32xf32, #tpu.memory_space<vmem>>, vector<32x32xf32>
    %c0_8 = arith.constant 0 : index
    %c0_9 = arith.constant 0 : index
    %11 = vector.load %arg4[%c0_8, %c0_9] : memref<1x96xf32, #tpu.memory_space<vmem>>, vector<1x96xf32>
    %c0_10 = arith.constant 0 : index
    %c0_11 = arith.constant 0 : index
    %12 = vector.load %arg6[%c0_10, %c0_11] : memref<1x32xf32, #tpu.memory_space<vmem>>, vector<1x32xf32>
    %c0_12 = arith.constant 0 : index
    %c0_13 = arith.constant 0 : index
    %13 = vector.load %arg7[%c0_12, %c0_13] : memref<1x32xf32, #tpu.memory_space<vmem>>, vector<1x32xf32>
    %c0_14 = arith.constant 0 : index
    %c0_15 = arith.constant 0 : index
    %14 = vector.load %arg8[%c0_14, %c0_15] : memref<1x32xf32, #tpu.memory_space<vmem>>, vector<1x32xf32>
    %c0_16 = arith.constant 0 : index
    %c0_17 = arith.constant 0 : index
    %15 = vector.load %arg13[%c0_16, %c0_17] : memref<1x32xf32, #tpu.memory_space<vmem>>, vector<1x32xf32>
    %c0_18 = arith.constant 0 : index
    %c0_19 = arith.constant 0 : index
    %16 = vector.load %arg14[%c0_18, %c0_19] : memref<1x32xf32, #tpu.memory_space<vmem>>, vector<1x32xf32>
    %c0_20 = arith.constant 0 : index
    %c0_21 = arith.constant 0 : index
    %17 = vector.load %arg12[%c0_20, %c0_21] : memref<1x32xf32, #tpu.memory_space<vmem>>, vector<1x32xf32>
    %c0_22 = arith.constant 0 : index
    %c0_23 = arith.constant 0 : index
    %c0_24 = arith.constant 0 : index
    %18 = vector.load %arg1[%c0_22, %c0_23, %c0_24] : memref<1x8x32xf32, #tpu.memory_space<vmem>>, vector<1x8x32xf32>
    %19 = vector.shape_cast %18 : vector<1x8x32xf32> to vector<8x32xf32>
    %c0_i32 = arith.constant 0 : i32
    %cst_25 = arith.constant dense<0.000000e+00> : vector<8x96xf32>
    %20 = tpu.matmul %19, %9, %cst_25 {dimension_numbers = #tpu.dot_dimension_numbers<[1], [0], [0], [1], [0, 0, 1, 1], [], []>} : vector<8x32xf32>, vector<32x96xf32>, vector<8x96xf32> -> vector<8x96xf32>
    %21 = vector.broadcast %11 : vector<1x96xf32> to vector<8x96xf32>
    %22 = arith.addf %20, %21 : vector<8x96xf32>
    %23 = vector.extract_strided_slice %22 {offsets = [0, 0], sizes = [8, 32], strides = [1, 1]} : vector<8x96xf32> to vector<8x32xf32>
    %24 = vector.extract_strided_slice %22 {offsets = [0, 32], sizes = [8, 32], strides = [1, 1]} : vector<8x96xf32> to vector<8x32xf32>
    %25 = vector.extract_strided_slice %22 {offsets = [0, 64], sizes = [8, 32], strides = [1, 1]} : vector<8x96xf32> to vector<8x32xf32>
    %26 = vector.extract_strided_slice %23 {offsets = [0, 0], sizes = [8, 8], strides = [1, 1]} : vector<8x32xf32> to vector<8x8xf32>
    %27 = vector.extract_strided_slice %24 {offsets = [0, 0], sizes = [8, 8], strides = [1, 1]} : vector<8x32xf32> to vector<8x8xf32>
    %28 = vector.extract_strided_slice %25 {offsets = [0, 0], sizes = [8, 8], strides = [1, 1]} : vector<8x32xf32> to vector<8x8xf32>
    %cst_26 = arith.constant dense<0.000000e+00> : vector<8x8xf32>
    %29 = tpu.matmul %26, %27, %cst_26 {dimension_numbers = #tpu.dot_dimension_numbers<[1], [1], [0], [0], [0, 0, 1, 0], [], []>} : vector<8x8xf32>, vector<8x8xf32>, vector<8x8xf32> -> vector<8x8xf32>
    %30 = arith.addf %29, %8 : vector<8x8xf32>
    %cst_27 = arith.constant dense<0xFF800000> : vector<8xf32>
    %31 = vector.multi_reduction <maximumf>, %30, %cst_27 [1] : vector<8x8xf32> to vector<8xf32>
    %32 = vector.shape_cast %31 : vector<8xf32> to vector<8x1xf32>
    %33 = vector.broadcast %32 : vector<8x1xf32> to vector<8x8xf32>
    %34 = arith.subf %30, %33 : vector<8x8xf32>
    %35 = math.exp %34 : vector<8x8xf32>
    %cst_28 = arith.constant dense<0.000000e+00> : vector<8xf32>
    %36 = vector.multi_reduction <add>, %35, %cst_28 [1] : vector<8x8xf32> to vector<8xf32>
    %37 = vector.shape_cast %36 : vector<8xf32> to vector<8x1xf32>
    %cst_29 = arith.constant dense<0.000000e+00> : vector<8x8xf32>
    %38 = tpu.matmul %35, %28, %cst_29 {dimension_numbers = #tpu.dot_dimension_numbers<[1], [0], [0], [1], [0, 0, 1, 1], [], []>} : vector<8x8xf32>, vector<8x8xf32>, vector<8x8xf32> -> vector<8x8xf32>
    %39 = vector.broadcast %37 : vector<8x1xf32> to vector<8x8xf32>
    %40 = arith.divf %38, %39 : vector<8x8xf32>
    %c0_30 = arith.constant 0 : index
    %c0_31 = arith.constant 0 : index
    %41 = vector.load %arg16[%c0_30, %c0_31] : memref<8x32xf32, #tpu.memory_space<vmem>>, vector<8x8xf32>
    tpu.vector_store %arg16[%c0_30, %c0_31], %40 {strides = array<i32>} : memref<8x32xf32, #tpu.memory_space<vmem>>, vector<8x8xf32>,
    %42 = vector.extract_strided_slice %23 {offsets = [0, 8], sizes = [8, 8], strides = [1, 1]} : vector<8x32xf32> to vector<8x8xf32>
    %43 = vector.extract_strided_slice %24 {offsets = [0, 8], sizes = [8, 8], strides = [1, 1]} : vector<8x32xf32> to vector<8x8xf32>
    %44 = vector.extract_strided_slice %25 {offsets = [0, 8], sizes = [8, 8], strides = [1, 1]} : vector<8x32xf32> to vector<8x8xf32>
    %cst_32 = arith.constant dense<0.000000e+00> : vector<8x8xf32>
    %45 = tpu.matmul %42, %43, %cst_32 {dimension_numbers = #tpu.dot_dimension_numbers<[1], [1], [0], [0], [0, 0, 1, 0], [], []>} : vector<8x8xf32>, vector<8x8xf32>, vector<8x8xf32> -> vector<8x8xf32>
    %46 = arith.addf %45, %8 : vector<8x8xf32>
    %cst_33 = arith.constant dense<0xFF800000> : vector<8xf32>
    %47 = vector.multi_reduction <maximumf>, %46, %cst_33 [1] : vector<8x8xf32> to vector<8xf32>
    %48 = vector.shape_cast %47 : vector<8xf32> to vector<8x1xf32>
    %49 = vector.broadcast %48 : vector<8x1xf32> to vector<8x8xf32>
    %50 = arith.subf %46, %49 : vector<8x8xf32>
    %51 = math.exp %50 : vector<8x8xf32>
    %cst_34 = arith.constant dense<0.000000e+00> : vector<8xf32>
    %52 = vector.multi_reduction <add>, %51, %cst_34 [1] : vector<8x8xf32> to vector<8xf32>
    %53 = vector.shape_cast %52 : vector<8xf32> to vector<8x1xf32>
    %cst_35 = arith.constant dense<0.000000e+00> : vector<8x8xf32>
    %54 = tpu.matmul %51, %44, %cst_35 {dimension_numbers = #tpu.dot_dimension_numbers<[1], [0], [0], [1], [0, 0, 1, 1], [], []>} : vector<8x8xf32>, vector<8x8xf32>, vector<8x8xf32> -> vector<8x8xf32>
    %55 = vector.broadcast %53 : vector<8x1xf32> to vector<8x8xf32>
    %56 = arith.divf %54, %55 : vector<8x8xf32>
    %c0_36 = arith.constant 0 : index
    %c8 = arith.constant 8 : index
    %57 = vector.load %arg16[%c0_36, %c8] : memref<8x32xf32, #tpu.memory_space<vmem>>, vector<8x8xf32>
    tpu.vector_store %arg16[%c0_36, %c8], %56 {strides = array<i32>} : memref<8x32xf32, #tpu.memory_space<vmem>>, vector<8x8xf32>,
    %58 = vector.extract_strided_slice %23 {offsets = [0, 16], sizes = [8, 8], strides = [1, 1]} : vector<8x32xf32> to vector<8x8xf32>
    %59 = vector.extract_strided_slice %24 {offsets = [0, 16], sizes = [8, 8], strides = [1, 1]} : vector<8x32xf32> to vector<8x8xf32>
    %60 = vector.extract_strided_slice %25 {offsets = [0, 16], sizes = [8, 8], strides = [1, 1]} : vector<8x32xf32> to vector<8x8xf32>
    %cst_37 = arith.constant dense<0.000000e+00> : vector<8x8xf32>
    %61 = tpu.matmul %58, %59, %cst_37 {dimension_numbers = #tpu.dot_dimension_numbers<[1], [1], [0], [0], [0, 0, 1, 0], [], []>} : vector<8x8xf32>, vector<8x8xf32>, vector<8x8xf32> -> vector<8x8xf32>
    %62 = arith.addf %61, %8 : vector<8x8xf32>
    %cst_38 = arith.constant dense<0xFF800000> : vector<8xf32>
    %63 = vector.multi_reduction <maximumf>, %62, %cst_38 [1] : vector<8x8xf32> to vector<8xf32>
    %64 = vector.shape_cast %63 : vector<8xf32> to vector<8x1xf32>
    %65 = vector.broadcast %64 : vector<8x1xf32> to vector<8x8xf32>
    %66 = arith.subf %62, %65 : vector<8x8xf32>
    %67 = math.exp %66 : vector<8x8xf32>
    %cst_39 = arith.constant dense<0.000000e+00> : vector<8xf32>
    %68 = vector.multi_reduction <add>, %67, %cst_39 [1] : vector<8x8xf32> to vector<8xf32>
    %69 = vector.shape_cast %68 : vector<8xf32> to vector<8x1xf32>
    %cst_40 = arith.constant dense<0.000000e+00> : vector<8x8xf32>
    %70 = tpu.matmul %67, %60, %cst_40 {dimension_numbers = #tpu.dot_dimension_numbers<[1], [0], [0], [1], [0, 0, 1, 1], [], []>} : vector<8x8xf32>, vector<8x8xf32>, vector<8x8xf32> -> vector<8x8xf32>
    %71 = vector.broadcast %69 : vector<8x1xf32> to vector<8x8xf32>
    %72 = arith.divf %70, %71 : vector<8x8xf32>
    %c0_41 = arith.constant 0 : index
    %c16 = arith.constant 16 : index
    %73 = vector.load %arg16[%c0_41, %c16] : memref<8x32xf32, #tpu.memory_space<vmem>>, vector<8x8xf32>
    tpu.vector_store %arg16[%c0_41, %c16], %72 {strides = array<i32>} : memref<8x32xf32, #tpu.memory_space<vmem>>, vector<8x8xf32>,
    %74 = vector.extract_strided_slice %23 {offsets = [0, 24], sizes = [8, 8], strides = [1, 1]} : vector<8x32xf32> to vector<8x8xf32>
    %75 = vector.extract_strided_slice %24 {offsets = [0, 24], sizes = [8, 8], strides = [1, 1]} : vector<8x32xf32> to vector<8x8xf32>
    %76 = vector.extract_strided_slice %25 {offsets = [0, 24], sizes = [8, 8], strides = [1, 1]} : vector<8x32xf32> to vector<8x8xf32>
    %cst_42 = arith.constant dense<0.000000e+00> : vector<8x8xf32>
    %77 = tpu.matmul %74, %75, %cst_42 {dimension_numbers = #tpu.dot_dimension_numbers<[1], [1], [0], [0], [0, 0, 1, 0], [], []>} : vector<8x8xf32>, vector<8x8xf32>, vector<8x8xf32> -> vector<8x8xf32>
    %78 = arith.addf %77, %8 : vector<8x8xf32>
    %cst_43 = arith.constant dense<0xFF800000> : vector<8xf32>
    %79 = vector.multi_reduction <maximumf>, %78, %cst_43 [1] : vector<8x8xf32> to vector<8xf32>
    %80 = vector.shape_cast %79 : vector<8xf32> to vector<8x1xf32>
    %81 = vector.broadcast %80 : vector<8x1xf32> to vector<8x8xf32>
    %82 = arith.subf %78, %81 : vector<8x8xf32>
    %83 = math.exp %82 : vector<8x8xf32>
    %cst_44 = arith.constant dense<0.000000e+00> : vector<8xf32>
    %84 = vector.multi_reduction <add>, %83, %cst_44 [1] : vector<8x8xf32> to vector<8xf32>
    %85 = vector.shape_cast %84 : vector<8xf32> to vector<8x1xf32>
    %cst_45 = arith.constant dense<0.000000e+00> : vector<8x8xf32>
    %86 = tpu.matmul %83, %76, %cst_45 {dimension_numbers = #tpu.dot_dimension_numbers<[1], [0], [0], [1], [0, 0, 1, 1], [], []>} : vector<8x8xf32>, vector<8x8xf32>, vector<8x8xf32> -> vector<8x8xf32>
    %87 = vector.broadcast %85 : vector<8x1xf32> to vector<8x8xf32>
    %88 = arith.divf %86, %87 : vector<8x8xf32>
    %c0_46 = arith.constant 0 : index
    %c24 = arith.constant 24 : index
    %89 = vector.load %arg16[%c0_46, %c24] : memref<8x32xf32, #tpu.memory_space<vmem>>, vector<8x8xf32>
    tpu.vector_store %arg16[%c0_46, %c24], %88 {strides = array<i32>} : memref<8x32xf32, #tpu.memory_space<vmem>>, vector<8x8xf32>,
    %c0_47 = arith.constant 0 : index
    %c0_48 = arith.constant 0 : index
    %90 = vector.load %arg16[%c0_47, %c0_48] : memref<8x32xf32, #tpu.memory_space<vmem>>, vector<8x32xf32>
    %cst_49 = arith.constant dense<0.000000e+00> : vector<8x32xf32>
    %91 = tpu.matmul %90, %10, %cst_49 {dimension_numbers = #tpu.dot_dimension_numbers<[1], [0], [0], [1], [0, 0, 1, 1], [], []>} : vector<8x32xf32>, vector<32x32xf32>, vector<8x32xf32> -> vector<8x32xf32>
    %92 = vector.broadcast %12 : vector<1x32xf32> to vector<8x32xf32>
    %93 = arith.addf %91, %92 : vector<8x32xf32>
    %94 = arith.addf %19, %93 : vector<8x32xf32>
    %cst_50 = arith.constant dense<0.000000e+00> : vector<8xf32>
    %95 = vector.multi_reduction <add>, %94, %cst_50 [1] : vector<8x32xf32> to vector<8xf32>
    %96 = vector.shape_cast %95 : vector<8xf32> to vector<8x1xf32>
    %cst_51 = arith.constant 3.200000e+01 : f32
    %97 = vector.broadcast %cst_51 : f32 to vector<8x1xf32>
    %98 = arith.divf %96, %97 : vector<8x1xf32>
    %99 = arith.mulf %94, %94 : vector<8x32xf32>
    %cst_52 = arith.constant dense<0.000000e+00> : vector<8xf32>
    %100 = vector.multi_reduction <add>, %99, %cst_52 [1] : vector<8x32xf32> to vector<8xf32>
    %101 = vector.shape_cast %100 : vector<8xf32> to vector<8x1xf32>
    %cst_53 = arith.constant 3.200000e+01 : f32
    %102 = vector.broadcast %cst_53 : f32 to vector<8x1xf32>
    %103 = arith.divf %101, %102 : vector<8x1xf32>
    %104 = arith.mulf %98, %98 : vector<8x1xf32>
    %105 = arith.subf %103, %104 : vector<8x1xf32>
    %106 = vector.broadcast %98 : vector<8x1xf32> to vector<8x32xf32>
    %107 = arith.subf %94, %106 : vector<8x32xf32>
    %cst_54 = arith.constant 9.99999974E-6 : f32
    %108 = vector.broadcast %cst_54 : f32 to vector<8x1xf32>
    %109 = arith.addf %105, %108 : vector<8x1xf32>
    %110 = math.rsqrt %109 : vector<8x1xf32>
    %111 = vector.broadcast %110 : vector<8x1xf32> to vector<8x32xf32>
    %112 = arith.mulf %107, %111 : vector<8x32xf32>
    %113 = vector.broadcast %13 : vector<1x32xf32> to vector<8x32xf32>
    %114 = arith.mulf %112, %113 : vector<8x32xf32>
    %115 = vector.broadcast %14 : vector<1x32xf32> to vector<8x32xf32>
    %116 = arith.addf %114, %115 : vector<8x32xf32>
    %cst_55 = arith.constant 0.000000e+00 : f32
    %117 = vector.broadcast %cst_55 : f32 to vector<8x32xf32>
    %c0_56 = arith.constant 0 : index
    %c0_57 = arith.constant 0 : index
    %118 = vector.load %arg9[%c0_56, %c0_57] : memref<32x64xf32, #tpu.memory_space<vmem>>, vector<32x64xf32>
    %cst_58 = arith.constant dense<0.000000e+00> : vector<8x64xf32>
    %119 = tpu.matmul %116, %118, %cst_58 {dimension_numbers = #tpu.dot_dimension_numbers<[1], [0], [0], [1], [0, 0, 1, 1], [], []>} : vector<8x32xf32>, vector<32x64xf32>, vector<8x64xf32> -> vector<8x64xf32>
    %c0_59 = arith.constant 0 : index
    %c0_60 = arith.constant 0 : index
    %120 = vector.load %arg10[%c0_59, %c0_60] : memref<1x64xf32, #tpu.memory_space<vmem>>, vector<1x64xf32>
    %121 = vector.broadcast %120 : vector<1x64xf32> to vector<8x64xf32>
    %122 = arith.addf %119, %121 : vector<8x64xf32>
    %cst_61 = arith.constant 0.000000e+00 : f32
    %123 = vector.broadcast %cst_61 : f32 to vector<8x64xf32>
    %124 = arith.maximumf %122, %123 : vector<8x64xf32>
    %c0_62 = arith.constant 0 : index
    %c0_63 = arith.constant 0 : index
    %125 = vector.load %arg11[%c0_62, %c0_63] : memref<64x32xf32, #tpu.memory_space<vmem>>, vector<64x32xf32>
    %cst_64 = arith.constant dense<0.000000e+00> : vector<8x32xf32>
    %126 = tpu.matmul %124, %125, %cst_64 {dimension_numbers = #tpu.dot_dimension_numbers<[1], [0], [0], [1], [0, 0, 1, 1], [], []>} : vector<8x64xf32>, vector<64x32xf32>, vector<8x32xf32> -> vector<8x32xf32>
    %127 = arith.addf %117, %126 : vector<8x32xf32>
    %128 = vector.broadcast %17 : vector<1x32xf32> to vector<8x32xf32>
    %129 = arith.addf %127, %128 : vector<8x32xf32>
    %130 = arith.addf %116, %129 : vector<8x32xf32>
    %cst_65 = arith.constant dense<0.000000e+00> : vector<8xf32>
    %131 = vector.multi_reduction <add>, %130, %cst_65 [1] : vector<8x32xf32> to vector<8xf32>
    %132 = vector.shape_cast %131 : vector<8xf32> to vector<8x1xf32>
    %cst_66 = arith.constant 3.200000e+01 : f32
    %133 = vector.broadcast %cst_66 : f32 to vector<8x1xf32>
    %134 = arith.divf %132, %133 : vector<8x1xf32>
    %135 = arith.mulf %130, %130 : vector<8x32xf32>
    %cst_67 = arith.constant dense<0.000000e+00> : vector<8xf32>
    %136 = vector.multi_reduction <add>, %135, %cst_67 [1] : vector<8x32xf32> to vector<8xf32>
    %137 = vector.shape_cast %136 : vector<8xf32> to vector<8x1xf32>
    %cst_68 = arith.constant 3.200000e+01 : f32
    %138 = vector.broadcast %cst_68 : f32 to vector<8x1xf32>
    %139 = arith.divf %137, %138 : vector<8x1xf32>
    %140 = arith.mulf %134, %134 : vector<8x1xf32>
    %141 = arith.subf %139, %140 : vector<8x1xf32>
    %142 = vector.broadcast %134 : vector<8x1xf32> to vector<8x32xf32>
    %143 = arith.subf %130, %142 : vector<8x32xf32>
    %cst_69 = arith.constant 9.99999974E-6 : f32
    %144 = vector.broadcast %cst_69 : f32 to vector<8x1xf32>
    %145 = arith.addf %141, %144 : vector<8x1xf32>
    %146 = math.rsqrt %145 : vector<8x1xf32>
    %147 = vector.broadcast %146 : vector<8x1xf32> to vector<8x32xf32>
    %148 = arith.mulf %143, %147 : vector<8x32xf32>
    %149 = vector.broadcast %15 : vector<1x32xf32> to vector<8x32xf32>
    %150 = arith.mulf %148, %149 : vector<8x32xf32>
    %151 = vector.broadcast %16 : vector<1x32xf32> to vector<8x32xf32>
    %152 = arith.addf %150, %151 : vector<8x32xf32>
    %c1_i32 = arith.constant 1 : i32
    %cst_70 = arith.constant dense<0.000000e+00> : vector<8x96xf32>
    %153 = tpu.matmul %152, %9, %cst_70 {dimension_numbers = #tpu.dot_dimension_numbers<[1], [0], [0], [1], [0, 0, 1, 1], [], []>} : vector<8x32xf32>, vector<32x96xf32>, vector<8x96xf32> -> vector<8x96xf32>
    %154 = vector.broadcast %11 : vector<1x96xf32> to vector<8x96xf32>
    %155 = arith.addf %153, %154 : vector<8x96xf32>
    %156 = vector.extract_strided_slice %155 {offsets = [0, 0], sizes = [8, 32], strides = [1, 1]} : vector<8x96xf32> to vector<8x32xf32>
    %157 = vector.extract_strided_slice %155 {offsets = [0, 32], sizes = [8, 32], strides = [1, 1]} : vector<8x96xf32> to vector<8x32xf32>
    %158 = vector.extract_strided_slice %155 {offsets = [0, 64], sizes = [8, 32], strides = [1, 1]} : vector<8x96xf32> to vector<8x32xf32>
    %159 = vector.extract_strided_slice %156 {offsets = [0, 0], sizes = [8, 8], strides = [1, 1]} : vector<8x32xf32> to vector<8x8xf32>
    %160 = vector.extract_strided_slice %157 {offsets = [0, 0], sizes = [8, 8], strides = [1, 1]} : vector<8x32xf32> to vector<8x8xf32>
    %161 = vector.extract_strided_slice %158 {offsets = [0, 0], sizes = [8, 8], strides = [1, 1]} : vector<8x32xf32> to vector<8x8xf32>
    %cst_71 = arith.constant dense<0.000000e+00> : vector<8x8xf32>
    %162 = tpu.matmul %159, %160, %cst_71 {dimension_numbers = #tpu.dot_dimension_numbers<[1], [1], [0], [0], [0, 0, 1, 0], [], []>} : vector<8x8xf32>, vector<8x8xf32>, vector<8x8xf32> -> vector<8x8xf32>
    %163 = arith.addf %162, %8 : vector<8x8xf32>
    %cst_72 = arith.constant dense<0xFF800000> : vector<8xf32>
    %164 = vector.multi_reduction <maximumf>, %163, %cst_72 [1] : vector<8x8xf32> to vector<8xf32>
    %165 = vector.shape_cast %164 : vector<8xf32> to vector<8x1xf32>
    %166 = vector.broadcast %165 : vector<8x1xf32> to vector<8x8xf32>
    %167 = arith.subf %163, %166 : vector<8x8xf32>
    %168 = math.exp %167 : vector<8x8xf32>
    %cst_73 = arith.constant dense<0.000000e+00> : vector<8xf32>
    %169 = vector.multi_reduction <add>, %168, %cst_73 [1] : vector<8x8xf32> to vector<8xf32>
    %170 = vector.shape_cast %169 : vector<8xf32> to vector<8x1xf32>
    %cst_74 = arith.constant dense<0.000000e+00> : vector<8x8xf32>
    %171 = tpu.matmul %168, %161, %cst_74 {dimension_numbers = #tpu.dot_dimension_numbers<[1], [0], [0], [1], [0, 0, 1, 1], [], []>} : vector<8x8xf32>, vector<8x8xf32>, vector<8x8xf32> -> vector<8x8xf32>
    %172 = vector.broadcast %170 : vector<8x1xf32> to vector<8x8xf32>
    %173 = arith.divf %171, %172 : vector<8x8xf32>
    %c0_75 = arith.constant 0 : index
    %c0_76 = arith.constant 0 : index
    %174 = vector.load %arg16[%c0_75, %c0_76] : memref<8x32xf32, #tpu.memory_space<vmem>>, vector<8x8xf32>
    tpu.vector_store %arg16[%c0_75, %c0_76], %173 {strides = array<i32>} : memref<8x32xf32, #tpu.memory_space<vmem>>, vector<8x8xf32>,
    %175 = vector.extract_strided_slice %156 {offsets = [0, 8], sizes = [8, 8], strides = [1, 1]} : vector<8x32xf32> to vector<8x8xf32>
    %176 = vector.extract_strided_slice %157 {offsets = [0, 8], sizes = [8, 8], strides = [1, 1]} : vector<8x32xf32> to vector<8x8xf32>
    %177 = vector.extract_strided_slice %158 {offsets = [0, 8], sizes = [8, 8], strides = [1, 1]} : vector<8x32xf32> to vector<8x8xf32>
    %cst_77 = arith.constant dense<0.000000e+00> : vector<8x8xf32>
    %178 = tpu.matmul %175, %176, %cst_77 {dimension_numbers = #tpu.dot_dimension_numbers<[1], [1], [0], [0], [0, 0, 1, 0], [], []>} : vector<8x8xf32>, vector<8x8xf32>, vector<8x8xf32> -> vector<8x8xf32>
    %179 = arith.addf %178, %8 : vector<8x8xf32>
    %cst_78 = arith.constant dense<0xFF800000> : vector<8xf32>
    %180 = vector.multi_reduction <maximumf>, %179, %cst_78 [1] : vector<8x8xf32> to vector<8xf32>
    %181 = vector.shape_cast %180 : vector<8xf32> to vector<8x1xf32>
    %182 = vector.broadcast %181 : vector<8x1xf32> to vector<8x8xf32>
    %183 = arith.subf %179, %182 : vector<8x8xf32>
    %184 = math.exp %183 : vector<8x8xf32>
    %cst_79 = arith.constant dense<0.000000e+00> : vector<8xf32>
    %185 = vector.multi_reduction <add>, %184, %cst_79 [1] : vector<8x8xf32> to vector<8xf32>
    %186 = vector.shape_cast %185 : vector<8xf32> to vector<8x1xf32>
    %cst_80 = arith.constant dense<0.000000e+00> : vector<8x8xf32>
    %187 = tpu.matmul %184, %177, %cst_80 {dimension_numbers = #tpu.dot_dimension_numbers<[1], [0], [0], [1], [0, 0, 1, 1], [], []>} : vector<8x8xf32>, vector<8x8xf32>, vector<8x8xf32> -> vector<8x8xf32>
    %188 = vector.broadcast %186 : vector<8x1xf32> to vector<8x8xf32>
    %189 = arith.divf %187, %188 : vector<8x8xf32>
    %c0_81 = arith.constant 0 : index
    %c8_82 = arith.constant 8 : index
    %190 = vector.load %arg16[%c0_81, %c8_82] : memref<8x32xf32, #tpu.memory_space<vmem>>, vector<8x8xf32>
    tpu.vector_store %arg16[%c0_81, %c8_82], %189 {strides = array<i32>} : memref<8x32xf32, #tpu.memory_space<vmem>>, vector<8x8xf32>,
    %191 = vector.extract_strided_slice %156 {offsets = [0, 16], sizes = [8, 8], strides = [1, 1]} : vector<8x32xf32> to vector<8x8xf32>
    %192 = vector.extract_strided_slice %157 {offsets = [0, 16], sizes = [8, 8], strides = [1, 1]} : vector<8x32xf32> to vector<8x8xf32>
    %193 = vector.extract_strided_slice %158 {offsets = [0, 16], sizes = [8, 8], strides = [1, 1]} : vector<8x32xf32> to vector<8x8xf32>
    %cst_83 = arith.constant dense<0.000000e+00> : vector<8x8xf32>
    %194 = tpu.matmul %191, %192, %cst_83 {dimension_numbers = #tpu.dot_dimension_numbers<[1], [1], [0], [0], [0, 0, 1, 0], [], []>} : vector<8x8xf32>, vector<8x8xf32>, vector<8x8xf32> -> vector<8x8xf32>
    %195 = arith.addf %194, %8 : vector<8x8xf32>
    %cst_84 = arith.constant dense<0xFF800000> : vector<8xf32>
    %196 = vector.multi_reduction <maximumf>, %195, %cst_84 [1] : vector<8x8xf32> to vector<8xf32>
    %197 = vector.shape_cast %196 : vector<8xf32> to vector<8x1xf32>
    %198 = vector.broadcast %197 : vector<8x1xf32> to vector<8x8xf32>
    %199 = arith.subf %195, %198 : vector<8x8xf32>
    %200 = math.exp %199 : vector<8x8xf32>
    %cst_85 = arith.constant dense<0.000000e+00> : vector<8xf32>
    %201 = vector.multi_reduction <add>, %200, %cst_85 [1] : vector<8x8xf32> to vector<8xf32>
    %202 = vector.shape_cast %201 : vector<8xf32> to vector<8x1xf32>
    %cst_86 = arith.constant dense<0.000000e+00> : vector<8x8xf32>
    %203 = tpu.matmul %200, %193, %cst_86 {dimension_numbers = #tpu.dot_dimension_numbers<[1], [0], [0], [1], [0, 0, 1, 1], [], []>} : vector<8x8xf32>, vector<8x8xf32>, vector<8x8xf32> -> vector<8x8xf32>
    %204 = vector.broadcast %202 : vector<8x1xf32> to vector<8x8xf32>
    %205 = arith.divf %203, %204 : vector<8x8xf32>
    %c0_87 = arith.constant 0 : index
    %c16_88 = arith.constant 16 : index
    %206 = vector.load %arg16[%c0_87, %c16_88] : memref<8x32xf32, #tpu.memory_space<vmem>>, vector<8x8xf32>
    tpu.vector_store %arg16[%c0_87, %c16_88], %205 {strides = array<i32>} : memref<8x32xf32, #tpu.memory_space<vmem>>, vector<8x8xf32>,
    %207 = vector.extract_strided_slice %156 {offsets = [0, 24], sizes = [8, 8], strides = [1, 1]} : vector<8x32xf32> to vector<8x8xf32>
    %208 = vector.extract_strided_slice %157 {offsets = [0, 24], sizes = [8, 8], strides = [1, 1]} : vector<8x32xf32> to vector<8x8xf32>
    %209 = vector.extract_strided_slice %158 {offsets = [0, 24], sizes = [8, 8], strides = [1, 1]} : vector<8x32xf32> to vector<8x8xf32>
    %cst_89 = arith.constant dense<0.000000e+00> : vector<8x8xf32>
    %210 = tpu.matmul %207, %208, %cst_89 {dimension_numbers = #tpu.dot_dimension_numbers<[1], [1], [0], [0], [0, 0, 1, 0], [], []>} : vector<8x8xf32>, vector<8x8xf32>, vector<8x8xf32> -> vector<8x8xf32>
    %211 = arith.addf %210, %8 : vector<8x8xf32>
    %cst_90 = arith.constant dense<0xFF800000> : vector<8xf32>
    %212 = vector.multi_reduction <maximumf>, %211, %cst_90 [1] : vector<8x8xf32> to vector<8xf32>
    %213 = vector.shape_cast %212 : vector<8xf32> to vector<8x1xf32>
    %214 = vector.broadcast %213 : vector<8x1xf32> to vector<8x8xf32>
    %215 = arith.subf %211, %214 : vector<8x8xf32>
    %216 = math.exp %215 : vector<8x8xf32>
    %cst_91 = arith.constant dense<0.000000e+00> : vector<8xf32>
    %217 = vector.multi_reduction <add>, %216, %cst_91 [1] : vector<8x8xf32> to vector<8xf32>
    %218 = vector.shape_cast %217 : vector<8xf32> to vector<8x1xf32>
    %cst_92 = arith.constant dense<0.000000e+00> : vector<8x8xf32>
    %219 = tpu.matmul %216, %209, %cst_92 {dimension_numbers = #tpu.dot_dimension_numbers<[1], [0], [0], [1], [0, 0, 1, 1], [], []>} : vector<8x8xf32>, vector<8x8xf32>, vector<8x8xf32> -> vector<8x8xf32>
    %220 = vector.broadcast %218 : vector<8x1xf32> to vector<8x8xf32>
    %221 = arith.divf %219, %220 : vector<8x8xf32>
    %c0_93 = arith.constant 0 : index
    %c24_94 = arith.constant 24 : index
    %222 = vector.load %arg16[%c0_93, %c24_94] : memref<8x32xf32, #tpu.memory_space<vmem>>, vector<8x8xf32>
    tpu.vector_store %arg16[%c0_93, %c24_94], %221 {strides = array<i32>} : memref<8x32xf32, #tpu.memory_space<vmem>>, vector<8x8xf32>,
    %c0_95 = arith.constant 0 : index
    %c0_96 = arith.constant 0 : index
    %223 = vector.load %arg16[%c0_95, %c0_96] : memref<8x32xf32, #tpu.memory_space<vmem>>, vector<8x32xf32>
    %cst_97 = arith.constant dense<0.000000e+00> : vector<8x32xf32>
    %224 = tpu.matmul %223, %10, %cst_97 {dimension_numbers = #tpu.dot_dimension_numbers<[1], [0], [0], [1], [0, 0, 1, 1], [], []>} : vector<8x32xf32>, vector<32x32xf32>, vector<8x32xf32> -> vector<8x32xf32>
    %225 = vector.broadcast %12 : vector<1x32xf32> to vector<8x32xf32>
    %226 = arith.addf %224, %225 : vector<8x32xf32>
    %227 = arith.addf %152, %226 : vector<8x32xf32>
    %cst_98 = arith.constant dense<0.000000e+00> : vector<8xf32>
    %228 = vector.multi_reduction <add>, %227, %cst_98 [1] : vector<8x32xf32> to vector<8xf32>
    %229 = vector.shape_cast %228 : vector<8xf32> to vector<8x1xf32>
    %cst_99 = arith.constant 3.200000e+01 : f32
    %230 = vector.broadcast %cst_99 : f32 to vector<8x1xf32>
    %231 = arith.divf %229, %230 : vector<8x1xf32>
    %232 = arith.mulf %227, %227 : vector<8x32xf32>
    %cst_100 = arith.constant dense<0.000000e+00> : vector<8xf32>
    %233 = vector.multi_reduction <add>, %232, %cst_100 [1] : vector<8x32xf32> to vector<8xf32>
    %234 = vector.shape_cast %233 : vector<8xf32> to vector<8x1xf32>
    %cst_101 = arith.constant 3.200000e+01 : f32
    %235 = vector.broadcast %cst_101 : f32 to vector<8x1xf32>
    %236 = arith.divf %234, %235 : vector<8x1xf32>
    %237 = arith.mulf %231, %231 : vector<8x1xf32>
    %238 = arith.subf %236, %237 : vector<8x1xf32>
    %239 = vector.broadcast %231 : vector<8x1xf32> to vector<8x32xf32>
    %240 = arith.subf %227, %239 : vector<8x32xf32>
    %cst_102 = arith.constant 9.99999974E-6 : f32
    %241 = vector.broadcast %cst_102 : f32 to vector<8x1xf32>
    %242 = arith.addf %238, %241 : vector<8x1xf32>
    %243 = math.rsqrt %242 : vector<8x1xf32>
    %244 = vector.broadcast %243 : vector<8x1xf32> to vector<8x32xf32>
    %245 = arith.mulf %240, %244 : vector<8x32xf32>
    %246 = vector.broadcast %13 : vector<1x32xf32> to vector<8x32xf32>
    %247 = arith.mulf %245, %246 : vector<8x32xf32>
    %248 = vector.broadcast %14 : vector<1x32xf32> to vector<8x32xf32>
    %249 = arith.addf %247, %248 : vector<8x32xf32>
    %cst_103 = arith.constant 0.000000e+00 : f32
    %250 = vector.broadcast %cst_103 : f32 to vector<8x32xf32>
    %c0_104 = arith.constant 0 : index
    %c0_105 = arith.constant 0 : index
    %251 = vector.load %arg9[%c0_104, %c0_105] : memref<32x64xf32, #tpu.memory_space<vmem>>, vector<32x64xf32>
    %cst_106 = arith.constant dense<0.000000e+00> : vector<8x64xf32>
    %252 = tpu.matmul %249, %251, %cst_106 {dimension_numbers = #tpu.dot_dimension_numbers<[1], [0], [0], [1], [0, 0, 1, 1], [], []>} : vector<8x32xf32>, vector<32x64xf32>, vector<8x64xf32> -> vector<8x64xf32>
    %c0_107 = arith.constant 0 : index
    %c0_108 = arith.constant 0 : index
    %253 = vector.load %arg10[%c0_107, %c0_108] : memref<1x64xf32, #tpu.memory_space<vmem>>, vector<1x64xf32>
    %254 = vector.broadcast %253 : vector<1x64xf32> to vector<8x64xf32>
    %255 = arith.addf %252, %254 : vector<8x64xf32>
    %cst_109 = arith.constant 0.000000e+00 : f32
    %256 = vector.broadcast %cst_109 : f32 to vector<8x64xf32>
    %257 = arith.maximumf %255, %256 : vector<8x64xf32>
    %c0_110 = arith.constant 0 : index
    %c0_111 = arith.constant 0 : index
    %258 = vector.load %arg11[%c0_110, %c0_111] : memref<64x32xf32, #tpu.memory_space<vmem>>, vector<64x32xf32>
    %cst_112 = arith.constant dense<0.000000e+00> : vector<8x32xf32>
    %259 = tpu.matmul %257, %258, %cst_112 {dimension_numbers = #tpu.dot_dimension_numbers<[1], [0], [0], [1], [0, 0, 1, 1], [], []>} : vector<8x64xf32>, vector<64x32xf32>, vector<8x32xf32> -> vector<8x32xf32>
    %260 = arith.addf %250, %259 : vector<8x32xf32>
    %261 = vector.broadcast %17 : vector<1x32xf32> to vector<8x32xf32>
    %262 = arith.addf %260, %261 : vector<8x32xf32>
    %263 = arith.addf %249, %262 : vector<8x32xf32>
    %cst_113 = arith.constant dense<0.000000e+00> : vector<8xf32>
    %264 = vector.multi_reduction <add>, %263, %cst_113 [1] : vector<8x32xf32> to vector<8xf32>
    %265 = vector.shape_cast %264 : vector<8xf32> to vector<8x1xf32>
    %cst_114 = arith.constant 3.200000e+01 : f32
    %266 = vector.broadcast %cst_114 : f32 to vector<8x1xf32>
    %267 = arith.divf %265, %266 : vector<8x1xf32>
    %268 = arith.mulf %263, %263 : vector<8x32xf32>
    %cst_115 = arith.constant dense<0.000000e+00> : vector<8xf32>
    %269 = vector.multi_reduction <add>, %268, %cst_115 [1] : vector<8x32xf32> to vector<8xf32>
    %270 = vector.shape_cast %269 : vector<8xf32> to vector<8x1xf32>
    %cst_116 = arith.constant 3.200000e+01 : f32
    %271 = vector.broadcast %cst_116 : f32 to vector<8x1xf32>
    %272 = arith.divf %270, %271 : vector<8x1xf32>
    %273 = arith.mulf %267, %267 : vector<8x1xf32>
    %274 = arith.subf %272, %273 : vector<8x1xf32>
    %275 = vector.broadcast %267 : vector<8x1xf32> to vector<8x32xf32>
    %276 = arith.subf %263, %275 : vector<8x32xf32>
    %cst_117 = arith.constant 9.99999974E-6 : f32
    %277 = vector.broadcast %cst_117 : f32 to vector<8x1xf32>
    %278 = arith.addf %274, %277 : vector<8x1xf32>
    %279 = math.rsqrt %278 : vector<8x1xf32>
    %280 = vector.broadcast %279 : vector<8x1xf32> to vector<8x32xf32>
    %281 = arith.mulf %276, %280 : vector<8x32xf32>
    %282 = vector.broadcast %15 : vector<1x32xf32> to vector<8x32xf32>
    %283 = arith.mulf %281, %282 : vector<8x32xf32>
    %284 = vector.broadcast %16 : vector<1x32xf32> to vector<8x32xf32>
    %285 = arith.addf %283, %284 : vector<8x32xf32>
    %c0_118 = arith.constant 0 : index
    %c0_119 = arith.constant 0 : index
    %c0_120 = arith.constant 0 : index
    %286 = vector.load %arg15[%c0_118, %c0_119, %c0_120] : memref<1x8x32xf32, #tpu.memory_space<vmem>>, vector<1x8x32xf32>
    %287 = vector.shape_cast %286 : vector<1x8x32xf32> to vector<8x32xf32>
    %288 = vector.shape_cast %285 : vector<8x32xf32> to vector<1x8x32xf32>
    tpu.vector_store %arg15[%c0_118, %c0_119, %c0_120], %288 {strides = array<i32>} : memref<1x8x32xf32, #tpu.memory_space<vmem>>, vector<1x8x32xf32>,
    return
  }
  func.func @transform_0(%arg0: i32) -> (i32, i32, i32) {
    %c0_i32 = arith.constant 0 : i32
    %c0_i32_0 = arith.constant 0 : i32
    %c0_i32_1 = arith.constant 0 : i32
    return %arg0, %c0_i32, %c0_i32_0 : i32, i32, i32
  }
  func.func @transform_1(%arg0: i32) -> (i32, i32, i32) {
    %c0_i32 = arith.constant 0 : i32
    %c0_i32_0 = arith.constant 0 : i32
    %c0_i32_1 = arith.constant 0 : i32
    return %arg0, %c0_i32, %c0_i32_0 : i32, i32, i32
  }
  func.func @transform_2(%arg0: i32) -> (i32, i32) {
    %c0_i32 = arith.constant 0 : i32
    %c0_i32_0 = arith.constant 0 : i32
    %c0_i32_1 = arith.constant 0 : i32
    return %c0_i32, %c0_i32_0 : i32, i32
  }
  func.func @transform_3(%arg0: i32) -> (i32, i32) {
    %c0_i32 = arith.constant 0 : i32
    %c0_i32_0 = arith.constant 0 : i32
    %c0_i32_1 = arith.constant 0 : i32
    return %c0_i32, %c0_i32_0 : i32, i32
  }
  func.func @transform_4(%arg0: i32) -> (i32, i32) {
    %c0_i32 = arith.constant 0 : i32
    %c0_i32_0 = arith.constant 0 : i32
    %c0_i32_1 = arith.constant 0 : i32
    return %c0_i32, %c0_i32_0 : i32, i32
  }
  func.func @transform_5(%arg0: i32) -> (i32, i32) {
    %c0_i32 = arith.constant 0 : i32
    %c0_i32_0 = arith.constant 0 : i32
    %c0_i32_1 = arith.constant 0 : i32
    return %c0_i32, %c0_i32_0 : i32, i32
  }
  func.func @transform_6(%arg0: i32) -> (i32, i32) {
    %c0_i32 = arith.constant 0 : i32
    %c0_i32_0 = arith.constant 0 : i32
    %c0_i32_1 = arith.constant 0 : i32
    return %c0_i32, %c0_i32_0 : i32, i32
  }
  func.func @transform_7(%arg0: i32) -> (i32, i32) {
    %c0_i32 = arith.constant 0 : i32
    %c0_i32_0 = arith.constant 0 : i32
    %c0_i32_1 = arith.constant 0 : i32
    return %c0_i32, %c0_i32_0 : i32, i32
  }
  func.func @transform_8(%arg0: i32) -> (i32, i32) {
    %c0_i32 = arith.constant 0 : i32
    %c0_i32_0 = arith.constant 0 : i32
    %c0_i32_1 = arith.constant 0 : i32
    return %c0_i32, %c0_i32_0 : i32, i32
  }
  func.func @transform_9(%arg0: i32) -> (i32, i32) {
    %c0_i32 = arith.constant 0 : i32
    %c0_i32_0 = arith.constant 0 : i32
    %c0_i32_1 = arith.constant 0 : i32
    return %c0_i32, %c0_i32_0 : i32, i32
  }
  func.func @transform_10(%arg0: i32) -> (i32, i32) {
    %c0_i32 = arith.constant 0 : i32
    %c0_i32_0 = arith.constant 0 : i32
    %c0_i32_1 = arith.constant 0 : i32
    return %c0_i32, %c0_i32_0 : i32, i32
  }
  func.func @transform_11(%arg0: i32) -> (i32, i32) {
    %c0_i32 = arith.constant 0 : i32
    %c0_i32_0 = arith.constant 0 : i32
    %c0_i32_1 = arith.constant 0 : i32
    return %c0_i32, %c0_i32_0 : i32, i32
  }
  func.func @transform_12(%arg0: i32) -> (i32, i32) {
    %c0_i32 = arith.constant 0 : i32
    %c0_i32_0 = arith.constant 0 : i32
    %c0_i32_1 = arith.constant 0 : i32
    return %c0_i32, %c0_i32_0 : i32, i32
  }
  func.func @transform_13(%arg0: i32) -> (i32, i32) {
    %c0_i32 = arith.constant 0 : i32
    %c0_i32_0 = arith.constant 0 : i32
    %c0_i32_1 = arith.constant 0 : i32
    return %c0_i32, %c0_i32_0 : i32, i32
  }
  func.func @transform_14(%arg0: i32) -> (i32, i32, i32) {
    %c0_i32 = arith.constant 0 : i32
    %c0_i32_0 = arith.constant 0 : i32
    %c0_i32_1 = arith.constant 0 : i32
    return %arg0, %c0_i32, %c0_i32_0 : i32, i32, i32
  }
}

</mosaic_0001>

<llo_original>
// kernel: tpu_custom_call.1
$region0: #{tpu_custom_call.1}
  #allocation0 [shape = 'u32[]', space=smem, size = 0x4, offset = 0x4, fixed_abs, tag = 'smem constant byte address 0x4 - core index']
  #allocation1 [shape = 'u32[144,128]{1,0:T(1,128)}', space=vmem, size = 0x12000, scoped, tag = 'internal scratch']
  #allocation2 [shape = 'f32[8,32]{1,0:T(8,128)}', space=vmem, size = 0x1000, scoped, tag = 'scratch operand']
  %s0 = inlined_call_operand.hbm [shape: f32[2,8,32], index: 0, kind: input, shape index: {}]
  %s1 = inlined_call_operand.vmem [shape: f32[2,1,8], index: 1, kind: input, shape index: {}]
  %s2 = inlined_call_operand.vmem [shape: f32[32,96], index: 2, kind: input, shape index: {}]
  %s3 = inlined_call_operand.vmem [shape: f32[1,96], index: 3, kind: input, shape index: {}]
  %s4 = inlined_call_operand.vmem [shape: f32[32,32], index: 4, kind: input, shape index: {}]
  %s5 = inlined_call_operand.vmem [shape: f32[1,32], index: 5, kind: input, shape index: {}]
  %s6 = inlined_call_operand.vmem [shape: f32[1,32], index: 6, kind: input, shape index: {}]
  %s7 = inlined_call_operand.hbm [shape: f32[1,32], index: 7, kind: input, shape index: {}]
  %s8 = inlined_call_operand.vmem [shape: f32[32,64], index: 8, kind: input, shape index: {}]
  %s9 = inlined_call_operand.hbm [shape: f32[1,64], index: 9, kind: input, shape index: {}]
  %s10 = inlined_call_operand.vmem [shape: f32[64,32], index: 10, kind: input, shape index: {}]
  %s11 = inlined_call_operand.vmem [shape: f32[1,32], index: 11, kind: input, shape index: {}]
  %s12 = inlined_call_operand.vmem [shape: f32[1,32], index: 12, kind: input, shape index: {}]
  %s13 = inlined_call_operand.vmem [shape: f32[1,32], index: 13, kind: input, shape index: {}]
  %s14 = inlined_call_operand.hbm [shape: f32[2,8,32], index: 14, kind: output, shape index: {}]
  %s15 = sld [smem:[#allocation0]]
  $region101: #{tpu_custom_call.1} parent=0
    _
  %s17 = ssub.s32 1, %s15
  %s18 = scalar_select 0, %s17, %s15
  $region1: #{tpu_custom_call.1} parent=0
    #allocation3 [shape = 'u8[8192]{0}', space=vmem, size = 0x2000, scoped, tag = 'input window, operand 0']
    #allocation4 [shape = 's32[2]{0}', space=sflag, size = 0x8, scoped, tag = 'scoped memory for tpu_custom_call.1']
    #allocation5 [shape = 's32[2]{0}', space=sflag, size = 0x8, scoped, tag = 'scoped memory for tpu_custom_call.1']
    #allocation6 [shape = 'u8[512]{0}', space=vmem, size = 0x400, scoped, tag = 'input window, operand 7, single buffered']
    #allocation7 [shape = 's32[1]{0}', space=sflag, size = 0x4, scoped, tag = 'scoped memory for tpu_custom_call.1']
    #allocation8 [shape = 'u8[512]{0}', space=vmem, size = 0x400, scoped, tag = 'input window, operand 9, single buffered']
    #allocation9 [shape = 'u8[8192]{0}', space=vmem, size = 0x2000, scoped, tag = 'output window, operand 0']
    %19 = vsyncpa [#allocation4], 0
    %s20 = scalar_lea.sflag [#allocation4], 1
    %21 = vsyncpa %s20, 0
    %22 = vsyncpa [#allocation7], 0
    %23 = vsyncpa [#allocation5], 0
    %s24 = scalar_lea.sflag [#allocation5], 1
    %25 = vsyncpa %s24, 0
    loop: start=0, step=1, limit=4
    $region2: #{tpu_custom_call.1} parent=1 // loop_pre_header
      _
    $region3: #{tpu_custom_call.1} parent=1 // loop_header
      %s27 = sphi 0, %s31
      %p28 = scmp.ge.s32.totalorder %s27, 4
      %s37 = sphi 0, %s39
      %s40 = sphi 0, %s37
      %s41 = sphi 0, %s40
      %s57 = sphi 0, %s41
      %s63 = sphi 0, %s65
      %s66 = sphi 0, %s63
      %s67 = sphi 0, %s66
      %s83 = sphi 0, %s67
      %s87 = sphi 0, %s87
      %s89 = sphi 0, %s87
      %s90 = sphi 0, %s89
      %s104 = sphi 0, %s90
      %s108 = sphi 0, %s108
      %s110 = sphi 0, %s108
      %s111 = sphi 0, %s110
      %s125 = sphi 0, %s111
      %s129 = sphi 0, %s129
      %s131 = sphi 0, %s129
      %s132 = sphi 0, %s131
      %s146 = sphi 0, %s132
      %s150 = sphi 0, %s150
      %s152 = sphi 0, %s150
      %s153 = sphi 0, %s152
      %s167 = sphi 0, %s153
      %s171 = sphi 0, %s171
      %s173 = sphi 0, %s171
      %s174 = sphi 0, %s173
      %s188 = sphi 0, %s174
      %s192 = sphi 0, %s192
      %s194 = sphi 0, %s192
      %s195 = sphi 0, %s194
      %s209 = sphi 0, %s195
      %s213 = sphi 0, %s213
      %s215 = sphi 0, %s213
      %s216 = sphi 0, %s215
      %s230 = sphi 0, %s216
      %s234 = sphi 0, %s234
      %s236 = sphi 0, %s234
      %s237 = sphi 0, %s236
      %s251 = sphi 0, %s237
      %s255 = sphi 0, %s255
      %s257 = sphi 0, %s255
      %s258 = sphi 0, %s257
      %s272 = sphi 0, %s258
      %s276 = sphi 0, %s276
      %s278 = sphi 0, %s276
      %s279 = sphi 0, %s278
      %s293 = sphi 0, %s279
      %s297 = sphi 0, %s297
      %s299 = sphi 0, %s297
      %s300 = sphi 0, %s299
      %s314 = sphi 0, %s300
      %s318 = sphi 0, %s318
      %s320 = sphi 0, %s318
      %s321 = sphi 0, %s320
      %s335 = sphi 0, %s321
      %s341 = sphi 0, %s343
      %s344 = sphi 0, %s341
      %s345 = sphi 0, %s344
      %s361 = sphi 0, %s345
    $region4: #{tpu_custom_call.1} parent=1 // loop_header_branch
      %30 = sbr.rel (%p28) target = $region8
    $region5: #{tpu_custom_call.1} parent=1 // loop_body
      %s32 = ssub.s32 %s27, 1
      %s33 = ssub.s32 %s27, 2
      %s34 = sadd.s32 %s27, 1
      %s35 = ssub.s32 %s27, %s34
      %p36 = scmp.eq.s32.totalorder %s35, 0
      %s38 = sadd.s32 %s37, 1
      %s39 = scalar_select %p36, %s37, %s38
      %p42 = pneg %p36
      %p43 = scmp.eq.s32.totalorder %s27, 1
      %p44 = por %p42, %p43
      %p45 = scmp.ne.s32.totalorder %s37, %s40
      %p46 = scmp.eq.s32.totalorder %s27, 0
      %p47 = por %p45, %p46
      %p48 = scmp.ne.s32.totalorder %s37, %s40
      %p49 = scmp.eq.s32.totalorder %s32, 1
      %p50 = por %p48, %p49
      %p51 = scmp.ne.s32.totalorder %s40, %s41
      %p52 = scmp.eq.s32.totalorder %s32, 0
      %p53 = por %p51, %p52
      %p54 = scmp.ne.s32.totalorder %s40, %s41
      %p55 = scmp.eq.s32.totalorder %s33, 1
      %p56 = por %p54, %p55
      %p58 = scmp.ne.s32.totalorder %s41, %s57
      %p59 = scmp.eq.s32.totalorder %s33, 0
      %p60 = por %p58, %p59
      %s61 = ssub.s32 %s27, %s34
      %p62 = scmp.eq.s32.totalorder %s61, 0
      %s64 = sadd.s32 %s63, 1
      %s65 = scalar_select %p62, %s63, %s64
      %p68 = pneg %p62
      %p69 = scmp.eq.s32.totalorder %s27, 1
      %p70 = por %p68, %p69
      %p71 = scmp.ne.s32.totalorder %s63, %s66
      %p72 = scmp.eq.s32.totalorder %s27, 0
      %p73 = por %p71, %p72
      %p74 = scmp.ne.s32.totalorder %s63, %s66
      %p75 = scmp.eq.s32.totalorder %s32, 1
      %p76 = por %p74, %p75
      %p77 = scmp.ne.s32.totalorder %s66, %s67
      %p78 = scmp.eq.s32.totalorder %s32, 0
      %p79 = por %p77, %p78
      %p80 = scmp.ne.s32.totalorder %s66, %s67
      %p81 = scmp.eq.s32.totalorder %s33, 1
      %p82 = por %p80, %p81
      %p84 = scmp.ne.s32.totalorder %s67, %s83
      %p85 = scmp.eq.s32.totalorder %s33, 0
      %p86 = por %p84, %p85
      %s88 = sadd.s32 %s87, 1
      %p91 = scmp.eq.s32.totalorder %s27, 1
      %p92 = scmp.ne.s32.totalorder %s87, %s89
      %p93 = scmp.eq.s32.totalorder %s27, 0
      %p94 = por %p92, %p93
      %p95 = scmp.ne.s32.totalorder %s87, %s89
      %p96 = scmp.eq.s32.totalorder %s32, 1
      %p97 = por %p95, %p96
      %p98 = scmp.ne.s32.totalorder %s89, %s90
      %p99 = scmp.eq.s32.totalorder %s32, 0
      %p100 = por %p98, %p99
      %p101 = scmp.ne.s32.totalorder %s89, %s90
      %p102 = scmp.eq.s32.totalorder %s33, 1
      %p103 = por %p101, %p102
      %p105 = scmp.ne.s32.totalorder %s90, %s104
      %p106 = scmp.eq.s32.totalorder %s33, 0
      %p107 = por %p105, %p106
      %s109 = sadd.s32 %s108, 1
      %p112 = scmp.eq.s32.totalorder %s27, 1
      %p113 = scmp.ne.s32.totalorder %s108, %s110
      %p114 = scmp.eq.s32.totalorder %s27, 0
      %p115 = por %p113, %p114
      %p116 = scmp.ne.s32.totalorder %s108, %s110
      %p117 = scmp.eq.s32.totalorder %s32, 1
      %p118 = por %p116, %p117
      %p119 = scmp.ne.s32.totalorder %s110, %s111
      %p120 = scmp.eq.s32.totalorder %s32, 0
      %p121 = por %p119, %p120
      %p122 = scmp.ne.s32.totalorder %s110, %s111
      %p123 = scmp.eq.s32.totalorder %s33, 1
      %p124 = por %p122, %p123
      %p126 = scmp.ne.s32.totalorder %s111, %s125
      %p127 = scmp.eq.s32.totalorder %s33, 0
      %p128 = por %p126, %p127
      %s130 = sadd.s32 %s129, 1
      %p133 = scmp.eq.s32.totalorder %s27, 1
      %p134 = scmp.ne.s32.totalorder %s129, %s131
      %p135 = scmp.eq.s32.totalorder %s27, 0
      %p136 = por %p134, %p135
      %p137 = scmp.ne.s32.totalorder %s129, %s131
      %p138 = scmp.eq.s32.totalorder %s32, 1
      %p139 = por %p137, %p138
      %p140 = scmp.ne.s32.totalorder %s131, %s132
      %p141 = scmp.eq.s32.totalorder %s32, 0
      %p142 = por %p140, %p141
      %p143 = scmp.ne.s32.totalorder %s131, %s132
      %p144 = scmp.eq.s32.totalorder %s33, 1
      %p145 = por %p143, %p144
      %p147 = scmp.ne.s32.totalorder %s132, %s146
      %p148 = scmp.eq.s32.totalorder %s33, 0
      %p149 = por %p147, %p148
      %s151 = sadd.s32 %s150, 1
      %p154 = scmp.eq.s32.totalorder %s27, 1
      %p155 = scmp.ne.s32.totalorder %s150, %s152
      %p156 = scmp.eq.s32.totalorder %s27, 0
      %p157 = por %p155, %p156
      %p158 = scmp.ne.s32.totalorder %s150, %s152
      %p159 = scmp.eq.s32.totalorder %s32, 1
      %p160 = por %p158, %p159
      %p161 = scmp.ne.s32.totalorder %s152, %s153
      %p162 = scmp.eq.s32.totalorder %s32, 0
      %p163 = por %p161, %p162
      %p164 = scmp.ne.s32.totalorder %s152, %s153
      %p165 = scmp.eq.s32.totalorder %s33, 1
      %p166 = por %p164, %p165
      %p168 = scmp.ne.s32.totalorder %s153, %s167
      %p169 = scmp.eq.s32.totalorder %s33, 0
      %p170 = por %p168, %p169
      %s172 = sadd.s32 %s171, 1
      %p175 = scmp.eq.s32.totalorder %s27, 1
      %p176 = scmp.ne.s32.totalorder %s171, %s173
      %p177 = scmp.eq.s32.totalorder %s27, 0
      %p178 = por %p176, %p177
      %p179 = scmp.ne.s32.totalorder %s171, %s173
      %p180 = scmp.eq.s32.totalorder %s32, 1
      %p181 = por %p179, %p180
      %p182 = scmp.ne.s32.totalorder %s173, %s174
      %p183 = scmp.eq.s32.totalorder %s32, 0
      %p184 = por %p182, %p183
      %p185 = scmp.ne.s32.totalorder %s173, %s174
      %p186 = scmp.eq.s32.totalorder %s33, 1
      %p187 = por %p185, %p186
      %p189 = scmp.ne.s32.totalorder %s174, %s188
      %p190 = scmp.eq.s32.totalorder %s33, 0
      %p191 = por %p189, %p190
      %s193 = sadd.s32 %s192, 1
      %p196 = scmp.eq.s32.totalorder %s27, 1
      %p197 = scmp.ne.s32.totalorder %s192, %s194
      %p198 = scmp.eq.s32.totalorder %s27, 0
      %p199 = por %p197, %p198
      %p200 = scmp.ne.s32.totalorder %s192, %s194
      %p201 = scmp.eq.s32.totalorder %s32, 1
      %p202 = por %p200, %p201
      %p203 = scmp.ne.s32.totalorder %s194, %s195
      %p204 = scmp.eq.s32.totalorder %s32, 0
      %p205 = por %p203, %p204
      %p206 = scmp.ne.s32.totalorder %s194, %s195
      %p207 = scmp.eq.s32.totalorder %s33, 1
      %p208 = por %p206, %p207
      %p210 = scmp.ne.s32.totalorder %s195, %s209
      %p211 = scmp.eq.s32.totalorder %s33, 0
      %p212 = por %p210, %p211
      %s214 = sadd.s32 %s213, 1
      %p217 = scmp.eq.s32.totalorder %s27, 1
      %p218 = scmp.ne.s32.totalorder %s213, %s215
      %p219 = scmp.eq.s32.totalorder %s27, 0
      %p220 = por %p218, %p219
      %p221 = scmp.ne.s32.totalorder %s213, %s215
      %p222 = scmp.eq.s32.totalorder %s32, 1
      %p223 = por %p221, %p222
      %p224 = scmp.ne.s32.totalorder %s215, %s216
      %p225 = scmp.eq.s32.totalorder %s32, 0
      %p226 = por %p224, %p225
      %p227 = scmp.ne.s32.totalorder %s215, %s216
      %p228 = scmp.eq.s32.totalorder %s33, 1
      %p229 = por %p227, %p228
      %p231 = scmp.ne.s32.totalorder %s216, %s230
      %p232 = scmp.eq.s32.totalorder %s33, 0
      %p233 = por %p231, %p232
      %s235 = sadd.s32 %s234, 1
      %p238 = scmp.eq.s32.totalorder %s27, 1
      %p239 = scmp.ne.s32.totalorder %s234, %s236
      %p240 = scmp.eq.s32.totalorder %s27, 0
      %p241 = por %p239, %p240
      %p242 = scmp.ne.s32.totalorder %s234, %s236
      %p243 = scmp.eq.s32.totalorder %s32, 1
      %p244 = por %p242, %p243
      %p245 = scmp.ne.s32.totalorder %s236, %s237
      %p246 = scmp.eq.s32.totalorder %s32, 0
      %p247 = por %p245, %p246
      %p248 = scmp.ne.s32.totalorder %s236, %s237
      %p249 = scmp.eq.s32.totalorder %s33, 1
      %p250 = por %p248, %p249
      %p252 = scmp.ne.s32.totalorder %s237, %s251
      %p253 = scmp.eq.s32.totalorder %s33, 0
      %p254 = por %p252, %p253
      %s256 = sadd.s32 %s255, 1
      %p259 = scmp.eq.s32.totalorder %s27, 1
      %p260 = scmp.ne.s32.totalorder %s255, %s257
      %p261 = scmp.eq.s32.totalorder %s27, 0
      %p262 = por %p260, %p261
      %p263 = scmp.ne.s32.totalorder %s255, %s257
      %p264 = scmp.eq.s32.totalorder %s32, 1
      %p265 = por %p263, %p264
      %p266 = scmp.ne.s32.totalorder %s257, %s258
      %p267 = scmp.eq.s32.totalorder %s32, 0
      %p268 = por %p266, %p267
      %p269 = scmp.ne.s32.totalorder %s257, %s258
      %p270 = scmp.eq.s32.totalorder %s33, 1
      %p271 = por %p269, %p270
      %p273 = scmp.ne.s32.totalorder %s258, %s272
      %p274 = scmp.eq.s32.totalorder %s33, 0
      %p275 = por %p273, %p274
      %s277 = sadd.s32 %s276, 1
      %p280 = scmp.eq.s32.totalorder %s27, 1
      %p281 = scmp.ne.s32.totalorder %s276, %s278
      %p282 = scmp.eq.s32.totalorder %s27, 0
      %p283 = por %p281, %p282
      %p284 = scmp.ne.s32.totalorder %s276, %s278
      %p285 = scmp.eq.s32.totalorder %s32, 1
      %p286 = por %p284, %p285
      %p287 = scmp.ne.s32.totalorder %s278, %s279
      %p288 = scmp.eq.s32.totalorder %s32, 0
      %p289 = por %p287, %p288
      %p290 = scmp.ne.s32.totalorder %s278, %s279
      %p291 = scmp.eq.s32.totalorder %s33, 1
      %p292 = por %p290, %p291
      %p294 = scmp.ne.s32.totalorder %s279, %s293
      %p295 = scmp.eq.s32.totalorder %s33, 0
      %p296 = por %p294, %p295
      %s298 = sadd.s32 %s297, 1
      %p301 = scmp.eq.s32.totalorder %s27, 1
      %p302 = scmp.ne.s32.totalorder %s297, %s299
      %p303 = scmp.eq.s32.totalorder %s27, 0
      %p304 = por %p302, %p303
      %p305 = scmp.ne.s32.totalorder %s297, %s299
      %p306 = scmp.eq.s32.totalorder %s32, 1
      %p307 = por %p305, %p306
      %p308 = scmp.ne.s32.totalorder %s299, %s300
      %p309 = scmp.eq.s32.totalorder %s32, 0
      %p310 = por %p308, %p309
      %p311 = scmp.ne.s32.totalorder %s299, %s300
      %p312 = scmp.eq.s32.totalorder %s33, 1
      %p313 = por %p311, %p312
      %p315 = scmp.ne.s32.totalorder %s300, %s314
      %p316 = scmp.eq.s32.totalorder %s33, 0
      %p317 = por %p315, %p316
      %s319 = sadd.s32 %s318, 1
      %p322 = scmp.eq.s32.totalorder %s27, 1
      %p323 = scmp.ne.s32.totalorder %s318, %s320
      %p324 = scmp.eq.s32.totalorder %s27, 0
      %p325 = por %p323, %p324
      %p326 = scmp.ne.s32.totalorder %s318, %s320
      %p327 = scmp.eq.s32.totalorder %s32, 1
      %p328 = por %p326, %p327
      %p329 = scmp.ne.s32.totalorder %s320, %s321
      %p330 = scmp.eq.s32.totalorder %s32, 0
      %p331 = por %p329, %p330
      %p332 = scmp.ne.s32.totalorder %s320, %s321
      %p333 = scmp.eq.s32.totalorder %s33, 1
      %p334 = por %p332, %p333
      %p336 = scmp.ne.s32.totalorder %s321, %s335
      %p337 = scmp.eq.s32.totalorder %s33, 0
      %p338 = por %p336, %p337
      %s339 = ssub.s32 %s27, %s34
      %p340 = scmp.eq.s32.totalorder %s339, 0
      %s342 = sadd.s32 %s341, 1
      %s343 = scalar_select %p340, %s341, %s342
      %p346 = pneg %p340
      %p347 = scmp.eq.s32.totalorder %s27, 1
      %p348 = por %p346, %p347
      %p349 = scmp.ne.s32.totalorder %s341, %s344
      %p350 = scmp.eq.s32.totalorder %s27, 0
      %p351 = por %p349, %p350
      %p352 = scmp.ne.s32.totalorder %s341, %s344
      %p353 = scmp.eq.s32.totalorder %s32, 1
      %p354 = por %p352, %p353
      %p355 = scmp.ne.s32.totalorder %s344, %s345
      %p356 = scmp.eq.s32.totalorder %s32, 0
      %p357 = por %p355, %p356
      %p358 = scmp.ne.s32.totalorder %s344, %s345
      %p359 = scmp.eq.s32.totalorder %s33, 1
      %p360 = por %p358, %p359
      %p362 = scmp.ne.s32.totalorder %s345, %s361
      %p363 = scmp.eq.s32.totalorder %s33, 0
      %p364 = por %p362, %p363
      %p365 = scmp.le.s32.totalorder 1, %s27
      %p366 = scmp.lt.s32.totalorder %s27, 3
      %p367 = pnand %p365, %p366
      %p368 = pneg %p367
      // Predicated region
      $region9: #{tpu_custom_call.1} parent=5 // pred_check
        _
      $region10: #{tpu_custom_call.1} parent=5 // pred_check_branch
        %370 = sbr.rel (%p367) target = $region12
      $region11: #{tpu_custom_call.1} parent=5 // pred_region
        %s371 = ssub.s32 %s27, 1
        // Predicated region
        $region13: #{tpu_custom_call.1} parent=11 // pred_check
          %p372 = pneg %p100
        $region14: #{tpu_custom_call.1} parent=11 // pred_check_branch
          %374 = sbr.rel (%p372) target = $region16
        $region15: #{tpu_custom_call.1} parent=11 // pred_region
          _
        $region16: #{tpu_custom_call.1} parent=11 // pred_fallthru
          _
        // Predicated region
        $region17: #{tpu_custom_call.1} parent=11 // pred_check
          %p375 = pneg %p121
        $region18: #{tpu_custom_call.1} parent=11 // pred_check_branch
          %377 = sbr.rel (%p375) target = $region20
        $region19: #{tpu_custom_call.1} parent=11 // pred_region
          _
        $region20: #{tpu_custom_call.1} parent=11 // pred_fallthru
          _
        // Predicated region
        $region21: #{tpu_custom_call.1} parent=11 // pred_check
          %p378 = pneg %p142
        $region22: #{tpu_custom_call.1} parent=11 // pred_check_branch
          %380 = sbr.rel (%p378) target = $region24
        $region23: #{tpu_custom_call.1} parent=11 // pred_region
          _
        $region24: #{tpu_custom_call.1} parent=11 // pred_fallthru
          _
        // Predicated region
        $region25: #{tpu_custom_call.1} parent=11 // pred_check
          %p381 = pneg %p163
        $region26: #{tpu_custom_call.1} parent=11 // pred_check_branch
          %383 = sbr.rel (%p381) target = $region28
        $region27: #{tpu_custom_call.1} parent=11 // pred_region
          _
        $region28: #{tpu_custom_call.1} parent=11 // pred_fallthru
          _
        // Predicated region
        $region29: #{tpu_custom_call.1} parent=11 // pred_check
          %p384 = pneg %p184
        $region30: #{tpu_custom_call.1} parent=11 // pred_check_branch
          %386 = sbr.rel (%p384) target = $region32
        $region31: #{tpu_custom_call.1} parent=11 // pred_region
          _
        $region32: #{tpu_custom_call.1} parent=11 // pred_fallthru
          _
        // Predicated region
        $region33: #{tpu_custom_call.1} parent=11 // pred_check
          %p387 = pneg %p205
        $region34: #{tpu_custom_call.1} parent=11 // pred_check_branch
          %389 = sbr.rel (%p387) target = $region36
        $region35: #{tpu_custom_call.1} parent=11 // pred_region
          %s391 = ssub.s32 16, 16
          %392 = vsyncadd [#allocation7], %s391
          %s394 = sshll.u32 [#allocation6], 4
          %s395 = int_to_ptr.vmem [resolvable:$true] %s394
          %397 = dma.hbm_to_vmem [thread:$0]  %s7, 16, %s395, [#allocation7]
        $region36: #{tpu_custom_call.1} parent=11 // pred_fallthru
          _
        // Predicated region
        $region37: #{tpu_custom_call.1} parent=11 // pred_check
          %p398 = pneg %p226
        $region38: #{tpu_custom_call.1} parent=11 // pred_check_branch
          %400 = sbr.rel (%p398) target = $region40
        $region39: #{tpu_custom_call.1} parent=11 // pred_region
          _
        $region40: #{tpu_custom_call.1} parent=11 // pred_fallthru
          _
        // Predicated region
        $region41: #{tpu_custom_call.1} parent=11 // pred_check
          %p401 = pneg %p247
        $region42: #{tpu_custom_call.1} parent=11 // pred_check_branch
          %403 = sbr.rel (%p401) target = $region44
        $region43: #{tpu_custom_call.1} parent=11 // pred_region
          %s405 = ssub.s32 16, 16
          %406 = vsyncadd [#allocation7], %s405
          %s408 = sshll.u32 [#allocation8], 4
          %s409 = int_to_ptr.vmem [resolvable:$true] %s408
          %411 = dma.hbm_to_vmem [thread:$0]  %s9, 16, %s409, [#allocation7]
        $region44: #{tpu_custom_call.1} parent=11 // pred_fallthru
          _
        // Predicated region
        $region45: #{tpu_custom_call.1} parent=11 // pred_check
          %p412 = pneg %p268
        $region46: #{tpu_custom_call.1} parent=11 // pred_check_branch
          %414 = sbr.rel (%p412) target = $region48
        $region47: #{tpu_custom_call.1} parent=11 // pred_region
          _
        $region48: #{tpu_custom_call.1} parent=11 // pred_fallthru
          _
        // Predicated region
        $region49: #{tpu_custom_call.1} parent=11 // pred_check
          %p415 = pneg %p289
        $region50: #{tpu_custom_call.1} parent=11 // pred_check_branch
          %417 = sbr.rel (%p415) target = $region52
        $region51: #{tpu_custom_call.1} parent=11 // pred_region
          _
        $region52: #{tpu_custom_call.1} parent=11 // pred_fallthru
          _
        // Predicated region
        $region53: #{tpu_custom_call.1} parent=11 // pred_check
          %p418 = pneg %p310
        $region54: #{tpu_custom_call.1} parent=11 // pred_check_branch
          %420 = sbr.rel (%p418) target = $region56
        $region55: #{tpu_custom_call.1} parent=11 // pred_region
          _
        $region56: #{tpu_custom_call.1} parent=11 // pred_fallthru
          _
        // Predicated region
        $region57: #{tpu_custom_call.1} parent=11 // pred_check
          %p421 = pneg %p331
        $region58: #{tpu_custom_call.1} parent=11 // pred_check_branch
          %423 = sbr.rel (%p421) target = $region60
        $region59: #{tpu_custom_call.1} parent=11 // pred_region
          _
        $region60: #{tpu_custom_call.1} parent=11 // pred_fallthru
          _
      $region12: #{tpu_custom_call.1} parent=5 // pred_fallthru
        _
      %p424 = scmp.lt.s32.totalorder %s27, 2
      // Predicated region
      $region61: #{tpu_custom_call.1} parent=5 // pred_check
        %p425 = pneg %p424
      $region62: #{tpu_custom_call.1} parent=5 // pred_check_branch
        %427 = sbr.rel (%p425) target = $region64
      $region63: #{tpu_custom_call.1} parent=5 // pred_region
        // Predicated region
        $region65: #{tpu_custom_call.1} parent=63 // pred_check
          %p428 = pneg %p47
        $region66: #{tpu_custom_call.1} parent=63 // pred_check_branch
          %430 = sbr.rel (%p428) target = $region68
        $region67: #{tpu_custom_call.1} parent=63 // pred_region
          %s431 = sand.u32 %s37, 1
          %s432 = scalar_lea.sflag [#allocation4], %s431
          %s433 = sand.u32 %s37, 1
          %s434 = smul.addr %s433, 8
          %s435 = scalar_lea.vmem [#allocation3], %s434
          %s437 = ssub.s32 128, 128
          %438 = vsyncadd %s432, %s437
          %s439 = smul.addr %s27, 128
          %s440 = scalar_lea.hbm %s0, %s439
          %s442 = sshll.u32 %s435, 4
          %s443 = int_to_ptr.vmem [resolvable:$true] %s442
          %445 = dma.hbm_to_vmem [thread:$0]  %s440, 128, %s443, %s432
        $region68: #{tpu_custom_call.1} parent=63 // pred_fallthru
          _
        // Predicated region
        $region69: #{tpu_custom_call.1} parent=63 // pred_check
          %p446 = pneg %p73
        $region70: #{tpu_custom_call.1} parent=63 // pred_check_branch
          %448 = sbr.rel (%p446) target = $region72
        $region71: #{tpu_custom_call.1} parent=63 // pred_region
          %p449 = scmp.lt.s32.totalorder %s27, 1
          %s450 = scalar_select %p449, %s27, 1
          %s451 = scalar_lea.vmem %s1, %s450
        $region72: #{tpu_custom_call.1} parent=63 // pred_fallthru
          _
      $region64: #{tpu_custom_call.1} parent=5 // pred_fallthru
        _
      %p452 = scmp.le.s32.totalorder 1, %s27
      %p453 = scmp.lt.s32.totalorder %s27, 3
      %p454 = pnand %p452, %p453
      %p455 = pneg %p454
      // Predicated region
      $region73: #{tpu_custom_call.1} parent=5 // pred_check
        _
      $region74: #{tpu_custom_call.1} parent=5 // pred_check_branch
        %457 = sbr.rel (%p454) target = $region76
      $region75: #{tpu_custom_call.1} parent=5 // pred_region
        %s458 = ssub.s32 %s27, 1
        %s459 = sand.u32 %s40, 1
        %s460 = scalar_lea.sflag [#allocation4], %s459
        %s461 = sand.u32 %s40, 1
        %s462 = smul.addr %s461, 8
        %s463 = scalar_lea.vmem [#allocation3], %s462
        // Predicated region
        $region77: #{tpu_custom_call.1} parent=75 // pred_check
          %p464 = pneg %p53
        $region78: #{tpu_custom_call.1} parent=75 // pred_check_branch
          %466 = sbr.rel (%p464) target = $region80
        $region79: #{tpu_custom_call.1} parent=75 // pred_region
          %467 = dma.done %s460, 128
        $region80: #{tpu_custom_call.1} parent=75 // pred_fallthru
          _
        // Predicated region
        $region81: #{tpu_custom_call.1} parent=75 // pred_check
          %p468 = pneg %p205
        $region82: #{tpu_custom_call.1} parent=75 // pred_check_branch
          %470 = sbr.rel (%p468) target = $region84
        $region83: #{tpu_custom_call.1} parent=75 // pred_region
          %471 = dma.done [#allocation7], 16
        $region84: #{tpu_custom_call.1} parent=75 // pred_fallthru
          _
        // Predicated region
        $region85: #{tpu_custom_call.1} parent=75 // pred_check
          %p472 = pneg %p247
        $region86: #{tpu_custom_call.1} parent=75 // pred_check_branch
          %474 = sbr.rel (%p472) target = $region88
        $region87: #{tpu_custom_call.1} parent=75 // pred_region
          %475 = dma.done [#allocation7], 16
        $region88: #{tpu_custom_call.1} parent=75 // pred_fallthru
          _
        %s476 = sand.u32 %s40, 1
        %s477 = scalar_lea.sflag [#allocation4], %s476
        %s478 = sand.u32 %s40, 1
        %s479 = smul.addr %s478, 8
        %s480 = scalar_lea.vmem [#allocation3], %s479
        %p481 = pneg %p53
        %p482 = pneg %p50
        %p483 = scmp.lt.s32.totalorder %s32, 1
        %s484 = scalar_select %p483, %s32, 1
        %s485 = scalar_lea.vmem %s1, %s484
        %p486 = pneg %p79
        %p487 = pneg %p76
        %p488 = pneg %p100
        %p489 = pneg %p97
        %p490 = pneg %p121
        %p491 = pneg %p118
        %p492 = pneg %p142
        %p493 = pneg %p139
        %p494 = pneg %p163
        %p495 = pneg %p160
        %p496 = pneg %p184
        %p497 = pneg %p181
        %p498 = pneg %p205
        %p499 = pneg %p202
        %p500 = pneg %p226
        %p501 = pneg %p223
        %p502 = pneg %p247
        %p503 = pneg %p244
        %p504 = pneg %p268
        %p505 = pneg %p265
        %p506 = pneg %p289
        %p507 = pneg %p286
        %p508 = pneg %p310
        %p509 = pneg %p307
        %p510 = pneg %p331
        %p511 = pneg %p328
        %p512 = pneg %p357
        %p513 = pneg %p354
        %s514 = sand.u32 %s344, 1
        %s515 = scalar_lea.sflag [#allocation5], %s514
        %s516 = sand.u32 %s344, 1
        %s517 = smul.addr %s516, 8
        %s518 = scalar_lea.vmem [#allocation9], %s517
        %p519 = scmp.lt.s32.totalorder %s32, 1
        %s520 = scalar_select %p519, %s32, 1
        %s521 = scalar_lea.vmem %s1, %s520
        %v522 = vld [vmem:[%s521] sm:$0x1]
        %vm523 = vcmp.gt.f32.partialorder %v522, 0.0
        %v524 = vsel %vm523, 0.0, -1e+09
        %v526 = vlaneseq
        %v527 = vshrl.u32 %v526, 7
        %v528 = vsub.s32 0, %v527
        %v529 = vrot.slane %v524, %v528
        %v531 = vld [vmem:[%s2] sm:$0xff]
        %v532 = vld [vmem:[%s2 + $0x8] sm:$0xff]
        %v533 = vld [vmem:[%s2 + $0x10] sm:$0xff]
        %v534 = vld [vmem:[%s2 + $0x18] sm:$0xff]
        %v535 = vld [vmem:[%s4] sm:$0xff]
        %v536 = vld [vmem:[%s4 + $0x8] sm:$0xff]
        %v537 = vld [vmem:[%s4 + $0x10] sm:$0xff]
        %v538 = vld [vmem:[%s4 + $0x18] sm:$0xff]
        %v539 = vld [vmem:[%s3] sm:$0x1]
        %v540 = vld [vmem:[%s5] sm:$0x1]
        %v541 = vld [vmem:[%s6] sm:$0x1]
        %v542 = vld [vmem:[#allocation6] sm:$0x1]
        %v543 = vld [vmem:[%s12] sm:$0x1]
        %v544 = vld [vmem:[%s13] sm:$0x1]
        %v545 = vld [vmem:[%s11] sm:$0x1]
        %v546 = vld [vmem:[%s463] sm:$0xff]
        %v548 = vlaneseq
        %v549 = vshrl.u32 %v548, 7
        %v550 = vsub.s32 0, %v549
        %v551 = vrot.slane %v539, %v550
        %vm553 = vcmask 261120
        %v555 = vsel %vm553, %v546, 0
        %557 = vmatprep.subr.mxu0 0.0
        %558 = vmatpush1.msra.mxu0 %v531
        %559 = vmatprep.subr.mxu0 0.0
        %560 = vmatpush1.msra.mxu0 %v532
        %561 = vmatprep.subr.mxu0 0.0
        %562 = vmatpush1.msra.mxu0 %v533
        %563 = vmatprep.subr.mxu0 0.0
        %564 = vmatpush1.msra.mxu0 %v534
        %565 = vmatprep.subr.mxu0 0.0
        %566 = vmatpush1.msra.mxu0 0.0
        %567 = vmatprep.subr.mxu0 0.0
        %568 = vmatpush1.msra.mxu0 0.0
        %569 = vmatprep.subr.mxu0 0.0
        %570 = vmatpush1.msra.mxu0 0.0
        %571 = vmatprep.subr.mxu0 0.0
        %572 = vmatpush1.msra.mxu0 0.0
        %573 = vmatprep.subr.mxu0 0.0
        %574 = vmatpush1.msra.mxu0 0.0
        %575 = vmatprep.subr.mxu0 0.0
        %576 = vmatpush1.msra.mxu0 0.0
        %577 = vmatprep.subr.mxu0 0.0
        %578 = vmatpush1.msra.mxu0 0.0
        %579 = vmatprep.subr.mxu0 0.0
        %580 = vmatpush1.msra.mxu0 0.0
        %581 = vmatprep.subr.mxu0 0.0
        %582 = vmatpush1.msra.mxu0 0.0
        %583 = vmatprep.subr.mxu0 0.0
        %584 = vmatpush1.msra.mxu0 0.0
        %585 = vmatprep.subr.mxu0 0.0
        %586 = vmatpush1.msra.mxu0 0.0
        %587 = vmatprep.subr.mxu0 0.0
        %588 = vmatpush1.msra.mxu0 0.0
        %589 = vmatprep.subr.mxu0 0.0
        %590 = vmatpush1.msra.mxu0 0.0
        %591 = vmatprep.subr.mxu0 0.0
        %592 = vmatpush1.msra.mxu0 0.0
        %593 = vmatprep.subr.mxu0 0.0
        %594 = vmatpush1.msra.mxu0 0.0
        %595 = vmatprep.subr.mxu0 0.0
        %596 = vmatpush1.msra.mxu0 0.0
        %597 = vmatprep.subr.mxu0 0.0
        %598 = vmatpush1.msra.mxu0 0.0
        %599 = vmatprep.subr.mxu0 0.0
        %600 = vmatpush1.msra.mxu0 0.0
        %601 = vmatprep.subr.mxu0 0.0
        %602 = vmatpush1.msra.mxu0 0.0
        %603 = vmatprep.subr.mxu0 0.0
        %604 = vmatpush1.msra.mxu0 0.0
        %605 = vmatprep.subr.mxu0 0.0
        %606 = vmatpush1.msra.mxu0 0.0
        %607 = vmatprep.subr.mxu0 0.0
        %608 = vmatpush1.msra.mxu0 0.0
        %609 = vmatprep.subr.mxu0 0.0
        %610 = vmatpush1.msra.mxu0 0.0
        %611 = vmatprep.subr.mxu0 0.0
        %612 = vmatpush1.msra.mxu0 0.0
        %613 = vmatprep.subr.mxu0 0.0
        %614 = vmatpush1.msra.mxu0 0.0
        %615 = vmatprep.subr.mxu0 0.0
        %616 = vmatpush1.msra.mxu0 0.0
        %617 = vmatprep.subr.mxu0 0.0
        %618 = vmatpush1.msra.mxu0 0.0
        %619 = vmatprep.subr.mxu0 0.0
        %620 = vmatpush1.msra.mxu0 0.0
        %621 = vmatprep.mubr.f32.mxu0 0.0
        %622 = vmatmul.mubr.f32.gmra.mrb[0].mxu0 %v555
        %v623 = vpop.f32.mrb[0].mxu0
        %v624 = vadd.f32 %v551, %v623
        %v625 = vpop.f32.mrb[0].mxu0
        %626 = vdwg.mxu0
        %628 = vrot.lane.b32.xlu0 %v624, 96
        %v629 = vpop.permute.xlu0 %628
        %vm630 = vcmask 64512
        %v631 = vsel %vm630, %v624, 0
        %v633 = vsel %vm630, %v629, 0
        %635 = vmatprep.subr.mxu0 0.0
        %636 = vmatpush1.xpose.msra.mxu0 %v633
        %637 = vmatprep.subr.mxu0 0.0
        %638 = vmatpush1.xpose.msra.mxu0 0.0
        %639 = vmatprep.subr.mxu0 0.0
        %640 = vmatpush1.xpose.msra.mxu0 0.0
        %641 = vmatprep.subr.mxu0 0.0
        %642 = vmatpush1.xpose.msra.mxu0 0.0
        %643 = vmatprep.subr.mxu0 0.0
        %644 = vmatpush1.xpose.msra.mxu0 0.0
        %645 = vmatprep.subr.mxu0 0.0
        %646 = vmatpush1.xpose.msra.mxu0 0.0
        %647 = vmatprep.subr.mxu0 0.0
        %648 = vmatpush1.xpose.msra.mxu0 0.0
        %649 = vmatprep.subr.mxu0 0.0
        %650 = vmatpush1.xpose.msra.mxu0 0.0
        %651 = vmatprep.subr.mxu0 0.0
        %652 = vmatpush1.xpose.msra.mxu0 0.0
        %653 = vmatprep.subr.mxu0 0.0
        %654 = vmatpush1.xpose.msra.mxu0 0.0
        %655 = vmatprep.subr.mxu0 0.0
        %656 = vmatpush1.xpose.msra.mxu0 0.0
        %657 = vmatprep.subr.mxu0 0.0
        %658 = vmatpush1.xpose.msra.mxu0 0.0
        %659 = vmatprep.subr.mxu0 0.0
        %660 = vmatpush1.xpose.msra.mxu0 0.0
        %661 = vmatprep.subr.mxu0 0.0
        %662 = vmatpush1.xpose.msra.mxu0 0.0
        %663 = vmatprep.subr.mxu0 0.0
        %664 = vmatpush1.xpose.msra.mxu0 0.0
        %665 = vmatprep.subr.mxu0 0.0
        %666 = vmatpush1.xpose.msra.mxu0 0.0
        %667 = vmatprep.subr.mxu0 0.0
        %668 = vmatpush1.xpose.msra.mxu0 0.0
        %669 = vmatprep.subr.mxu0 0.0
        %670 = vmatpush1.xpose.msra.mxu0 0.0
        %671 = vmatprep.subr.mxu0 0.0
        %672 = vmatpush1.xpose.msra.mxu0 0.0
        %673 = vmatprep.subr.mxu0 0.0
        %674 = vmatpush1.xpose.msra.mxu0 0.0
        %675 = vmatprep.subr.mxu0 0.0
        %676 = vmatpush1.xpose.msra.mxu0 0.0
        %677 = vmatprep.subr.mxu0 0.0
        %678 = vmatpush1.xpose.msra.mxu0 0.0
        %679 = vmatprep.subr.mxu0 0.0
        %680 = vmatpush1.xpose.msra.mxu0 0.0
        %681 = vmatprep.subr.mxu0 0.0
        %682 = vmatpush1.xpose.msra.mxu0 0.0
        %683 = vmatprep.subr.mxu0 0.0
        %684 = vmatpush1.xpose.msra.mxu0 0.0
        %685 = vmatprep.subr.mxu0 0.0
        %686 = vmatpush1.xpose.msra.mxu0 0.0
        %687 = vmatprep.subr.mxu0 0.0
        %688 = vmatpush1.xpose.msra.mxu0 0.0
        %689 = vmatprep.subr.mxu0 0.0
        %690 = vmatpush1.xpose.msra.mxu0 0.0
        %691 = vmatprep.subr.mxu0 0.0
        %692 = vmatpush1.xpose.msra.mxu0 0.0
        %693 = vmatprep.subr.mxu0 0.0
        %694 = vmatpush1.xpose.msra.mxu0 0.0
        %695 = vmatprep.subr.mxu0 0.0
        %696 = vmatpush1.xpose.msra.mxu0 0.0
        %697 = vmatprep.subr.mxu0 0.0
        %698 = vmatpush1.xpose.msra.mxu0 0.0
        %699 = vmatprep.mubr.f32.mxu0 0.0
        %700 = vmatmul.mubr.f32.gmra.mrb[0].mxu0 %v631
        %v701 = vpop.f32.mrb[0].mxu0
        %v702 = vadd.f32 %v529, %v701
        %v703 = vpop.f32.mrb[0].mxu0
        %704 = vdwg.mxu0
        %v705 = vsel %vm630, %v702, -inf
        %706 = vmax.xlane.f32.xlu0 %v705
        %v707 = vpop.xlane.xlu0 %706
        %v708 = vsub.f32 %v702, %v707
        %v709 = vmul.f32 %v708, 1.442695
        %v710 = vpow.pop %v709
        %v711 = vsel %vm630, %v710, 0.0
        %712 = vadd.xlane.f32.xlu0 %v711
        %v713 = vpop.xlane.xlu0 %712
        %714 = vrot.lane.b32.xlu0 %v624, 64
        %v715 = vpop.permute.xlu0 %714
        %v718 = vsel %vm630, %v710, 0
        %720 = vmatprep.subr.mxu0 0.0
        %721 = vmatpush1.msra.mxu0 %v715
        %722 = vmatprep.subr.mxu0 0.0
        %723 = vmatpush1.msra.mxu0 0.0
        %724 = vmatprep.subr.mxu0 0.0
        %725 = vmatpush1.msra.mxu0 0.0
        %726 = vmatprep.subr.mxu0 0.0
        %727 = vmatpush1.msra.mxu0 0.0
        %728 = vmatprep.subr.mxu0 0.0
        %729 = vmatpush1.msra.mxu0 0.0
        %730 = vmatprep.subr.mxu0 0.0
        %731 = vmatpush1.msra.mxu0 0.0
        %732 = vmatprep.subr.mxu0 0.0
        %733 = vmatpush1.msra.mxu0 0.0
        %734 = vmatprep.subr.mxu0 0.0
        %735 = vmatpush1.msra.mxu0 0.0
        %736 = vmatprep.subr.mxu0 0.0
        %737 = vmatpush1.msra.mxu0 0.0
        %738 = vmatprep.subr.mxu0 0.0
        %739 = vmatpush1.msra.mxu0 0.0
        %740 = vmatprep.subr.mxu0 0.0
        %741 = vmatpush1.msra.mxu0 0.0
        %742 = vmatprep.subr.mxu0 0.0
        %743 = vmatpush1.msra.mxu0 0.0
        %744 = vmatprep.subr.mxu0 0.0
        %745 = vmatpush1.msra.mxu0 0.0
        %746 = vmatprep.subr.mxu0 0.0
        %747 = vmatpush1.msra.mxu0 0.0
        %748 = vmatprep.subr.mxu0 0.0
        %749 = vmatpush1.msra.mxu0 0.0
        %750 = vmatprep.subr.mxu0 0.0
        %751 = vmatpush1.msra.mxu0 0.0
        %752 = vmatprep.subr.mxu0 0.0
        %753 = vmatpush1.msra.mxu0 0.0
        %754 = vmatprep.subr.mxu0 0.0
        %755 = vmatpush1.msra.mxu0 0.0
        %756 = vmatprep.subr.mxu0 0.0
        %757 = vmatpush1.msra.mxu0 0.0
        %758 = vmatprep.subr.mxu0 0.0
        %759 = vmatpush1.msra.mxu0 0.0
        %760 = vmatprep.subr.mxu0 0.0
        %761 = vmatpush1.msra.mxu0 0.0
        %762 = vmatprep.subr.mxu0 0.0
        %763 = vmatpush1.msra.mxu0 0.0
        %764 = vmatprep.subr.mxu0 0.0
        %765 = vmatpush1.msra.mxu0 0.0
        %766 = vmatprep.subr.mxu0 0.0
        %767 = vmatpush1.msra.mxu0 0.0
        %768 = vmatprep.subr.mxu0 0.0
        %769 = vmatpush1.msra.mxu0 0.0
        %770 = vmatprep.subr.mxu0 0.0
        %771 = vmatpush1.msra.mxu0 0.0
        %772 = vmatprep.subr.mxu0 0.0
        %773 = vmatpush1.msra.mxu0 0.0
        %774 = vmatprep.subr.mxu0 0.0
        %775 = vmatpush1.msra.mxu0 0.0
        %776 = vmatprep.subr.mxu0 0.0
        %777 = vmatpush1.msra.mxu0 0.0
        %778 = vmatprep.subr.mxu0 0.0
        %779 = vmatpush1.msra.mxu0 0.0
        %780 = vmatprep.subr.mxu0 0.0
        %781 = vmatpush1.msra.mxu0 0.0
        %782 = vmatprep.subr.mxu0 0.0
        %783 = vmatpush1.msra.mxu0 0.0
        %784 = vmatprep.mubr.f32.mxu0 0.0
        %785 = vmatmul.mubr.f32.gmra.mrb[0].mxu0 %v718
        %v786 = vpop.f32.mrb[0].mxu0
        %v787 = vadd.f32 0.0, %v786
        %v788 = vpop.f32.mrb[0].mxu0
        %789 = vdwg.mxu0
        %v790 = vrcp.pop %v713
        %v791 = vmul.f32 %v787, %v790
        %792 = vst.msk [vmem:[#allocation2] sm:$0xff] %vm630, %v791
        %793 = vrot.lane.b32.xlu0 %v624, 120
        %v794 = vpop.permute.xlu0 %793
        %795 = vrot.lane.b32.xlu0 %v624, 88
        %v796 = vpop.permute.xlu0 %795
        %v797 = vsel %vm630, %v794, 0
        %v799 = vsel %vm630, %v796, 0
        %801 = vmatprep.subr.mxu0 0.0
        %802 = vmatpush1.xpose.msra.mxu0 %v799
        %803 = vmatprep.subr.mxu0 0.0
        %804 = vmatpush1.xpose.msra.mxu0 0.0
        %805 = vmatprep.subr.mxu0 0.0
        %806 = vmatpush1.xpose.msra.mxu0 0.0
        %807 = vmatprep.subr.mxu0 0.0
        %808 = vmatpush1.xpose.msra.mxu0 0.0
        %809 = vmatprep.subr.mxu0 0.0
        %810 = vmatpush1.xpose.msra.mxu0 0.0
        %811 = vmatprep.subr.mxu0 0.0
        %812 = vmatpush1.xpose.msra.mxu0 0.0
        %813 = vmatprep.subr.mxu0 0.0
        %814 = vmatpush1.xpose.msra.mxu0 0.0
        %815 = vmatprep.subr.mxu0 0.0
        %816 = vmatpush1.xpose.msra.mxu0 0.0
        %817 = vmatprep.subr.mxu0 0.0
        %818 = vmatpush1.xpose.msra.mxu0 0.0
        %819 = vmatprep.subr.mxu0 0.0
        %820 = vmatpush1.xpose.msra.mxu0 0.0
        %821 = vmatprep.subr.mxu0 0.0
        %822 = vmatpush1.xpose.msra.mxu0 0.0
        %823 = vmatprep.subr.mxu0 0.0
        %824 = vmatpush1.xpose.msra.mxu0 0.0
        %825 = vmatprep.subr.mxu0 0.0
        %826 = vmatpush1.xpose.msra.mxu0 0.0
        %827 = vmatprep.subr.mxu0 0.0
        %828 = vmatpush1.xpose.msra.mxu0 0.0
        %829 = vmatprep.subr.mxu0 0.0
        %830 = vmatpush1.xpose.msra.mxu0 0.0
        %831 = vmatprep.subr.mxu0 0.0
        %832 = vmatpush1.xpose.msra.mxu0 0.0
        %833 = vmatprep.subr.mxu0 0.0
        %834 = vmatpush1.xpose.msra.mxu0 0.0
        %835 = vmatprep.subr.mxu0 0.0
        %836 = vmatpush1.xpose.msra.mxu0 0.0
        %837 = vmatprep.subr.mxu0 0.0
        %838 = vmatpush1.xpose.msra.mxu0 0.0
        %839 = vmatprep.subr.mxu0 0.0
        %840 = vmatpush1.xpose.msra.mxu0 0.0
        %841 = vmatprep.subr.mxu0 0.0
        %842 = vmatpush1.xpose.msra.mxu0 0.0
        %843 = vmatprep.subr.mxu0 0.0
        %844 = vmatpush1.xpose.msra.mxu0 0.0
        %845 = vmatprep.subr.mxu0 0.0
        %846 = vmatpush1.xpose.msra.mxu0 0.0
        %847 = vmatprep.subr.mxu0 0.0
        %848 = vmatpush1.xpose.msra.mxu0 0.0
        %849 = vmatprep.subr.mxu0 0.0
        %850 = vmatpush1.xpose.msra.mxu0 0.0
        %851 = vmatprep.subr.mxu0 0.0
        %852 = vmatpush1.xpose.msra.mxu0 0.0
        %853 = vmatprep.subr.mxu0 0.0
        %854 = vmatpush1.xpose.msra.mxu0 0.0
        %855 = vmatprep.subr.mxu0 0.0
        %856 = vmatpush1.xpose.msra.mxu0 0.0
        %857 = vmatprep.subr.mxu0 0.0
        %858 = vmatpush1.xpose.msra.mxu0 0.0
        %859 = vmatprep.subr.mxu0 0.0
        %860 = vmatpush1.xpose.msra.mxu0 0.0
        %861 = vmatprep.subr.mxu0 0.0
        %862 = vmatpush1.xpose.msra.mxu0 0.0
        %863 = vmatprep.subr.mxu0 0.0
        %864 = vmatpush1.xpose.msra.mxu0 0.0
        %865 = vmatprep.mubr.f32.mxu0 0.0
        %866 = vmatmul.mubr.f32.gmra.mrb[0].mxu0 %v797
        %v867 = vpop.f32.mrb[0].mxu0
        %v868 = vadd.f32 %v529, %v867
        %v869 = vpop.f32.mrb[0].mxu0
        %870 = vdwg.mxu0
        %v871 = vsel %vm630, %v868, -inf
        %872 = vmax.xlane.f32.xlu0 %v871
        %v873 = vpop.xlane.xlu0 %872
        %v874 = vsub.f32 %v868, %v873
        %v875 = vmul.f32 %v874, 1.442695
        %v876 = vpow.pop %v875
        %v877 = vsel %vm630, %v876, 0.0
        %878 = vadd.xlane.f32.xlu0 %v877
        %v879 = vpop.xlane.xlu0 %878
        %880 = vrot.lane.b32.xlu0 %v624, 56
        %v881 = vpop.permute.xlu0 %880
        %v884 = vsel %vm630, %v876, 0
        %886 = vmatprep.subr.mxu0 0.0
        %887 = vmatpush1.msra.mxu0 %v881
        %888 = vmatprep.subr.mxu0 0.0
        %889 = vmatpush1.msra.mxu0 0.0
        %890 = vmatprep.subr.mxu0 0.0
        %891 = vmatpush1.msra.mxu0 0.0
        %892 = vmatprep.subr.mxu0 0.0
        %893 = vmatpush1.msra.mxu0 0.0
        %894 = vmatprep.subr.mxu0 0.0
        %895 = vmatpush1.msra.mxu0 0.0
        %896 = vmatprep.subr.mxu0 0.0
        %897 = vmatpush1.msra.mxu0 0.0
        %898 = vmatprep.subr.mxu0 0.0
        %899 = vmatpush1.msra.mxu0 0.0
        %900 = vmatprep.subr.mxu0 0.0
        %901 = vmatpush1.msra.mxu0 0.0
        %902 = vmatprep.subr.mxu0 0.0
        %903 = vmatpush1.msra.mxu0 0.0
        %904 = vmatprep.subr.mxu0 0.0
        %905 = vmatpush1.msra.mxu0 0.0
        %906 = vmatprep.subr.mxu0 0.0
        %907 = vmatpush1.msra.mxu0 0.0
        %908 = vmatprep.subr.mxu0 0.0
        %909 = vmatpush1.msra.mxu0 0.0
        %910 = vmatprep.subr.mxu0 0.0
        %911 = vmatpush1.msra.mxu0 0.0
        %912 = vmatprep.subr.mxu0 0.0
        %913 = vmatpush1.msra.mxu0 0.0
        %914 = vmatprep.subr.mxu0 0.0
        %915 = vmatpush1.msra.mxu0 0.0
        %916 = vmatprep.subr.mxu0 0.0
        %917 = vmatpush1.msra.mxu0 0.0
        %918 = vmatprep.subr.mxu0 0.0
        %919 = vmatpush1.msra.mxu0 0.0
        %920 = vmatprep.subr.mxu0 0.0
        %921 = vmatpush1.msra.mxu0 0.0
        %922 = vmatprep.subr.mxu0 0.0
        %923 = vmatpush1.msra.mxu0 0.0
        %924 = vmatprep.subr.mxu0 0.0
        %925 = vmatpush1.msra.mxu0 0.0
        %926 = vmatprep.subr.mxu0 0.0
        %927 = vmatpush1.msra.mxu0 0.0
        %928 = vmatprep.subr.mxu0 0.0
        %929 = vmatpush1.msra.mxu0 0.0
        %930 = vmatprep.subr.mxu0 0.0
        %931 = vmatpush1.msra.mxu0 0.0
        %932 = vmatprep.subr.mxu0 0.0
        %933 = vmatpush1.msra.mxu0 0.0
        %934 = vmatprep.subr.mxu0 0.0
        %935 = vmatpush1.msra.mxu0 0.0
        %936 = vmatprep.subr.mxu0 0.0
        %937 = vmatpush1.msra.mxu0 0.0
        %938 = vmatprep.subr.mxu0 0.0
        %939 = vmatpush1.msra.mxu0 0.0
        %940 = vmatprep.subr.mxu0 0.0
        %941 = vmatpush1.msra.mxu0 0.0
        %942 = vmatprep.subr.mxu0 0.0
        %943 = vmatpush1.msra.mxu0 0.0
        %944 = vmatprep.subr.mxu0 0.0
        %945 = vmatpush1.msra.mxu0 0.0
        %946 = vmatprep.subr.mxu0 0.0
        %947 = vmatpush1.msra.mxu0 0.0
        %948 = vmatprep.subr.mxu0 0.0
        %949 = vmatpush1.msra.mxu0 0.0
        %950 = vmatprep.mubr.f32.mxu0 0.0
        %951 = vmatmul.mubr.f32.gmra.mrb[0].mxu0 %v884
        %v952 = vpop.f32.mrb[0].mxu0
        %v953 = vadd.f32 0.0, %v952
        %v954 = vpop.f32.mrb[0].mxu0
        %955 = vdwg.mxu0
        %v956 = vrcp.pop %v879
        %v957 = vmul.f32 %v953, %v956
        %959 = vrot.lane.b32.xlu0 %v957, 8
        %v960 = vpop.permute.xlu0 %959
        %vm962 = vcmask 130112
        %963 = vst.msk [vmem:[#allocation2] sm:$0xff] %vm962, %v960
        %964 = vrot.lane.b32.xlu0 %v624, 112
        %v965 = vpop.permute.xlu0 %964
        %966 = vrot.lane.b32.xlu0 %v624, 80
        %v967 = vpop.permute.xlu0 %966
        %v968 = vsel %vm630, %v965, 0
        %v970 = vsel %vm630, %v967, 0
        %972 = vmatprep.subr.mxu0 0.0
        %973 = vmatpush1.xpose.msra.mxu0 %v970
        %974 = vmatprep.subr.mxu0 0.0
        %975 = vmatpush1.xpose.msra.mxu0 0.0
        %976 = vmatprep.subr.mxu0 0.0
        %977 = vmatpush1.xpose.msra.mxu0 0.0
        %978 = vmatprep.subr.mxu0 0.0
        %979 = vmatpush1.xpose.msra.mxu0 0.0
        %980 = vmatprep.subr.mxu0 0.0
        %981 = vmatpush1.xpose.msra.mxu0 0.0
        %982 = vmatprep.subr.mxu0 0.0
        %983 = vmatpush1.xpose.msra.mxu0 0.0
        %984 = vmatprep.subr.mxu0 0.0
        %985 = vmatpush1.xpose.msra.mxu0 0.0
        %986 = vmatprep.subr.mxu0 0.0
        %987 = vmatpush1.xpose.msra.mxu0 0.0
        %988 = vmatprep.subr.mxu0 0.0
        %989 = vmatpush1.xpose.msra.mxu0 0.0
        %990 = vmatprep.subr.mxu0 0.0
        %991 = vmatpush1.xpose.msra.mxu0 0.0
        %992 = vmatprep.subr.mxu0 0.0
        %993 = vmatpush1.xpose.msra.mxu0 0.0
        %994 = vmatprep.subr.mxu0 0.0
        %995 = vmatpush1.xpose.msra.mxu0 0.0
        %996 = vmatprep.subr.mxu0 0.0
        %997 = vmatpush1.xpose.msra.mxu0 0.0
        %998 = vmatprep.subr.mxu0 0.0
        %999 = vmatpush1.xpose.msra.mxu0 0.0
        %1000 = vmatprep.subr.mxu0 0.0
        %1001 = vmatpush1.xpose.msra.mxu0 0.0
        %1002 = vmatprep.subr.mxu0 0.0
        %1003 = vmatpush1.xpose.msra.mxu0 0.0
        %1004 = vmatprep.subr.mxu0 0.0
        %1005 = vmatpush1.xpose.msra.mxu0 0.0
        %1006 = vmatprep.subr.mxu0 0.0
        %1007 = vmatpush1.xpose.msra.mxu0 0.0
        %1008 = vmatprep.subr.mxu0 0.0
        %1009 = vmatpush1.xpose.msra.mxu0 0.0
        %1010 = vmatprep.subr.mxu0 0.0
        %1011 = vmatpush1.xpose.msra.mxu0 0.0
        %1012 = vmatprep.subr.mxu0 0.0
        %1013 = vmatpush1.xpose.msra.mxu0 0.0
        %1014 = vmatprep.subr.mxu0 0.0
        %1015 = vmatpush1.xpose.msra.mxu0 0.0
        %1016 = vmatprep.subr.mxu0 0.0
        %1017 = vmatpush1.xpose.msra.mxu0 0.0
        %1018 = vmatprep.subr.mxu0 0.0
        %1019 = vmatpush1.xpose.msra.mxu0 0.0
        %1020 = vmatprep.subr.mxu0 0.0
        %1021 = vmatpush1.xpose.msra.mxu0 0.0
        %1022 = vmatprep.subr.mxu0 0.0
        %1023 = vmatpush1.xpose.msra.mxu0 0.0
        %1024 = vmatprep.subr.mxu0 0.0
        %1025 = vmatpush1.xpose.msra.mxu0 0.0
        %1026 = vmatprep.subr.mxu0 0.0
        %1027 = vmatpush1.xpose.msra.mxu0 0.0
        %1028 = vmatprep.subr.mxu0 0.0
        %1029 = vmatpush1.xpose.msra.mxu0 0.0
        %1030 = vmatprep.subr.mxu0 0.0
        %1031 = vmatpush1.xpose.msra.mxu0 0.0
        %1032 = vmatprep.subr.mxu0 0.0
        %1033 = vmatpush1.xpose.msra.mxu0 0.0
        %1034 = vmatprep.subr.mxu0 0.0
        %1035 = vmatpush1.xpose.msra.mxu0 0.0
        %1036 = vmatprep.mubr.f32.mxu0 0.0
        %1037 = vmatmul.mubr.f32.gmra.mrb[0].mxu0 %v968
        %v1038 = vpop.f32.mrb[0].mxu0
        %v1039 = vadd.f32 %v529, %v1038
        %v1040 = vpop.f32.mrb[0].mxu0
        %1041 = vdwg.mxu0
        %v1042 = vsel %vm630, %v1039, -inf
        %1043 = vmax.xlane.f32.xlu0 %v1042
        %v1044 = vpop.xlane.xlu0 %1043
        %v1045 = vsub.f32 %v1039, %v1044
        %v1046 = vmul.f32 %v1045, 1.442695
        %v1047 = vpow.pop %v1046
        %v1048 = vsel %vm630, %v1047, 0.0
        %1049 = vadd.xlane.f32.xlu0 %v1048
        %v1050 = vpop.xlane.xlu0 %1049
        %1051 = vrot.lane.b32.xlu0 %v624, 48
        %v1052 = vpop.permute.xlu0 %1051
        %v1055 = vsel %vm630, %v1047, 0
        %1057 = vmatprep.subr.mxu0 0.0
        %1058 = vmatpush1.msra.mxu0 %v1052
        %1059 = vmatprep.subr.mxu0 0.0
        %1060 = vmatpush1.msra.mxu0 0.0
        %1061 = vmatprep.subr.mxu0 0.0
        %1062 = vmatpush1.msra.mxu0 0.0
        %1063 = vmatprep.subr.mxu0 0.0
        %1064 = vmatpush1.msra.mxu0 0.0
        %1065 = vmatprep.subr.mxu0 0.0
        %1066 = vmatpush1.msra.mxu0 0.0
        %1067 = vmatprep.subr.mxu0 0.0
        %1068 = vmatpush1.msra.mxu0 0.0
        %1069 = vmatprep.subr.mxu0 0.0
        %1070 = vmatpush1.msra.mxu0 0.0
        %1071 = vmatprep.subr.mxu0 0.0
        %1072 = vmatpush1.msra.mxu0 0.0
        %1073 = vmatprep.subr.mxu0 0.0
        %1074 = vmatpush1.msra.mxu0 0.0
        %1075 = vmatprep.subr.mxu0 0.0
        %1076 = vmatpush1.msra.mxu0 0.0
        %1077 = vmatprep.subr.mxu0 0.0
        %1078 = vmatpush1.msra.mxu0 0.0
        %1079 = vmatprep.subr.mxu0 0.0
        %1080 = vmatpush1.msra.mxu0 0.0
        %1081 = vmatprep.subr.mxu0 0.0
        %1082 = vmatpush1.msra.mxu0 0.0
        %1083 = vmatprep.subr.mxu0 0.0
        %1084 = vmatpush1.msra.mxu0 0.0
        %1085 = vmatprep.subr.mxu0 0.0
        %1086 = vmatpush1.msra.mxu0 0.0
        %1087 = vmatprep.subr.mxu0 0.0
        %1088 = vmatpush1.msra.mxu0 0.0
        %1089 = vmatprep.subr.mxu0 0.0
        %1090 = vmatpush1.msra.mxu0 0.0
        %1091 = vmatprep.subr.mxu0 0.0
        %1092 = vmatpush1.msra.mxu0 0.0
        %1093 = vmatprep.subr.mxu0 0.0
        %1094 = vmatpush1.msra.mxu0 0.0
        %1095 = vmatprep.subr.mxu0 0.0
        %1096 = vmatpush1.msra.mxu0 0.0
        %1097 = vmatprep.subr.mxu0 0.0
        %1098 = vmatpush1.msra.mxu0 0.0
        %1099 = vmatprep.subr.mxu0 0.0
        %1100 = vmatpush1.msra.mxu0 0.0
        %1101 = vmatprep.subr.mxu0 0.0
        %1102 = vmatpush1.msra.mxu0 0.0
        %1103 = vmatprep.subr.mxu0 0.0
        %1104 = vmatpush1.msra.mxu0 0.0
        %1105 = vmatprep.subr.mxu0 0.0
        %1106 = vmatpush1.msra.mxu0 0.0
        %1107 = vmatprep.subr.mxu0 0.0
        %1108 = vmatpush1.msra.mxu0 0.0
        %1109 = vmatprep.subr.mxu0 0.0
        %1110 = vmatpush1.msra.mxu0 0.0
        %1111 = vmatprep.subr.mxu0 0.0
        %1112 = vmatpush1.msra.mxu0 0.0
        %1113 = vmatprep.subr.mxu0 0.0
        %1114 = vmatpush1.msra.mxu0 0.0
        %1115 = vmatprep.subr.mxu0 0.0
        %1116 = vmatpush1.msra.mxu0 0.0
        %1117 = vmatprep.subr.mxu0 0.0
        %1118 = vmatpush1.msra.mxu0 0.0
        %1119 = vmatprep.subr.mxu0 0.0
        %1120 = vmatpush1.msra.mxu0 0.0
        %1121 = vmatprep.mubr.f32.mxu0 0.0
        %1122 = vmatmul.mubr.f32.gmra.mrb[0].mxu0 %v1055
        %v1123 = vpop.f32.mrb[0].mxu0
        %v1124 = vadd.f32 0.0, %v1123
        %v1125 = vpop.f32.mrb[0].mxu0
        %1126 = vdwg.mxu0
        %v1127 = vrcp.pop %v1050
        %v1128 = vmul.f32 %v1124, %v1127
        %1130 = vrot.lane.b32.xlu0 %v1128, 16
        %v1131 = vpop.permute.xlu0 %1130
        %vm1133 = vcmask 195712
        %1134 = vst.msk [vmem:[#allocation2] sm:$0xff] %vm1133, %v1131
        %1135 = vrot.lane.b32.xlu0 %v624, 104
        %v1136 = vpop.permute.xlu0 %1135
        %1137 = vrot.lane.b32.xlu0 %v624, 72
        %v1138 = vpop.permute.xlu0 %1137
        %v1139 = vsel %vm630, %v1136, 0
        %v1141 = vsel %vm630, %v1138, 0
        %1143 = vmatprep.subr.mxu0 0.0
        %1144 = vmatpush1.xpose.msra.mxu0 %v1141
        %1145 = vmatprep.subr.mxu0 0.0
        %1146 = vmatpush1.xpose.msra.mxu0 0.0
        %1147 = vmatprep.subr.mxu0 0.0
        %1148 = vmatpush1.xpose.msra.mxu0 0.0
        %1149 = vmatprep.subr.mxu0 0.0
        %1150 = vmatpush1.xpose.msra.mxu0 0.0
        %1151 = vmatprep.subr.mxu0 0.0
        %1152 = vmatpush1.xpose.msra.mxu0 0.0
        %1153 = vmatprep.subr.mxu0 0.0
        %1154 = vmatpush1.xpose.msra.mxu0 0.0
        %1155 = vmatprep.subr.mxu0 0.0
        %1156 = vmatpush1.xpose.msra.mxu0 0.0
        %1157 = vmatprep.subr.mxu0 0.0
        %1158 = vmatpush1.xpose.msra.mxu0 0.0
        %1159 = vmatprep.subr.mxu0 0.0
        %1160 = vmatpush1.xpose.msra.mxu0 0.0
        %1161 = vmatprep.subr.mxu0 0.0
        %1162 = vmatpush1.xpose.msra.mxu0 0.0
        %1163 = vmatprep.subr.mxu0 0.0
        %1164 = vmatpush1.xpose.msra.mxu0 0.0
        %1165 = vmatprep.subr.mxu0 0.0
        %1166 = vmatpush1.xpose.msra.mxu0 0.0
        %1167 = vmatprep.subr.mxu0 0.0
        %1168 = vmatpush1.xpose.msra.mxu0 0.0
        %1169 = vmatprep.subr.mxu0 0.0
        %1170 = vmatpush1.xpose.msra.mxu0 0.0
        %1171 = vmatprep.subr.mxu0 0.0
        %1172 = vmatpush1.xpose.msra.mxu0 0.0
        %1173 = vmatprep.subr.mxu0 0.0
        %1174 = vmatpush1.xpose.msra.mxu0 0.0
        %1175 = vmatprep.subr.mxu0 0.0
        %1176 = vmatpush1.xpose.msra.mxu0 0.0
        %1177 = vmatprep.subr.mxu0 0.0
        %1178 = vmatpush1.xpose.msra.mxu0 0.0
        %1179 = vmatprep.subr.mxu0 0.0
        %1180 = vmatpush1.xpose.msra.mxu0 0.0
        %1181 = vmatprep.subr.mxu0 0.0
        %1182 = vmatpush1.xpose.msra.mxu0 0.0
        %1183 = vmatprep.subr.mxu0 0.0
        %1184 = vmatpush1.xpose.msra.mxu0 0.0
        %1185 = vmatprep.subr.mxu0 0.0
        %1186 = vmatpush1.xpose.msra.mxu0 0.0
        %1187 = vmatprep.subr.mxu0 0.0
        %1188 = vmatpush1.xpose.msra.mxu0 0.0
        %1189 = vmatprep.subr.mxu0 0.0
        %1190 = vmatpush1.xpose.msra.mxu0 0.0
        %1191 = vmatprep.subr.mxu0 0.0
        %1192 = vmatpush1.xpose.msra.mxu0 0.0
        %1193 = vmatprep.subr.mxu0 0.0
        %1194 = vmatpush1.xpose.msra.mxu0 0.0
        %1195 = vmatprep.subr.mxu0 0.0
        %1196 = vmatpush1.xpose.msra.mxu0 0.0
        %1197 = vmatprep.subr.mxu0 0.0
        %1198 = vmatpush1.xpose.msra.mxu0 0.0
        %1199 = vmatprep.subr.mxu0 0.0
        %1200 = vmatpush1.xpose.msra.mxu0 0.0
        %1201 = vmatprep.subr.mxu0 0.0
        %1202 = vmatpush1.xpose.msra.mxu0 0.0
        %1203 = vmatprep.subr.mxu0 0.0
        %1204 = vmatpush1.xpose.msra.mxu0 0.0
        %1205 = vmatprep.subr.mxu0 0.0
        %1206 = vmatpush1.xpose.msra.mxu0 0.0
        %1207 = vmatprep.mubr.f32.mxu0 0.0
        %1208 = vmatmul.mubr.f32.gmra.mrb[0].mxu0 %v1139
        %v1209 = vpop.f32.mrb[0].mxu0
        %v1210 = vadd.f32 %v529, %v1209
        %v1211 = vpop.f32.mrb[0].mxu0
        %1212 = vdwg.mxu0
        %v1213 = vsel %vm630, %v1210, -inf
        %1214 = vmax.xlane.f32.xlu0 %v1213
        %v1215 = vpop.xlane.xlu0 %1214
        %v1216 = vsub.f32 %v1210, %v1215
        %v1217 = vmul.f32 %v1216, 1.442695
        %v1218 = vpow.pop %v1217
        %v1219 = vsel %vm630, %v1218, 0.0
        %1220 = vadd.xlane.f32.xlu0 %v1219
        %v1221 = vpop.xlane.xlu0 %1220
        %1222 = vrot.lane.b32.xlu0 %v624, 40
        %v1223 = vpop.permute.xlu0 %1222
        %v1226 = vsel %vm630, %v1218, 0
        %1228 = vmatprep.subr.mxu0 0.0
        %1229 = vmatpush1.msra.mxu0 %v1223
        %1230 = vmatprep.subr.mxu0 0.0
        %1231 = vmatpush1.msra.mxu0 0.0
        %1232 = vmatprep.subr.mxu0 0.0
        %1233 = vmatpush1.msra.mxu0 0.0
        %1234 = vmatprep.subr.mxu0 0.0
        %1235 = vmatpush1.msra.mxu0 0.0
        %1236 = vmatprep.subr.mxu0 0.0
        %1237 = vmatpush1.msra.mxu0 0.0
        %1238 = vmatprep.subr.mxu0 0.0
        %1239 = vmatpush1.msra.mxu0 0.0
        %1240 = vmatprep.subr.mxu0 0.0
        %1241 = vmatpush1.msra.mxu0 0.0
        %1242 = vmatprep.subr.mxu0 0.0
        %1243 = vmatpush1.msra.mxu0 0.0
        %1244 = vmatprep.subr.mxu0 0.0
        %1245 = vmatpush1.msra.mxu0 0.0
        %1246 = vmatprep.subr.mxu0 0.0
        %1247 = vmatpush1.msra.mxu0 0.0
        %1248 = vmatprep.subr.mxu0 0.0
        %1249 = vmatpush1.msra.mxu0 0.0
        %1250 = vmatprep.subr.mxu0 0.0
        %1251 = vmatpush1.msra.mxu0 0.0
        %1252 = vmatprep.subr.mxu0 0.0
        %1253 = vmatpush1.msra.mxu0 0.0
        %1254 = vmatprep.subr.mxu0 0.0
        %1255 = vmatpush1.msra.mxu0 0.0
        %1256 = vmatprep.subr.mxu0 0.0
        %1257 = vmatpush1.msra.mxu0 0.0
        %1258 = vmatprep.subr.mxu0 0.0
        %1259 = vmatpush1.msra.mxu0 0.0
        %1260 = vmatprep.subr.mxu0 0.0
        %1261 = vmatpush1.msra.mxu0 0.0
        %1262 = vmatprep.subr.mxu0 0.0
        %1263 = vmatpush1.msra.mxu0 0.0
        %1264 = vmatprep.subr.mxu0 0.0
        %1265 = vmatpush1.msra.mxu0 0.0
        %1266 = vmatprep.subr.mxu0 0.0
        %1267 = vmatpush1.msra.mxu0 0.0
        %1268 = vmatprep.subr.mxu0 0.0
        %1269 = vmatpush1.msra.mxu0 0.0
        %1270 = vmatprep.subr.mxu0 0.0
        %1271 = vmatpush1.msra.mxu0 0.0
        %1272 = vmatprep.subr.mxu0 0.0
        %1273 = vmatpush1.msra.mxu0 0.0
        %1274 = vmatprep.subr.mxu0 0.0
        %1275 = vmatpush1.msra.mxu0 0.0
        %1276 = vmatprep.subr.mxu0 0.0
        %1277 = vmatpush1.msra.mxu0 0.0
        %1278 = vmatprep.subr.mxu0 0.0
        %1279 = vmatpush1.msra.mxu0 0.0
        %1280 = vmatprep.subr.mxu0 0.0
        %1281 = vmatpush1.msra.mxu0 0.0
        %1282 = vmatprep.subr.mxu0 0.0
        %1283 = vmatpush1.msra.mxu0 0.0
        %1284 = vmatprep.subr.mxu0 0.0
        %1285 = vmatpush1.msra.mxu0 0.0
        %1286 = vmatprep.subr.mxu0 0.0
        %1287 = vmatpush1.msra.mxu0 0.0
        %1288 = vmatprep.subr.mxu0 0.0
        %1289 = vmatpush1.msra.mxu0 0.0
        %1290 = vmatprep.subr.mxu0 0.0
        %1291 = vmatpush1.msra.mxu0 0.0
        %1292 = vmatprep.mubr.f32.mxu0 0.0
        %1293 = vmatmul.mubr.f32.gmra.mrb[0].mxu0 %v1226
        %v1294 = vpop.f32.mrb[0].mxu0
        %v1295 = vadd.f32 0.0, %v1294
        %v1296 = vpop.f32.mrb[0].mxu0
        %1297 = vdwg.mxu0
        %v1298 = vrcp.pop %v1221
        %v1299 = vmul.f32 %v1295, %v1298
        %1301 = vrot.lane.b32.xlu0 %v1299, 24
        %v1302 = vpop.permute.xlu0 %1301
        %vm1304 = vcmask 261312
        %1305 = vst.msk [vmem:[#allocation2] sm:$0xff] %vm1304, %v1302
        %v1306 = vld [vmem:[#allocation2] sm:$0xff]
        %v1308 = vlaneseq
        %v1309 = vshrl.u32 %v1308, 7
        %v1310 = vsub.s32 0, %v1309
        %v1311 = vrot.slane %v540, %v1310
        %v1314 = vsel %vm553, %v1306, 0
        %1316 = vmatprep.subr.mxu0 0.0
        %1317 = vmatpush1.msra.mxu0 %v535
        %1318 = vmatprep.subr.mxu0 0.0
        %1319 = vmatpush1.msra.mxu0 %v536
        %1320 = vmatprep.subr.mxu0 0.0
        %1321 = vmatpush1.msra.mxu0 %v537
        %1322 = vmatprep.subr.mxu0 0.0
        %1323 = vmatpush1.msra.mxu0 %v538
        %1324 = vmatprep.subr.mxu0 0.0
        %1325 = vmatpush1.msra.mxu0 0.0
        %1326 = vmatprep.subr.mxu0 0.0
        %1327 = vmatpush1.msra.mxu0 0.0
        %1328 = vmatprep.subr.mxu0 0.0
        %1329 = vmatpush1.msra.mxu0 0.0
        %1330 = vmatprep.subr.mxu0 0.0
        %1331 = vmatpush1.msra.mxu0 0.0
        %1332 = vmatprep.subr.mxu0 0.0
        %1333 = vmatpush1.msra.mxu0 0.0
        %1334 = vmatprep.subr.mxu0 0.0
        %1335 = vmatpush1.msra.mxu0 0.0
        %1336 = vmatprep.subr.mxu0 0.0
        %1337 = vmatpush1.msra.mxu0 0.0
        %1338 = vmatprep.subr.mxu0 0.0
        %1339 = vmatpush1.msra.mxu0 0.0
        %1340 = vmatprep.subr.mxu0 0.0
        %1341 = vmatpush1.msra.mxu0 0.0
        %1342 = vmatprep.subr.mxu0 0.0
        %1343 = vmatpush1.msra.mxu0 0.0
        %1344 = vmatprep.subr.mxu0 0.0
        %1345 = vmatpush1.msra.mxu0 0.0
        %1346 = vmatprep.subr.mxu0 0.0
        %1347 = vmatpush1.msra.mxu0 0.0
        %1348 = vmatprep.subr.mxu0 0.0
        %1349 = vmatpush1.msra.mxu0 0.0
        %1350 = vmatprep.subr.mxu0 0.0
        %1351 = vmatpush1.msra.mxu0 0.0
        %1352 = vmatprep.subr.mxu0 0.0
        %1353 = vmatpush1.msra.mxu0 0.0
        %1354 = vmatprep.subr.mxu0 0.0
        %1355 = vmatpush1.msra.mxu0 0.0
        %1356 = vmatprep.subr.mxu0 0.0
        %1357 = vmatpush1.msra.mxu0 0.0
        %1358 = vmatprep.subr.mxu0 0.0
        %1359 = vmatpush1.msra.mxu0 0.0
        %1360 = vmatprep.subr.mxu0 0.0
        %1361 = vmatpush1.msra.mxu0 0.0
        %1362 = vmatprep.subr.mxu0 0.0
        %1363 = vmatpush1.msra.mxu0 0.0
        %1364 = vmatprep.subr.mxu0 0.0
        %1365 = vmatpush1.msra.mxu0 0.0
        %1366 = vmatprep.subr.mxu0 0.0
        %1367 = vmatpush1.msra.mxu0 0.0
        %1368 = vmatprep.subr.mxu0 0.0
        %1369 = vmatpush1.msra.mxu0 0.0
        %1370 = vmatprep.subr.mxu0 0.0
        %1371 = vmatpush1.msra.mxu0 0.0
        %1372 = vmatprep.subr.mxu0 0.0
        %1373 = vmatpush1.msra.mxu0 0.0
        %1374 = vmatprep.subr.mxu0 0.0
        %1375 = vmatpush1.msra.mxu0 0.0
        %1376 = vmatprep.subr.mxu0 0.0
        %1377 = vmatpush1.msra.mxu0 0.0
        %1378 = vmatprep.subr.mxu0 0.0
        %1379 = vmatpush1.msra.mxu0 0.0
        %1380 = vmatprep.mubr.f32.mxu0 0.0
        %1381 = vmatmul.mubr.f32.gmra.mrb[0].mxu0 %v1314
        %v1382 = vpop.f32.mrb[0].mxu0
        %v1383 = vadd.f32 %v1311, %v1382
        %v1384 = vpop.f32.mrb[0].mxu0
        %1385 = vdwg.mxu0
        %v1386 = vadd.f32 %v546, %v1383
        %v1387 = vsel %vm553, %v1386, 0.0
        %1388 = vadd.xlane.f32.xlu0 %v1387
        %v1389 = vpop.xlane.xlu0 %1388
        %v1390 = vrcp.pop 32.0
        %v1391 = vmul.f32 %v1389, %v1390
        %v1392 = vmul.f32 %v1386, %v1386
        %v1393 = vsel %vm553, %v1392, 0.0
        %1394 = vadd.xlane.f32.xlu0 %v1393
        %v1395 = vpop.xlane.xlu0 %1394
        %v1396 = vmul.f32 %v1395, %v1390
        %v1397 = vmul.f32 %v1391, %v1391
        %v1398 = vsub.f32 %v1396, %v1397
        %v1399 = vsub.f32 %v1386, %v1391
        %v1400 = vadd.f32 %v1398, 1e-05
        %v1401 = vrsqrt.pop %v1400
        %v1402 = vmul.f32 %v1399, %v1401
        %v1404 = vlaneseq
        %v1405 = vshrl.u32 %v1404, 7
        %v1406 = vsub.s32 0, %v1405
        %v1407 = vrot.slane %v541, %v1406
        %v1409 = vmul.f32 %v1402, %v1407
        %v1411 = vlaneseq
        %v1412 = vshrl.u32 %v1411, 7
        %v1413 = vsub.s32 0, %v1412
        %v1414 = vrot.slane %v542, %v1413
        %v1416 = vadd.f32 %v1409, %v1414
        %v1417 = vld [vmem:[%s8] sm:$0xff]
        %v1418 = vld [vmem:[%s8 + $0x8] sm:$0xff]
        %v1419 = vld [vmem:[%s8 + $0x10] sm:$0xff]
        %v1420 = vld [vmem:[%s8 + $0x18] sm:$0xff]
        %v1421 = vld [vmem:[#allocation8] sm:$0x1]
        %v1423 = vlaneseq
        %v1424 = vshrl.u32 %v1423, 7
        %v1425 = vsub.s32 0, %v1424
        %v1426 = vrot.slane %v1421, %v1425
        %v1429 = vsel %vm553, %v1416, 0
        %1431 = vmatprep.subr.mxu0 0.0
        %1432 = vmatpush1.msra.mxu0 %v1417
        %1433 = vmatprep.subr.mxu0 0.0
        %1434 = vmatpush1.msra.mxu0 %v1418
        %1435 = vmatprep.subr.mxu0 0.0
        %1436 = vmatpush1.msra.mxu0 %v1419
        %1437 = vmatprep.subr.mxu0 0.0
        %1438 = vmatpush1.msra.mxu0 %v1420
        %1439 = vmatprep.subr.mxu0 0.0
        %1440 = vmatpush1.msra.mxu0 0.0
        %1441 = vmatprep.subr.mxu0 0.0
        %1442 = vmatpush1.msra.mxu0 0.0
        %1443 = vmatprep.subr.mxu0 0.0
        %1444 = vmatpush1.msra.mxu0 0.0
        %1445 = vmatprep.subr.mxu0 0.0
        %1446 = vmatpush1.msra.mxu0 0.0
        %1447 = vmatprep.subr.mxu0 0.0
        %1448 = vmatpush1.msra.mxu0 0.0
        %1449 = vmatprep.subr.mxu0 0.0
        %1450 = vmatpush1.msra.mxu0 0.0
        %1451 = vmatprep.subr.mxu0 0.0
        %1452 = vmatpush1.msra.mxu0 0.0
        %1453 = vmatprep.subr.mxu0 0.0
        %1454 = vmatpush1.msra.mxu0 0.0
        %1455 = vmatprep.subr.mxu0 0.0
        %1456 = vmatpush1.msra.mxu0 0.0
        %1457 = vmatprep.subr.mxu0 0.0
        %1458 = vmatpush1.msra.mxu0 0.0
        %1459 = vmatprep.subr.mxu0 0.0
        %1460 = vmatpush1.msra.mxu0 0.0
        %1461 = vmatprep.subr.mxu0 0.0
        %1462 = vmatpush1.msra.mxu0 0.0
        %1463 = vmatprep.subr.mxu0 0.0
        %1464 = vmatpush1.msra.mxu0 0.0
        %1465 = vmatprep.subr.mxu0 0.0
        %1466 = vmatpush1.msra.mxu0 0.0
        %1467 = vmatprep.subr.mxu0 0.0
        %1468 = vmatpush1.msra.mxu0 0.0
        %1469 = vmatprep.subr.mxu0 0.0
        %1470 = vmatpush1.msra.mxu0 0.0
        %1471 = vmatprep.subr.mxu0 0.0
        %1472 = vmatpush1.msra.mxu0 0.0
        %1473 = vmatprep.subr.mxu0 0.0
        %1474 = vmatpush1.msra.mxu0 0.0
        %1475 = vmatprep.subr.mxu0 0.0
        %1476 = vmatpush1.msra.mxu0 0.0
        %1477 = vmatprep.subr.mxu0 0.0
        %1478 = vmatpush1.msra.mxu0 0.0
        %1479 = vmatprep.subr.mxu0 0.0
        %1480 = vmatpush1.msra.mxu0 0.0
        %1481 = vmatprep.subr.mxu0 0.0
        %1482 = vmatpush1.msra.mxu0 0.0
        %1483 = vmatprep.subr.mxu0 0.0
        %1484 = vmatpush1.msra.mxu0 0.0
        %1485 = vmatprep.subr.mxu0 0.0
        %1486 = vmatpush1.msra.mxu0 0.0
        %1487 = vmatprep.subr.mxu0 0.0
        %1488 = vmatpush1.msra.mxu0 0.0
        %1489 = vmatprep.subr.mxu0 0.0
        %1490 = vmatpush1.msra.mxu0 0.0
        %1491 = vmatprep.subr.mxu0 0.0
        %1492 = vmatpush1.msra.mxu0 0.0
        %1493 = vmatprep.subr.mxu0 0.0
        %1494 = vmatpush1.msra.mxu0 0.0
        %1495 = vmatprep.mubr.f32.mxu0 0.0
        %1496 = vmatmul.mubr.f32.gmra.mrb[0].mxu0 %v1429
        %v1497 = vpop.f32.mrb[0].mxu0
        %v1498 = vadd.f32 %v1426, %v1497
        %v1499 = vpop.f32.mrb[0].mxu0
        %1500 = vdwg.mxu0
        %v1501 = vmax.f32 %v1498, 0.0
        %v1502 = vld [vmem:[%s10] sm:$0xff]
        %v1503 = vld [vmem:[%s10 + $0x8] sm:$0xff]
        %v1504 = vld [vmem:[%s10 + $0x10] sm:$0xff]
        %v1505 = vld [vmem:[%s10 + $0x18] sm:$0xff]
        %v1506 = vld [vmem:[%s10 + $0x20] sm:$0xff]
        %v1507 = vld [vmem:[%s10 + $0x28] sm:$0xff]
        %v1508 = vld [vmem:[%s10 + $0x30] sm:$0xff]
        %v1509 = vld [vmem:[%s10 + $0x38] sm:$0xff]
        %v1511 = vlaneseq
        %v1512 = vshrl.u32 %v1511, 7
        %v1513 = vsub.s32 0, %v1512
        %v1514 = vrot.slane %v545, %v1513
        %vm1516 = vcmask 523264
        %v1518 = vsel %vm1516, %v1501, 0
        %1520 = vmatprep.subr.mxu0 0.0
        %1521 = vmatpush1.msra.mxu0 %v1502
        %1522 = vmatprep.subr.mxu0 0.0
        %1523 = vmatpush1.msra.mxu0 %v1503
        %1524 = vmatprep.subr.mxu0 0.0
        %1525 = vmatpush1.msra.mxu0 %v1504
        %1526 = vmatprep.subr.mxu0 0.0
        %1527 = vmatpush1.msra.mxu0 %v1505
        %1528 = vmatprep.subr.mxu0 0.0
        %1529 = vmatpush1.msra.mxu0 %v1506
        %1530 = vmatprep.subr.mxu0 0.0
        %1531 = vmatpush1.msra.mxu0 %v1507
        %1532 = vmatprep.subr.mxu0 0.0
        %1533 = vmatpush1.msra.mxu0 %v1508
        %1534 = vmatprep.subr.mxu0 0.0
        %1535 = vmatpush1.msra.mxu0 %v1509
        %1536 = vmatprep.subr.mxu0 0.0
        %1537 = vmatpush1.msra.mxu0 0.0
        %1538 = vmatprep.subr.mxu0 0.0
        %1539 = vmatpush1.msra.mxu0 0.0
        %1540 = vmatprep.subr.mxu0 0.0
        %1541 = vmatpush1.msra.mxu0 0.0
        %1542 = vmatprep.subr.mxu0 0.0
        %1543 = vmatpush1.msra.mxu0 0.0
        %1544 = vmatprep.subr.mxu0 0.0
        %1545 = vmatpush1.msra.mxu0 0.0
        %1546 = vmatprep.subr.mxu0 0.0
        %1547 = vmatpush1.msra.mxu0 0.0
        %1548 = vmatprep.subr.mxu0 0.0
        %1549 = vmatpush1.msra.mxu0 0.0
        %1550 = vmatprep.subr.mxu0 0.0
        %1551 = vmatpush1.msra.mxu0 0.0
        %1552 = vmatprep.subr.mxu0 0.0
        %1553 = vmatpush1.msra.mxu0 0.0
        %1554 = vmatprep.subr.mxu0 0.0
        %1555 = vmatpush1.msra.mxu0 0.0
        %1556 = vmatprep.subr.mxu0 0.0
        %1557 = vmatpush1.msra.mxu0 0.0
        %1558 = vmatprep.subr.mxu0 0.0
        %1559 = vmatpush1.msra.mxu0 0.0
        %1560 = vmatprep.subr.mxu0 0.0
        %1561 = vmatpush1.msra.mxu0 0.0
        %1562 = vmatprep.subr.mxu0 0.0
        %1563 = vmatpush1.msra.mxu0 0.0
        %1564 = vmatprep.subr.mxu0 0.0
        %1565 = vmatpush1.msra.mxu0 0.0
        %1566 = vmatprep.subr.mxu0 0.0
        %1567 = vmatpush1.msra.mxu0 0.0
        %1568 = vmatprep.subr.mxu0 0.0
        %1569 = vmatpush1.msra.mxu0 0.0
        %1570 = vmatprep.subr.mxu0 0.0
        %1571 = vmatpush1.msra.mxu0 0.0
        %1572 = vmatprep.subr.mxu0 0.0
        %1573 = vmatpush1.msra.mxu0 0.0
        %1574 = vmatprep.subr.mxu0 0.0
        %1575 = vmatpush1.msra.mxu0 0.0
        %1576 = vmatprep.subr.mxu0 0.0
        %1577 = vmatpush1.msra.mxu0 0.0
        %1578 = vmatprep.subr.mxu0 0.0
        %1579 = vmatpush1.msra.mxu0 0.0
        %1580 = vmatprep.subr.mxu0 0.0
        %1581 = vmatpush1.msra.mxu0 0.0
        %1582 = vmatprep.subr.mxu0 0.0
        %1583 = vmatpush1.msra.mxu0 0.0
        %1584 = vmatprep.mubr.f32.mxu0 0.0
        %1585 = vmatmul.mubr.f32.gmra.mrb[0].mxu0 %v1518
        %v1586 = vpop.f32.mrb[0].mxu0
        %v1587 = vadd.f32 %v1514, %v1586
        %v1588 = vpop.f32.mrb[0].mxu0
        %1589 = vdwg.mxu0
        %v1590 = vadd.f32 %v1416, %v1587
        %v1591 = vsel %vm553, %v1590, 0.0
        %1592 = vadd.xlane.f32.xlu0 %v1591
        %v1593 = vpop.xlane.xlu0 %1592
        %v1594 = vmul.f32 %v1593, %v1390
        %v1595 = vmul.f32 %v1590, %v1590
        %v1596 = vsel %vm553, %v1595, 0.0
        %1597 = vadd.xlane.f32.xlu0 %v1596
        %v1598 = vpop.xlane.xlu0 %1597
        %v1599 = vmul.f32 %v1598, %v1390
        %v1600 = vmul.f32 %v1594, %v1594
        %v1601 = vsub.f32 %v1599, %v1600
        %v1602 = vsub.f32 %v1590, %v1594
        %v1603 = vadd.f32 %v1601, 1e-05
        %v1604 = vrsqrt.pop %v1603
        %v1605 = vmul.f32 %v1602, %v1604
        %v1607 = vlaneseq
        %v1608 = vshrl.u32 %v1607, 7
        %v1609 = vsub.s32 0, %v1608
        %v1610 = vrot.slane %v543, %v1609
        %v1612 = vmul.f32 %v1605, %v1610
        %v1614 = vlaneseq
        %v1615 = vshrl.u32 %v1614, 7
        %v1616 = vsub.s32 0, %v1615
        %v1617 = vrot.slane %v544, %v1616
        %v1619 = vadd.f32 %v1612, %v1617
        %v1621 = vsel %vm553, %v1619, 0
        %1623 = vmatprep.subr.mxu0 0.0
        %1624 = vmatpush1.msra.mxu0 %v531
        %1625 = vmatprep.subr.mxu0 0.0
        %1626 = vmatpush1.msra.mxu0 %v532
        %1627 = vmatprep.subr.mxu0 0.0
        %1628 = vmatpush1.msra.mxu0 %v533
        %1629 = vmatprep.subr.mxu0 0.0
        %1630 = vmatpush1.msra.mxu0 %v534
        %1631 = vmatprep.subr.mxu0 0.0
        %1632 = vmatpush1.msra.mxu0 0.0
        %1633 = vmatprep.subr.mxu0 0.0
        %1634 = vmatpush1.msra.mxu0 0.0
        %1635 = vmatprep.subr.mxu0 0.0
        %1636 = vmatpush1.msra.mxu0 0.0
        %1637 = vmatprep.subr.mxu0 0.0
        %1638 = vmatpush1.msra.mxu0 0.0
        %1639 = vmatprep.subr.mxu0 0.0
        %1640 = vmatpush1.msra.mxu0 0.0
        %1641 = vmatprep.subr.mxu0 0.0
        %1642 = vmatpush1.msra.mxu0 0.0
        %1643 = vmatprep.subr.mxu0 0.0
        %1644 = vmatpush1.msra.mxu0 0.0
        %1645 = vmatprep.subr.mxu0 0.0
        %1646 = vmatpush1.msra.mxu0 0.0
        %1647 = vmatprep.subr.mxu0 0.0
        %1648 = vmatpush1.msra.mxu0 0.0
        %1649 = vmatprep.subr.mxu0 0.0
        %1650 = vmatpush1.msra.mxu0 0.0
        %1651 = vmatprep.subr.mxu0 0.0
        %1652 = vmatpush1.msra.mxu0 0.0
        %1653 = vmatprep.subr.mxu0 0.0
        %1654 = vmatpush1.msra.mxu0 0.0
        %1655 = vmatprep.subr.mxu0 0.0
        %1656 = vmatpush1.msra.mxu0 0.0
        %1657 = vmatprep.subr.mxu0 0.0
        %1658 = vmatpush1.msra.mxu0 0.0
        %1659 = vmatprep.subr.mxu0 0.0
        %1660 = vmatpush1.msra.mxu0 0.0
        %1661 = vmatprep.subr.mxu0 0.0
        %1662 = vmatpush1.msra.mxu0 0.0
        %1663 = vmatprep.subr.mxu0 0.0
        %1664 = vmatpush1.msra.mxu0 0.0
        %1665 = vmatprep.subr.mxu0 0.0
        %1666 = vmatpush1.msra.mxu0 0.0
        %1667 = vmatprep.subr.mxu0 0.0
        %1668 = vmatpush1.msra.mxu0 0.0
        %1669 = vmatprep.subr.mxu0 0.0
        %1670 = vmatpush1.msra.mxu0 0.0
        %1671 = vmatprep.subr.mxu0 0.0
        %1672 = vmatpush1.msra.mxu0 0.0
        %1673 = vmatprep.subr.mxu0 0.0
        %1674 = vmatpush1.msra.mxu0 0.0
        %1675 = vmatprep.subr.mxu0 0.0
        %1676 = vmatpush1.msra.mxu0 0.0
        %1677 = vmatprep.subr.mxu0 0.0
        %1678 = vmatpush1.msra.mxu0 0.0
        %1679 = vmatprep.subr.mxu0 0.0
        %1680 = vmatpush1.msra.mxu0 0.0
        %1681 = vmatprep.subr.mxu0 0.0
        %1682 = vmatpush1.msra.mxu0 0.0
        %1683 = vmatprep.subr.mxu0 0.0
        %1684 = vmatpush1.msra.mxu0 0.0
        %1685 = vmatprep.subr.mxu0 0.0
        %1686 = vmatpush1.msra.mxu0 0.0
        %1687 = vmatprep.mubr.f32.mxu0 0.0
        %1688 = vmatmul.mubr.f32.gmra.mrb[0].mxu0 %v1621
        %v1689 = vpop.f32.mrb[0].mxu0
        %v1690 = vadd.f32 %v551, %v1689
        %v1691 = vpop.f32.mrb[0].mxu0
        %1692 = vdwg.mxu0
        %1694 = vrot.lane.b32.xlu0 %v1690, 96
        %v1695 = vpop.permute.xlu0 %1694
        %v1696 = vsel %vm630, %v1690, 0
        %v1698 = vsel %vm630, %v1695, 0
        %1700 = vmatprep.subr.mxu0 0.0
        %1701 = vmatpush1.xpose.msra.mxu0 %v1698
        %1702 = vmatprep.subr.mxu0 0.0
        %1703 = vmatpush1.xpose.msra.mxu0 0.0
        %1704 = vmatprep.subr.mxu0 0.0
        %1705 = vmatpush1.xpose.msra.mxu0 0.0
        %1706 = vmatprep.subr.mxu0 0.0
        %1707 = vmatpush1.xpose.msra.mxu0 0.0
        %1708 = vmatprep.subr.mxu0 0.0
        %1709 = vmatpush1.xpose.msra.mxu0 0.0
        %1710 = vmatprep.subr.mxu0 0.0
        %1711 = vmatpush1.xpose.msra.mxu0 0.0
        %1712 = vmatprep.subr.mxu0 0.0
        %1713 = vmatpush1.xpose.msra.mxu0 0.0
        %1714 = vmatprep.subr.mxu0 0.0
        %1715 = vmatpush1.xpose.msra.mxu0 0.0
        %1716 = vmatprep.subr.mxu0 0.0
        %1717 = vmatpush1.xpose.msra.mxu0 0.0
        %1718 = vmatprep.subr.mxu0 0.0
        %1719 = vmatpush1.xpose.msra.mxu0 0.0
        %1720 = vmatprep.subr.mxu0 0.0
        %1721 = vmatpush1.xpose.msra.mxu0 0.0
        %1722 = vmatprep.subr.mxu0 0.0
        %1723 = vmatpush1.xpose.msra.mxu0 0.0
        %1724 = vmatprep.subr.mxu0 0.0
        %1725 = vmatpush1.xpose.msra.mxu0 0.0
        %1726 = vmatprep.subr.mxu0 0.0
        %1727 = vmatpush1.xpose.msra.mxu0 0.0
        %1728 = vmatprep.subr.mxu0 0.0
        %1729 = vmatpush1.xpose.msra.mxu0 0.0
        %1730 = vmatprep.subr.mxu0 0.0
        %1731 = vmatpush1.xpose.msra.mxu0 0.0
        %1732 = vmatprep.subr.mxu0 0.0
        %1733 = vmatpush1.xpose.msra.mxu0 0.0
        %1734 = vmatprep.subr.mxu0 0.0
        %1735 = vmatpush1.xpose.msra.mxu0 0.0
        %1736 = vmatprep.subr.mxu0 0.0
        %1737 = vmatpush1.xpose.msra.mxu0 0.0
        %1738 = vmatprep.subr.mxu0 0.0
        %1739 = vmatpush1.xpose.msra.mxu0 0.0
        %1740 = vmatprep.subr.mxu0 0.0
        %1741 = vmatpush1.xpose.msra.mxu0 0.0
        %1742 = vmatprep.subr.mxu0 0.0
        %1743 = vmatpush1.xpose.msra.mxu0 0.0
        %1744 = vmatprep.subr.mxu0 0.0
        %1745 = vmatpush1.xpose.msra.mxu0 0.0
        %1746 = vmatprep.subr.mxu0 0.0
        %1747 = vmatpush1.xpose.msra.mxu0 0.0
        %1748 = vmatprep.subr.mxu0 0.0
        %1749 = vmatpush1.xpose.msra.mxu0 0.0
        %1750 = vmatprep.subr.mxu0 0.0
        %1751 = vmatpush1.xpose.msra.mxu0 0.0
        %1752 = vmatprep.subr.mxu0 0.0
        %1753 = vmatpush1.xpose.msra.mxu0 0.0
        %1754 = vmatprep.subr.mxu0 0.0
        %1755 = vmatpush1.xpose.msra.mxu0 0.0
        %1756 = vmatprep.subr.mxu0 0.0
        %1757 = vmatpush1.xpose.msra.mxu0 0.0
        %1758 = vmatprep.subr.mxu0 0.0
        %1759 = vmatpush1.xpose.msra.mxu0 0.0
        %1760 = vmatprep.subr.mxu0 0.0
        %1761 = vmatpush1.xpose.msra.mxu0 0.0
        %1762 = vmatprep.subr.mxu0 0.0
        %1763 = vmatpush1.xpose.msra.mxu0 0.0
        %1764 = vmatprep.mubr.f32.mxu0 0.0
        %1765 = vmatmul.mubr.f32.gmra.mrb[0].mxu0 %v1696
        %v1766 = vpop.f32.mrb[0].mxu0
        %v1767 = vadd.f32 %v529, %v1766
        %v1768 = vpop.f32.mrb[0].mxu0
        %1769 = vdwg.mxu0
        %v1770 = vsel %vm630, %v1767, -inf
        %1771 = vmax.xlane.f32.xlu0 %v1770
        %v1772 = vpop.xlane.xlu0 %1771
        %v1773 = vsub.f32 %v1767, %v1772
        %v1774 = vmul.f32 %v1773, 1.442695
        %v1775 = vpow.pop %v1774
        %v1776 = vsel %vm630, %v1775, 0.0
        %1777 = vadd.xlane.f32.xlu0 %v1776
        %v1778 = vpop.xlane.xlu0 %1777
        %1779 = vrot.lane.b32.xlu0 %v1690, 64
        %v1780 = vpop.permute.xlu0 %1779
        %v1783 = vsel %vm630, %v1775, 0
        %1785 = vmatprep.subr.mxu0 0.0
        %1786 = vmatpush1.msra.mxu0 %v1780
        %1787 = vmatprep.subr.mxu0 0.0
        %1788 = vmatpush1.msra.mxu0 0.0
        %1789 = vmatprep.subr.mxu0 0.0
        %1790 = vmatpush1.msra.mxu0 0.0
        %1791 = vmatprep.subr.mxu0 0.0
        %1792 = vmatpush1.msra.mxu0 0.0
        %1793 = vmatprep.subr.mxu0 0.0
        %1794 = vmatpush1.msra.mxu0 0.0
        %1795 = vmatprep.subr.mxu0 0.0
        %1796 = vmatpush1.msra.mxu0 0.0
        %1797 = vmatprep.subr.mxu0 0.0
        %1798 = vmatpush1.msra.mxu0 0.0
        %1799 = vmatprep.subr.mxu0 0.0
        %1800 = vmatpush1.msra.mxu0 0.0
        %1801 = vmatprep.subr.mxu0 0.0
        %1802 = vmatpush1.msra.mxu0 0.0
        %1803 = vmatprep.subr.mxu0 0.0
        %1804 = vmatpush1.msra.mxu0 0.0
        %1805 = vmatprep.subr.mxu0 0.0
        %1806 = vmatpush1.msra.mxu0 0.0
        %1807 = vmatprep.subr.mxu0 0.0
        %1808 = vmatpush1.msra.mxu0 0.0
        %1809 = vmatprep.subr.mxu0 0.0
        %1810 = vmatpush1.msra.mxu0 0.0
        %1811 = vmatprep.subr.mxu0 0.0
        %1812 = vmatpush1.msra.mxu0 0.0
        %1813 = vmatprep.subr.mxu0 0.0
        %1814 = vmatpush1.msra.mxu0 0.0
        %1815 = vmatprep.subr.mxu0 0.0
        %1816 = vmatpush1.msra.mxu0 0.0
        %1817 = vmatprep.subr.mxu0 0.0
        %1818 = vmatpush1.msra.mxu0 0.0
        %1819 = vmatprep.subr.mxu0 0.0
        %1820 = vmatpush1.msra.mxu0 0.0
        %1821 = vmatprep.subr.mxu0 0.0
        %1822 = vmatpush1.msra.mxu0 0.0
        %1823 = vmatprep.subr.mxu0 0.0
        %1824 = vmatpush1.msra.mxu0 0.0
        %1825 = vmatprep.subr.mxu0 0.0
        %1826 = vmatpush1.msra.mxu0 0.0
        %1827 = vmatprep.subr.mxu0 0.0
        %1828 = vmatpush1.msra.mxu0 0.0
        %1829 = vmatprep.subr.mxu0 0.0
        %1830 = vmatpush1.msra.mxu0 0.0
        %1831 = vmatprep.subr.mxu0 0.0
        %1832 = vmatpush1.msra.mxu0 0.0
        %1833 = vmatprep.subr.mxu0 0.0
        %1834 = vmatpush1.msra.mxu0 0.0
        %1835 = vmatprep.subr.mxu0 0.0
        %1836 = vmatpush1.msra.mxu0 0.0
        %1837 = vmatprep.subr.mxu0 0.0
        %1838 = vmatpush1.msra.mxu0 0.0
        %1839 = vmatprep.subr.mxu0 0.0
        %1840 = vmatpush1.msra.mxu0 0.0
        %1841 = vmatprep.subr.mxu0 0.0
        %1842 = vmatpush1.msra.mxu0 0.0
        %1843 = vmatprep.subr.mxu0 0.0
        %1844 = vmatpush1.msra.mxu0 0.0
        %1845 = vmatprep.subr.mxu0 0.0
        %1846 = vmatpush1.msra.mxu0 0.0
        %1847 = vmatprep.subr.mxu0 0.0
        %1848 = vmatpush1.msra.mxu0 0.0
        %1849 = vmatprep.mubr.f32.mxu0 0.0
        %1850 = vmatmul.mubr.f32.gmra.mrb[0].mxu0 %v1783
        %v1851 = vpop.f32.mrb[0].mxu0
        %v1852 = vadd.f32 0.0, %v1851
        %v1853 = vpop.f32.mrb[0].mxu0
        %1854 = vdwg.mxu0
        %v1855 = vrcp.pop %v1778
        %v1856 = vmul.f32 %v1852, %v1855
        %1857 = vst.msk [vmem:[#allocation2] sm:$0xff] %vm630, %v1856
        %1858 = vrot.lane.b32.xlu0 %v1690, 120
        %v1859 = vpop.permute.xlu0 %1858
        %1860 = vrot.lane.b32.xlu0 %v1690, 88
        %v1861 = vpop.permute.xlu0 %1860
        %v1862 = vsel %vm630, %v1859, 0
        %v1864 = vsel %vm630, %v1861, 0
        %1866 = vmatprep.subr.mxu0 0.0
        %1867 = vmatpush1.xpose.msra.mxu0 %v1864
        %1868 = vmatprep.subr.mxu0 0.0
        %1869 = vmatpush1.xpose.msra.mxu0 0.0
        %1870 = vmatprep.subr.mxu0 0.0
        %1871 = vmatpush1.xpose.msra.mxu0 0.0
        %1872 = vmatprep.subr.mxu0 0.0
        %1873 = vmatpush1.xpose.msra.mxu0 0.0
        %1874 = vmatprep.subr.mxu0 0.0
        %1875 = vmatpush1.xpose.msra.mxu0 0.0
        %1876 = vmatprep.subr.mxu0 0.0
        %1877 = vmatpush1.xpose.msra.mxu0 0.0
        %1878 = vmatprep.subr.mxu0 0.0
        %1879 = vmatpush1.xpose.msra.mxu0 0.0
        %1880 = vmatprep.subr.mxu0 0.0
        %1881 = vmatpush1.xpose.msra.mxu0 0.0
        %1882 = vmatprep.subr.mxu0 0.0
        %1883 = vmatpush1.xpose.msra.mxu0 0.0
        %1884 = vmatprep.subr.mxu0 0.0
        %1885 = vmatpush1.xpose.msra.mxu0 0.0
        %1886 = vmatprep.subr.mxu0 0.0
        %1887 = vmatpush1.xpose.msra.mxu0 0.0
        %1888 = vmatprep.subr.mxu0 0.0
        %1889 = vmatpush1.xpose.msra.mxu0 0.0
        %1890 = vmatprep.subr.mxu0 0.0
        %1891 = vmatpush1.xpose.msra.mxu0 0.0
        %1892 = vmatprep.subr.mxu0 0.0
        %1893 = vmatpush1.xpose.msra.mxu0 0.0
        %1894 = vmatprep.subr.mxu0 0.0
        %1895 = vmatpush1.xpose.msra.mxu0 0.0
        %1896 = vmatprep.subr.mxu0 0.0
        %1897 = vmatpush1.xpose.msra.mxu0 0.0
        %1898 = vmatprep.subr.mxu0 0.0
        %1899 = vmatpush1.xpose.msra.mxu0 0.0
        %1900 = vmatprep.subr.mxu0 0.0
        %1901 = vmatpush1.xpose.msra.mxu0 0.0
        %1902 = vmatprep.subr.mxu0 0.0
        %1903 = vmatpush1.xpose.msra.mxu0 0.0
        %1904 = vmatprep.subr.mxu0 0.0
        %1905 = vmatpush1.xpose.msra.mxu0 0.0
        %1906 = vmatprep.subr.mxu0 0.0
        %1907 = vmatpush1.xpose.msra.mxu0 0.0
        %1908 = vmatprep.subr.mxu0 0.0
        %1909 = vmatpush1.xpose.msra.mxu0 0.0
        %1910 = vmatprep.subr.mxu0 0.0
        %1911 = vmatpush1.xpose.msra.mxu0 0.0
        %1912 = vmatprep.subr.mxu0 0.0
        %1913 = vmatpush1.xpose.msra.mxu0 0.0
        %1914 = vmatprep.subr.mxu0 0.0
        %1915 = vmatpush1.xpose.msra.mxu0 0.0
        %1916 = vmatprep.subr.mxu0 0.0
        %1917 = vmatpush1.xpose.msra.mxu0 0.0
        %1918 = vmatprep.subr.mxu0 0.0
        %1919 = vmatpush1.xpose.msra.mxu0 0.0
        %1920 = vmatprep.subr.mxu0 0.0
        %1921 = vmatpush1.xpose.msra.mxu0 0.0
        %1922 = vmatprep.subr.mxu0 0.0
        %1923 = vmatpush1.xpose.msra.mxu0 0.0
        %1924 = vmatprep.subr.mxu0 0.0
        %1925 = vmatpush1.xpose.msra.mxu0 0.0
        %1926 = vmatprep.subr.mxu0 0.0
        %1927 = vmatpush1.xpose.msra.mxu0 0.0
        %1928 = vmatprep.subr.mxu0 0.0
        %1929 = vmatpush1.xpose.msra.mxu0 0.0
        %1930 = vmatprep.mubr.f32.mxu0 0.0
        %1931 = vmatmul.mubr.f32.gmra.mrb[0].mxu0 %v1862
        %v1932 = vpop.f32.mrb[0].mxu0
        %v1933 = vadd.f32 %v529, %v1932
        %v1934 = vpop.f32.mrb[0].mxu0
        %1935 = vdwg.mxu0
        %v1936 = vsel %vm630, %v1933, -inf
        %1937 = vmax.xlane.f32.xlu0 %v1936
        %v1938 = vpop.xlane.xlu0 %1937
        %v1939 = vsub.f32 %v1933, %v1938
        %v1940 = vmul.f32 %v1939, 1.442695
        %v1941 = vpow.pop %v1940
        %v1942 = vsel %vm630, %v1941, 0.0
        %1943 = vadd.xlane.f32.xlu0 %v1942
        %v1944 = vpop.xlane.xlu0 %1943
        %1945 = vrot.lane.b32.xlu0 %v1690, 56
        %v1946 = vpop.permute.xlu0 %1945
        %v1949 = vsel %vm630, %v1941, 0
        %1951 = vmatprep.subr.mxu0 0.0
        %1952 = vmatpush1.msra.mxu0 %v1946
        %1953 = vmatprep.subr.mxu0 0.0
        %1954 = vmatpush1.msra.mxu0 0.0
        %1955 = vmatprep.subr.mxu0 0.0
        %1956 = vmatpush1.msra.mxu0 0.0
        %1957 = vmatprep.subr.mxu0 0.0
        %1958 = vmatpush1.msra.mxu0 0.0
        %1959 = vmatprep.subr.mxu0 0.0
        %1960 = vmatpush1.msra.mxu0 0.0
        %1961 = vmatprep.subr.mxu0 0.0
        %1962 = vmatpush1.msra.mxu0 0.0
        %1963 = vmatprep.subr.mxu0 0.0
        %1964 = vmatpush1.msra.mxu0 0.0
        %1965 = vmatprep.subr.mxu0 0.0
        %1966 = vmatpush1.msra.mxu0 0.0
        %1967 = vmatprep.subr.mxu0 0.0
        %1968 = vmatpush1.msra.mxu0 0.0
        %1969 = vmatprep.subr.mxu0 0.0
        %1970 = vmatpush1.msra.mxu0 0.0
        %1971 = vmatprep.subr.mxu0 0.0
        %1972 = vmatpush1.msra.mxu0 0.0
        %1973 = vmatprep.subr.mxu0 0.0
        %1974 = vmatpush1.msra.mxu0 0.0
        %1975 = vmatprep.subr.mxu0 0.0
        %1976 = vmatpush1.msra.mxu0 0.0
        %1977 = vmatprep.subr.mxu0 0.0
        %1978 = vmatpush1.msra.mxu0 0.0
        %1979 = vmatprep.subr.mxu0 0.0
        %1980 = vmatpush1.msra.mxu0 0.0
        %1981 = vmatprep.subr.mxu0 0.0
        %1982 = vmatpush1.msra.mxu0 0.0
        %1983 = vmatprep.subr.mxu0 0.0
        %1984 = vmatpush1.msra.mxu0 0.0
        %1985 = vmatprep.subr.mxu0 0.0
        %1986 = vmatpush1.msra.mxu0 0.0
        %1987 = vmatprep.subr.mxu0 0.0
        %1988 = vmatpush1.msra.mxu0 0.0
        %1989 = vmatprep.subr.mxu0 0.0
        %1990 = vmatpush1.msra.mxu0 0.0
        %1991 = vmatprep.subr.mxu0 0.0
        %1992 = vmatpush1.msra.mxu0 0.0
        %1993 = vmatprep.subr.mxu0 0.0
        %1994 = vmatpush1.msra.mxu0 0.0
        %1995 = vmatprep.subr.mxu0 0.0
        %1996 = vmatpush1.msra.mxu0 0.0
        %1997 = vmatprep.subr.mxu0 0.0
        %1998 = vmatpush1.msra.mxu0 0.0
        %1999 = vmatprep.subr.mxu0 0.0
        %2000 = vmatpush1.msra.mxu0 0.0
        %2001 = vmatprep.subr.mxu0 0.0
        %2002 = vmatpush1.msra.mxu0 0.0
        %2003 = vmatprep.subr.mxu0 0.0
        %2004 = vmatpush1.msra.mxu0 0.0
        %2005 = vmatprep.subr.mxu0 0.0
        %2006 = vmatpush1.msra.mxu0 0.0
        %2007 = vmatprep.subr.mxu0 0.0
        %2008 = vmatpush1.msra.mxu0 0.0
        %2009 = vmatprep.subr.mxu0 0.0
        %2010 = vmatpush1.msra.mxu0 0.0
        %2011 = vmatprep.subr.mxu0 0.0
        %2012 = vmatpush1.msra.mxu0 0.0
        %2013 = vmatprep.subr.mxu0 0.0
        %2014 = vmatpush1.msra.mxu0 0.0
        %2015 = vmatprep.mubr.f32.mxu0 0.0
        %2016 = vmatmul.mubr.f32.gmra.mrb[0].mxu0 %v1949
        %v2017 = vpop.f32.mrb[0].mxu0
        %v2018 = vadd.f32 0.0, %v2017
        %v2019 = vpop.f32.mrb[0].mxu0
        %2020 = vdwg.mxu0
        %v2021 = vrcp.pop %v1944
        %v2022 = vmul.f32 %v2018, %v2021
        %2024 = vrot.lane.b32.xlu0 %v2022, 8
        %v2025 = vpop.permute.xlu0 %2024
        %2027 = vst.msk [vmem:[#allocation2] sm:$0xff] %vm962, %v2025
        %2028 = vrot.lane.b32.xlu0 %v1690, 112
        %v2029 = vpop.permute.xlu0 %2028
        %2030 = vrot.lane.b32.xlu0 %v1690, 80
        %v2031 = vpop.permute.xlu0 %2030
        %v2032 = vsel %vm630, %v2029, 0
        %v2034 = vsel %vm630, %v2031, 0
        %2036 = vmatprep.subr.mxu0 0.0
        %2037 = vmatpush1.xpose.msra.mxu0 %v2034
        %2038 = vmatprep.subr.mxu0 0.0
        %2039 = vmatpush1.xpose.msra.mxu0 0.0
        %2040 = vmatprep.subr.mxu0 0.0
        %2041 = vmatpush1.xpose.msra.mxu0 0.0
        %2042 = vmatprep.subr.mxu0 0.0
        %2043 = vmatpush1.xpose.msra.mxu0 0.0
        %2044 = vmatprep.subr.mxu0 0.0
        %2045 = vmatpush1.xpose.msra.mxu0 0.0
        %2046 = vmatprep.subr.mxu0 0.0
        %2047 = vmatpush1.xpose.msra.mxu0 0.0
        %2048 = vmatprep.subr.mxu0 0.0
        %2049 = vmatpush1.xpose.msra.mxu0 0.0
        %2050 = vmatprep.subr.mxu0 0.0
        %2051 = vmatpush1.xpose.msra.mxu0 0.0
        %2052 = vmatprep.subr.mxu0 0.0
        %2053 = vmatpush1.xpose.msra.mxu0 0.0
        %2054 = vmatprep.subr.mxu0 0.0
        %2055 = vmatpush1.xpose.msra.mxu0 0.0
        %2056 = vmatprep.subr.mxu0 0.0
        %2057 = vmatpush1.xpose.msra.mxu0 0.0
        %2058 = vmatprep.subr.mxu0 0.0
        %2059 = vmatpush1.xpose.msra.mxu0 0.0
        %2060 = vmatprep.subr.mxu0 0.0
        %2061 = vmatpush1.xpose.msra.mxu0 0.0
        %2062 = vmatprep.subr.mxu0 0.0
        %2063 = vmatpush1.xpose.msra.mxu0 0.0
        %2064 = vmatprep.subr.mxu0 0.0
        %2065 = vmatpush1.xpose.msra.mxu0 0.0
        %2066 = vmatprep.subr.mxu0 0.0
        %2067 = vmatpush1.xpose.msra.mxu0 0.0
        %2068 = vmatprep.subr.mxu0 0.0
        %2069 = vmatpush1.xpose.msra.mxu0 0.0
        %2070 = vmatprep.subr.mxu0 0.0
        %2071 = vmatpush1.xpose.msra.mxu0 0.0
        %2072 = vmatprep.subr.mxu0 0.0
        %2073 = vmatpush1.xpose.msra.mxu0 0.0
        %2074 = vmatprep.subr.mxu0 0.0
        %2075 = vmatpush1.xpose.msra.mxu0 0.0
        %2076 = vmatprep.subr.mxu0 0.0
        %2077 = vmatpush1.xpose.msra.mxu0 0.0
        %2078 = vmatprep.subr.mxu0 0.0
        %2079 = vmatpush1.xpose.msra.mxu0 0.0
        %2080 = vmatprep.subr.mxu0 0.0
        %2081 = vmatpush1.xpose.msra.mxu0 0.0
        %2082 = vmatprep.subr.mxu0 0.0
        %2083 = vmatpush1.xpose.msra.mxu0 0.0
        %2084 = vmatprep.subr.mxu0 0.0
        %2085 = vmatpush1.xpose.msra.mxu0 0.0
        %2086 = vmatprep.subr.mxu0 0.0
        %2087 = vmatpush1.xpose.msra.mxu0 0.0
        %2088 = vmatprep.subr.mxu0 0.0
        %2089 = vmatpush1.xpose.msra.mxu0 0.0
        %2090 = vmatprep.subr.mxu0 0.0
        %2091 = vmatpush1.xpose.msra.mxu0 0.0
        %2092 = vmatprep.subr.mxu0 0.0
        %2093 = vmatpush1.xpose.msra.mxu0 0.0
        %2094 = vmatprep.subr.mxu0 0.0
        %2095 = vmatpush1.xpose.msra.mxu0 0.0
        %2096 = vmatprep.subr.mxu0 0.0
        %2097 = vmatpush1.xpose.msra.mxu0 0.0
        %2098 = vmatprep.subr.mxu0 0.0
        %2099 = vmatpush1.xpose.msra.mxu0 0.0
        %2100 = vmatprep.mubr.f32.mxu0 0.0
        %2101 = vmatmul.mubr.f32.gmra.mrb[0].mxu0 %v2032
        %v2102 = vpop.f32.mrb[0].mxu0
        %v2103 = vadd.f32 %v529, %v2102
        %v2104 = vpop.f32.mrb[0].mxu0
        %2105 = vdwg.mxu0
        %v2106 = vsel %vm630, %v2103, -inf
        %2107 = vmax.xlane.f32.xlu0 %v2106
        %v2108 = vpop.xlane.xlu0 %2107
        %v2109 = vsub.f32 %v2103, %v2108
        %v2110 = vmul.f32 %v2109, 1.442695
        %v2111 = vpow.pop %v2110
        %v2112 = vsel %vm630, %v2111, 0.0
        %2113 = vadd.xlane.f32.xlu0 %v2112
        %v2114 = vpop.xlane.xlu0 %2113
        %2115 = vrot.lane.b32.xlu0 %v1690, 48
        %v2116 = vpop.permute.xlu0 %2115
        %v2119 = vsel %vm630, %v2111, 0
        %2121 = vmatprep.subr.mxu0 0.0
        %2122 = vmatpush1.msra.mxu0 %v2116
        %2123 = vmatprep.subr.mxu0 0.0
        %2124 = vmatpush1.msra.mxu0 0.0
        %2125 = vmatprep.subr.mxu0 0.0
        %2126 = vmatpush1.msra.mxu0 0.0
        %2127 = vmatprep.subr.mxu0 0.0
        %2128 = vmatpush1.msra.mxu0 0.0
        %2129 = vmatprep.subr.mxu0 0.0
        %2130 = vmatpush1.msra.mxu0 0.0
        %2131 = vmatprep.subr.mxu0 0.0
        %2132 = vmatpush1.msra.mxu0 0.0
        %2133 = vmatprep.subr.mxu0 0.0
        %2134 = vmatpush1.msra.mxu0 0.0
        %2135 = vmatprep.subr.mxu0 0.0
        %2136 = vmatpush1.msra.mxu0 0.0
        %2137 = vmatprep.subr.mxu0 0.0
        %2138 = vmatpush1.msra.mxu0 0.0
        %2139 = vmatprep.subr.mxu0 0.0
        %2140 = vmatpush1.msra.mxu0 0.0
        %2141 = vmatprep.subr.mxu0 0.0
        %2142 = vmatpush1.msra.mxu0 0.0
        %2143 = vmatprep.subr.mxu0 0.0
        %2144 = vmatpush1.msra.mxu0 0.0
        %2145 = vmatprep.subr.mxu0 0.0
        %2146 = vmatpush1.msra.mxu0 0.0
        %2147 = vmatprep.subr.mxu0 0.0
        %2148 = vmatpush1.msra.mxu0 0.0
        %2149 = vmatprep.subr.mxu0 0.0
        %2150 = vmatpush1.msra.mxu0 0.0
        %2151 = vmatprep.subr.mxu0 0.0
        %2152 = vmatpush1.msra.mxu0 0.0
        %2153 = vmatprep.subr.mxu0 0.0
        %2154 = vmatpush1.msra.mxu0 0.0
        %2155 = vmatprep.subr.mxu0 0.0
        %2156 = vmatpush1.msra.mxu0 0.0
        %2157 = vmatprep.subr.mxu0 0.0
        %2158 = vmatpush1.msra.mxu0 0.0
        %2159 = vmatprep.subr.mxu0 0.0
        %2160 = vmatpush1.msra.mxu0 0.0
        %2161 = vmatprep.subr.mxu0 0.0
        %2162 = vmatpush1.msra.mxu0 0.0
        %2163 = vmatprep.subr.mxu0 0.0
        %2164 = vmatpush1.msra.mxu0 0.0
        %2165 = vmatprep.subr.mxu0 0.0
        %2166 = vmatpush1.msra.mxu0 0.0
        %2167 = vmatprep.subr.mxu0 0.0
        %2168 = vmatpush1.msra.mxu0 0.0
        %2169 = vmatprep.subr.mxu0 0.0
        %2170 = vmatpush1.msra.mxu0 0.0
        %2171 = vmatprep.subr.mxu0 0.0
        %2172 = vmatpush1.msra.mxu0 0.0
        %2173 = vmatprep.subr.mxu0 0.0
        %2174 = vmatpush1.msra.mxu0 0.0
        %2175 = vmatprep.subr.mxu0 0.0
        %2176 = vmatpush1.msra.mxu0 0.0
        %2177 = vmatprep.subr.mxu0 0.0
        %2178 = vmatpush1.msra.mxu0 0.0
        %2179 = vmatprep.subr.mxu0 0.0
        %2180 = vmatpush1.msra.mxu0 0.0
        %2181 = vmatprep.subr.mxu0 0.0
        %2182 = vmatpush1.msra.mxu0 0.0
        %2183 = vmatprep.subr.mxu0 0.0
        %2184 = vmatpush1.msra.mxu0 0.0
        %2185 = vmatprep.mubr.f32.mxu0 0.0
        %2186 = vmatmul.mubr.f32.gmra.mrb[0].mxu0 %v2119
        %v2187 = vpop.f32.mrb[0].mxu0
        %v2188 = vadd.f32 0.0, %v2187
        %v2189 = vpop.f32.mrb[0].mxu0
        %2190 = vdwg.mxu0
        %v2191 = vrcp.pop %v2114
        %v2192 = vmul.f32 %v2188, %v2191
        %2194 = vrot.lane.b32.xlu0 %v2192, 16
        %v2195 = vpop.permute.xlu0 %2194
        %2197 = vst.msk [vmem:[#allocation2] sm:$0xff] %vm1133, %v2195
        %2198 = vrot.lane.b32.xlu0 %v1690, 104
        %v2199 = vpop.permute.xlu0 %2198
        %2200 = vrot.lane.b32.xlu0 %v1690, 72
        %v2201 = vpop.permute.xlu0 %2200
        %v2202 = vsel %vm630, %v2199, 0
        %v2204 = vsel %vm630, %v2201, 0
        %2206 = vmatprep.subr.mxu0 0.0
        %2207 = vmatpush1.xpose.msra.mxu0 %v2204
        %2208 = vmatprep.subr.mxu0 0.0
        %2209 = vmatpush1.xpose.msra.mxu0 0.0
        %2210 = vmatprep.subr.mxu0 0.0
        %2211 = vmatpush1.xpose.msra.mxu0 0.0
        %2212 = vmatprep.subr.mxu0 0.0
        %2213 = vmatpush1.xpose.msra.mxu0 0.0
        %2214 = vmatprep.subr.mxu0 0.0
        %2215 = vmatpush1.xpose.msra.mxu0 0.0
        %2216 = vmatprep.subr.mxu0 0.0
        %2217 = vmatpush1.xpose.msra.mxu0 0.0
        %2218 = vmatprep.subr.mxu0 0.0
        %2219 = vmatpush1.xpose.msra.mxu0 0.0
        %2220 = vmatprep.subr.mxu0 0.0
        %2221 = vmatpush1.xpose.msra.mxu0 0.0
        %2222 = vmatprep.subr.mxu0 0.0
        %2223 = vmatpush1.xpose.msra.mxu0 0.0
        %2224 = vmatprep.subr.mxu0 0.0
        %2225 = vmatpush1.xpose.msra.mxu0 0.0
        %2226 = vmatprep.subr.mxu0 0.0
        %2227 = vmatpush1.xpose.msra.mxu0 0.0
        %2228 = vmatprep.subr.mxu0 0.0
        %2229 = vmatpush1.xpose.msra.mxu0 0.0
        %2230 = vmatprep.subr.mxu0 0.0
        %2231 = vmatpush1.xpose.msra.mxu0 0.0
        %2232 = vmatprep.subr.mxu0 0.0
        %2233 = vmatpush1.xpose.msra.mxu0 0.0
        %2234 = vmatprep.subr.mxu0 0.0
        %2235 = vmatpush1.xpose.msra.mxu0 0.0
        %2236 = vmatprep.subr.mxu0 0.0
        %2237 = vmatpush1.xpose.msra.mxu0 0.0
        %2238 = vmatprep.subr.mxu0 0.0
        %2239 = vmatpush1.xpose.msra.mxu0 0.0
        %2240 = vmatprep.subr.mxu0 0.0
        %2241 = vmatpush1.xpose.msra.mxu0 0.0
        %2242 = vmatprep.subr.mxu0 0.0
        %2243 = vmatpush1.xpose.msra.mxu0 0.0
        %2244 = vmatprep.subr.mxu0 0.0
        %2245 = vmatpush1.xpose.msra.mxu0 0.0
        %2246 = vmatprep.subr.mxu0 0.0
        %2247 = vmatpush1.xpose.msra.mxu0 0.0
        %2248 = vmatprep.subr.mxu0 0.0
        %2249 = vmatpush1.xpose.msra.mxu0 0.0
        %2250 = vmatprep.subr.mxu0 0.0
        %2251 = vmatpush1.xpose.msra.mxu0 0.0
        %2252 = vmatprep.subr.mxu0 0.0
        %2253 = vmatpush1.xpose.msra.mxu0 0.0
        %2254 = vmatprep.subr.mxu0 0.0
        %2255 = vmatpush1.xpose.msra.mxu0 0.0
        %2256 = vmatprep.subr.mxu0 0.0
        %2257 = vmatpush1.xpose.msra.mxu0 0.0
        %2258 = vmatprep.subr.mxu0 0.0
        %2259 = vmatpush1.xpose.msra.mxu0 0.0
        %2260 = vmatprep.subr.mxu0 0.0
        %2261 = vmatpush1.xpose.msra.mxu0 0.0
        %2262 = vmatprep.subr.mxu0 0.0
        %2263 = vmatpush1.xpose.msra.mxu0 0.0
        %2264 = vmatprep.subr.mxu0 0.0
        %2265 = vmatpush1.xpose.msra.mxu0 0.0
        %2266 = vmatprep.subr.mxu0 0.0
        %2267 = vmatpush1.xpose.msra.mxu0 0.0
        %2268 = vmatprep.subr.mxu0 0.0
        %2269 = vmatpush1.xpose.msra.mxu0 0.0
        %2270 = vmatprep.mubr.f32.mxu0 0.0
        %2271 = vmatmul.mubr.f32.gmra.mrb[0].mxu0 %v2202
        %v2272 = vpop.f32.mrb[0].mxu0
        %v2273 = vadd.f32 %v529, %v2272
        %v2274 = vpop.f32.mrb[0].mxu0
        %2275 = vdwg.mxu0
        %v2276 = vsel %vm630, %v2273, -inf
        %2277 = vmax.xlane.f32.xlu0 %v2276
        %v2278 = vpop.xlane.xlu0 %2277
        %v2279 = vsub.f32 %v2273, %v2278
        %v2280 = vmul.f32 %v2279, 1.442695
        %v2281 = vpow.pop %v2280
        %v2282 = vsel %vm630, %v2281, 0.0
        %2283 = vadd.xlane.f32.xlu0 %v2282
        %v2284 = vpop.xlane.xlu0 %2283
        %2285 = vrot.lane.b32.xlu0 %v1690, 40
        %v2286 = vpop.permute.xlu0 %2285
        %v2289 = vsel %vm630, %v2281, 0
        %2291 = vmatprep.subr.mxu0 0.0
        %2292 = vmatpush1.msra.mxu0 %v2286
        %2293 = vmatprep.subr.mxu0 0.0
        %2294 = vmatpush1.msra.mxu0 0.0
        %2295 = vmatprep.subr.mxu0 0.0
        %2296 = vmatpush1.msra.mxu0 0.0
        %2297 = vmatprep.subr.mxu0 0.0
        %2298 = vmatpush1.msra.mxu0 0.0
        %2299 = vmatprep.subr.mxu0 0.0
        %2300 = vmatpush1.msra.mxu0 0.0
        %2301 = vmatprep.subr.mxu0 0.0
        %2302 = vmatpush1.msra.mxu0 0.0
        %2303 = vmatprep.subr.mxu0 0.0
        %2304 = vmatpush1.msra.mxu0 0.0
        %2305 = vmatprep.subr.mxu0 0.0
        %2306 = vmatpush1.msra.mxu0 0.0
        %2307 = vmatprep.subr.mxu0 0.0
        %2308 = vmatpush1.msra.mxu0 0.0
        %2309 = vmatprep.subr.mxu0 0.0
        %2310 = vmatpush1.msra.mxu0 0.0
        %2311 = vmatprep.subr.mxu0 0.0
        %2312 = vmatpush1.msra.mxu0 0.0
        %2313 = vmatprep.subr.mxu0 0.0
        %2314 = vmatpush1.msra.mxu0 0.0
        %2315 = vmatprep.subr.mxu0 0.0
        %2316 = vmatpush1.msra.mxu0 0.0
        %2317 = vmatprep.subr.mxu0 0.0
        %2318 = vmatpush1.msra.mxu0 0.0
        %2319 = vmatprep.subr.mxu0 0.0
        %2320 = vmatpush1.msra.mxu0 0.0
        %2321 = vmatprep.subr.mxu0 0.0
        %2322 = vmatpush1.msra.mxu0 0.0
        %2323 = vmatprep.subr.mxu0 0.0
        %2324 = vmatpush1.msra.mxu0 0.0
        %2325 = vmatprep.subr.mxu0 0.0
        %2326 = vmatpush1.msra.mxu0 0.0
        %2327 = vmatprep.subr.mxu0 0.0
        %2328 = vmatpush1.msra.mxu0 0.0
        %2329 = vmatprep.subr.mxu0 0.0
        %2330 = vmatpush1.msra.mxu0 0.0
        %2331 = vmatprep.subr.mxu0 0.0
        %2332 = vmatpush1.msra.mxu0 0.0
        %2333 = vmatprep.subr.mxu0 0.0
        %2334 = vmatpush1.msra.mxu0 0.0
        %2335 = vmatprep.subr.mxu0 0.0
        %2336 = vmatpush1.msra.mxu0 0.0
        %2337 = vmatprep.subr.mxu0 0.0
        %2338 = vmatpush1.msra.mxu0 0.0
        %2339 = vmatprep.subr.mxu0 0.0
        %2340 = vmatpush1.msra.mxu0 0.0
        %2341 = vmatprep.subr.mxu0 0.0
        %2342 = vmatpush1.msra.mxu0 0.0
        %2343 = vmatprep.subr.mxu0 0.0
        %2344 = vmatpush1.msra.mxu0 0.0
        %2345 = vmatprep.subr.mxu0 0.0
        %2346 = vmatpush1.msra.mxu0 0.0
        %2347 = vmatprep.subr.mxu0 0.0
        %2348 = vmatpush1.msra.mxu0 0.0
        %2349 = vmatprep.subr.mxu0 0.0
        %2350 = vmatpush1.msra.mxu0 0.0
        %2351 = vmatprep.subr.mxu0 0.0
        %2352 = vmatpush1.msra.mxu0 0.0
        %2353 = vmatprep.subr.mxu0 0.0
        %2354 = vmatpush1.msra.mxu0 0.0
        %2355 = vmatprep.mubr.f32.mxu0 0.0
        %2356 = vmatmul.mubr.f32.gmra.mrb[0].mxu0 %v2289
        %v2357 = vpop.f32.mrb[0].mxu0
        %v2358 = vadd.f32 0.0, %v2357
        %v2359 = vpop.f32.mrb[0].mxu0
        %2360 = vdwg.mxu0
        %v2361 = vrcp.pop %v2284
        %v2362 = vmul.f32 %v2358, %v2361
        %2364 = vrot.lane.b32.xlu0 %v2362, 24
        %v2365 = vpop.permute.xlu0 %2364
        %2367 = vst.msk [vmem:[#allocation2] sm:$0xff] %vm1304, %v2365
        %v2368 = vld [vmem:[#allocation2] sm:$0xff]
        %v2370 = vsel %vm553, %v2368, 0
        %2372 = vmatprep.subr.mxu0 0.0
        %2373 = vmatpush1.msra.mxu0 %v535
        %2374 = vmatprep.subr.mxu0 0.0
        %2375 = vmatpush1.msra.mxu0 %v536
        %2376 = vmatprep.subr.mxu0 0.0
        %2377 = vmatpush1.msra.mxu0 %v537
        %2378 = vmatprep.subr.mxu0 0.0
        %2379 = vmatpush1.msra.mxu0 %v538
        %2380 = vmatprep.subr.mxu0 0.0
        %2381 = vmatpush1.msra.mxu0 0.0
        %2382 = vmatprep.subr.mxu0 0.0
        %2383 = vmatpush1.msra.mxu0 0.0
        %2384 = vmatprep.subr.mxu0 0.0
        %2385 = vmatpush1.msra.mxu0 0.0
        %2386 = vmatprep.subr.mxu0 0.0
        %2387 = vmatpush1.msra.mxu0 0.0
        %2388 = vmatprep.subr.mxu0 0.0
        %2389 = vmatpush1.msra.mxu0 0.0
        %2390 = vmatprep.subr.mxu0 0.0
        %2391 = vmatpush1.msra.mxu0 0.0
        %2392 = vmatprep.subr.mxu0 0.0
        %2393 = vmatpush1.msra.mxu0 0.0
        %2394 = vmatprep.subr.mxu0 0.0
        %2395 = vmatpush1.msra.mxu0 0.0
        %2396 = vmatprep.subr.mxu0 0.0
        %2397 = vmatpush1.msra.mxu0 0.0
        %2398 = vmatprep.subr.mxu0 0.0
        %2399 = vmatpush1.msra.mxu0 0.0
        %2400 = vmatprep.subr.mxu0 0.0
        %2401 = vmatpush1.msra.mxu0 0.0
        %2402 = vmatprep.subr.mxu0 0.0
        %2403 = vmatpush1.msra.mxu0 0.0
        %2404 = vmatprep.subr.mxu0 0.0
        %2405 = vmatpush1.msra.mxu0 0.0
        %2406 = vmatprep.subr.mxu0 0.0
        %2407 = vmatpush1.msra.mxu0 0.0
        %2408 = vmatprep.subr.mxu0 0.0
        %2409 = vmatpush1.msra.mxu0 0.0
        %2410 = vmatprep.subr.mxu0 0.0
        %2411 = vmatpush1.msra.mxu0 0.0
        %2412 = vmatprep.subr.mxu0 0.0
        %2413 = vmatpush1.msra.mxu0 0.0
        %2414 = vmatprep.subr.mxu0 0.0
        %2415 = vmatpush1.msra.mxu0 0.0
        %2416 = vmatprep.subr.mxu0 0.0
        %2417 = vmatpush1.msra.mxu0 0.0
        %2418 = vmatprep.subr.mxu0 0.0
        %2419 = vmatpush1.msra.mxu0 0.0
        %2420 = vmatprep.subr.mxu0 0.0
        %2421 = vmatpush1.msra.mxu0 0.0
        %2422 = vmatprep.subr.mxu0 0.0
        %2423 = vmatpush1.msra.mxu0 0.0
        %2424 = vmatprep.subr.mxu0 0.0
        %2425 = vmatpush1.msra.mxu0 0.0
        %2426 = vmatprep.subr.mxu0 0.0
        %2427 = vmatpush1.msra.mxu0 0.0
        %2428 = vmatprep.subr.mxu0 0.0
        %2429 = vmatpush1.msra.mxu0 0.0
        %2430 = vmatprep.subr.mxu0 0.0
        %2431 = vmatpush1.msra.mxu0 0.0
        %2432 = vmatprep.subr.mxu0 0.0
        %2433 = vmatpush1.msra.mxu0 0.0
        %2434 = vmatprep.subr.mxu0 0.0
        %2435 = vmatpush1.msra.mxu0 0.0
        %2436 = vmatprep.mubr.f32.mxu0 0.0
        %2437 = vmatmul.mubr.f32.gmra.mrb[0].mxu0 %v2370
        %v2438 = vpop.f32.mrb[0].mxu0
        %v2439 = vadd.f32 %v1311, %v2438
        %v2440 = vpop.f32.mrb[0].mxu0
        %2441 = vdwg.mxu0
        %v2442 = vadd.f32 %v1619, %v2439
        %v2443 = vsel %vm553, %v2442, 0.0
        %2444 = vadd.xlane.f32.xlu0 %v2443
        %v2445 = vpop.xlane.xlu0 %2444
        %v2446 = vmul.f32 %v2445, %v1390
        %v2447 = vmul.f32 %v2442, %v2442
        %v2448 = vsel %vm553, %v2447, 0.0
        %2449 = vadd.xlane.f32.xlu0 %v2448
        %v2450 = vpop.xlane.xlu0 %2449
        %v2451 = vmul.f32 %v2450, %v1390
        %v2452 = vmul.f32 %v2446, %v2446
        %v2453 = vsub.f32 %v2451, %v2452
        %v2454 = vsub.f32 %v2442, %v2446
        %v2455 = vadd.f32 %v2453, 1e-05
        %v2456 = vrsqrt.pop %v2455
        %v2457 = vmul.f32 %v2454, %v2456
        %v2458 = vmul.f32 %v2457, %v1407
        %v2459 = vadd.f32 %v2458, %v1414
        %v2460 = vld [vmem:[%s8] sm:$0xff]
        %v2461 = vld [vmem:[%s8 + $0x8] sm:$0xff]
        %v2462 = vld [vmem:[%s8 + $0x10] sm:$0xff]
        %v2463 = vld [vmem:[%s8 + $0x18] sm:$0xff]
        %v2464 = vld [vmem:[#allocation8] sm:$0x1]
        %v2466 = vlaneseq
        %v2467 = vshrl.u32 %v2466, 7
        %v2468 = vsub.s32 0, %v2467
        %v2469 = vrot.slane %v2464, %v2468
        %v2472 = vsel %vm553, %v2459, 0
        %2474 = vmatprep.subr.mxu0 0.0
        %2475 = vmatpush1.msra.mxu0 %v2460
        %2476 = vmatprep.subr.mxu0 0.0
        %2477 = vmatpush1.msra.mxu0 %v2461
        %2478 = vmatprep.subr.mxu0 0.0
        %2479 = vmatpush1.msra.mxu0 %v2462
        %2480 = vmatprep.subr.mxu0 0.0
        %2481 = vmatpush1.msra.mxu0 %v2463
        %2482 = vmatprep.subr.mxu0 0.0
        %2483 = vmatpush1.msra.mxu0 0.0
        %2484 = vmatprep.subr.mxu0 0.0
        %2485 = vmatpush1.msra.mxu0 0.0
        %2486 = vmatprep.subr.mxu0 0.0
        %2487 = vmatpush1.msra.mxu0 0.0
        %2488 = vmatprep.subr.mxu0 0.0
        %2489 = vmatpush1.msra.mxu0 0.0
        %2490 = vmatprep.subr.mxu0 0.0
        %2491 = vmatpush1.msra.mxu0 0.0
        %2492 = vmatprep.subr.mxu0 0.0
        %2493 = vmatpush1.msra.mxu0 0.0
        %2494 = vmatprep.subr.mxu0 0.0
        %2495 = vmatpush1.msra.mxu0 0.0
        %2496 = vmatprep.subr.mxu0 0.0
        %2497 = vmatpush1.msra.mxu0 0.0
        %2498 = vmatprep.subr.mxu0 0.0
        %2499 = vmatpush1.msra.mxu0 0.0
        %2500 = vmatprep.subr.mxu0 0.0
        %2501 = vmatpush1.msra.mxu0 0.0
        %2502 = vmatprep.subr.mxu0 0.0
        %2503 = vmatpush1.msra.mxu0 0.0
        %2504 = vmatprep.subr.mxu0 0.0
        %2505 = vmatpush1.msra.mxu0 0.0
        %2506 = vmatprep.subr.mxu0 0.0
        %2507 = vmatpush1.msra.mxu0 0.0
        %2508 = vmatprep.subr.mxu0 0.0
        %2509 = vmatpush1.msra.mxu0 0.0
        %2510 = vmatprep.subr.mxu0 0.0
        %2511 = vmatpush1.msra.mxu0 0.0
        %2512 = vmatprep.subr.mxu0 0.0
        %2513 = vmatpush1.msra.mxu0 0.0
        %2514 = vmatprep.subr.mxu0 0.0
        %2515 = vmatpush1.msra.mxu0 0.0
        %2516 = vmatprep.subr.mxu0 0.0
        %2517 = vmatpush1.msra.mxu0 0.0
        %2518 = vmatprep.subr.mxu0 0.0
        %2519 = vmatpush1.msra.mxu0 0.0
        %2520 = vmatprep.subr.mxu0 0.0
        %2521 = vmatpush1.msra.mxu0 0.0
        %2522 = vmatprep.subr.mxu0 0.0
        %2523 = vmatpush1.msra.mxu0 0.0
        %2524 = vmatprep.subr.mxu0 0.0
        %2525 = vmatpush1.msra.mxu0 0.0
        %2526 = vmatprep.subr.mxu0 0.0
        %2527 = vmatpush1.msra.mxu0 0.0
        %2528 = vmatprep.subr.mxu0 0.0
        %2529 = vmatpush1.msra.mxu0 0.0
        %2530 = vmatprep.subr.mxu0 0.0
        %2531 = vmatpush1.msra.mxu0 0.0
        %2532 = vmatprep.subr.mxu0 0.0
        %2533 = vmatpush1.msra.mxu0 0.0
        %2534 = vmatprep.subr.mxu0 0.0
        %2535 = vmatpush1.msra.mxu0 0.0
        %2536 = vmatprep.subr.mxu0 0.0
        %2537 = vmatpush1.msra.mxu0 0.0
        %2538 = vmatprep.mubr.f32.mxu0 0.0
        %2539 = vmatmul.mubr.f32.gmra.mrb[0].mxu0 %v2472
        %v2540 = vpop.f32.mrb[0].mxu0
        %v2541 = vadd.f32 %v2469, %v2540
        %v2542 = vpop.f32.mrb[0].mxu0
        %2543 = vdwg.mxu0
        %v2544 = vmax.f32 %v2541, 0.0
        %v2545 = vld [vmem:[%s10] sm:$0xff]
        %v2546 = vld [vmem:[%s10 + $0x8] sm:$0xff]
        %v2547 = vld [vmem:[%s10 + $0x10] sm:$0xff]
        %v2548 = vld [vmem:[%s10 + $0x18] sm:$0xff]
        %v2549 = vld [vmem:[%s10 + $0x20] sm:$0xff]
        %v2550 = vld [vmem:[%s10 + $0x28] sm:$0xff]
        %v2551 = vld [vmem:[%s10 + $0x30] sm:$0xff]
        %v2552 = vld [vmem:[%s10 + $0x38] sm:$0xff]
        %v2554 = vsel %vm1516, %v2544, 0
        %2556 = vmatprep.subr.mxu0 0.0
        %2557 = vmatpush1.msra.mxu0 %v2545
        %2558 = vmatprep.subr.mxu0 0.0
        %2559 = vmatpush1.msra.mxu0 %v2546
        %2560 = vmatprep.subr.mxu0 0.0
        %2561 = vmatpush1.msra.mxu0 %v2547
        %2562 = vmatprep.subr.mxu0 0.0
        %2563 = vmatpush1.msra.mxu0 %v2548
        %2564 = vmatprep.subr.mxu0 0.0
        %2565 = vmatpush1.msra.mxu0 %v2549
        %2566 = vmatprep.subr.mxu0 0.0
        %2567 = vmatpush1.msra.mxu0 %v2550
        %2568 = vmatprep.subr.mxu0 0.0
        %2569 = vmatpush1.msra.mxu0 %v2551
        %2570 = vmatprep.subr.mxu0 0.0
        %2571 = vmatpush1.msra.mxu0 %v2552
        %2572 = vmatprep.subr.mxu0 0.0
        %2573 = vmatpush1.msra.mxu0 0.0
        %2574 = vmatprep.subr.mxu0 0.0
        %2575 = vmatpush1.msra.mxu0 0.0
        %2576 = vmatprep.subr.mxu0 0.0
        %2577 = vmatpush1.msra.mxu0 0.0
        %2578 = vmatprep.subr.mxu0 0.0
        %2579 = vmatpush1.msra.mxu0 0.0
        %2580 = vmatprep.subr.mxu0 0.0
        %2581 = vmatpush1.msra.mxu0 0.0
        %2582 = vmatprep.subr.mxu0 0.0
        %2583 = vmatpush1.msra.mxu0 0.0
        %2584 = vmatprep.subr.mxu0 0.0
        %2585 = vmatpush1.msra.mxu0 0.0
        %2586 = vmatprep.subr.mxu0 0.0
        %2587 = vmatpush1.msra.mxu0 0.0
        %2588 = vmatprep.subr.mxu0 0.0
        %2589 = vmatpush1.msra.mxu0 0.0
        %2590 = vmatprep.subr.mxu0 0.0
        %2591 = vmatpush1.msra.mxu0 0.0
        %2592 = vmatprep.subr.mxu0 0.0
        %2593 = vmatpush1.msra.mxu0 0.0
        %2594 = vmatprep.subr.mxu0 0.0
        %2595 = vmatpush1.msra.mxu0 0.0
        %2596 = vmatprep.subr.mxu0 0.0
        %2597 = vmatpush1.msra.mxu0 0.0
        %2598 = vmatprep.subr.mxu0 0.0
        %2599 = vmatpush1.msra.mxu0 0.0
        %2600 = vmatprep.subr.mxu0 0.0
        %2601 = vmatpush1.msra.mxu0 0.0
        %2602 = vmatprep.subr.mxu0 0.0
        %2603 = vmatpush1.msra.mxu0 0.0
        %2604 = vmatprep.subr.mxu0 0.0
        %2605 = vmatpush1.msra.mxu0 0.0
        %2606 = vmatprep.subr.mxu0 0.0
        %2607 = vmatpush1.msra.mxu0 0.0
        %2608 = vmatprep.subr.mxu0 0.0
        %2609 = vmatpush1.msra.mxu0 0.0
        %2610 = vmatprep.subr.mxu0 0.0
        %2611 = vmatpush1.msra.mxu0 0.0
        %2612 = vmatprep.subr.mxu0 0.0
        %2613 = vmatpush1.msra.mxu0 0.0
        %2614 = vmatprep.subr.mxu0 0.0
        %2615 = vmatpush1.msra.mxu0 0.0
        %2616 = vmatprep.subr.mxu0 0.0
        %2617 = vmatpush1.msra.mxu0 0.0
        %2618 = vmatprep.subr.mxu0 0.0
        %2619 = vmatpush1.msra.mxu0 0.0
        %2620 = vmatprep.mubr.f32.mxu0 0.0
        %2621 = vmatmul.mubr.f32.gmra.mrb[0].mxu0 %v2554
        %v2622 = vpop.f32.mrb[0].mxu0
        %v2623 = vadd.f32 %v1514, %v2622
        %v2624 = vpop.f32.mrb[0].mxu0
        %2625 = vdwg.mxu0
        %v2626 = vadd.f32 %v2459, %v2623
        %v2627 = vsel %vm553, %v2626, 0.0
        %2628 = vadd.xlane.f32.xlu0 %v2627
        %v2629 = vpop.xlane.xlu0 %2628
        %v2630 = vmul.f32 %v2629, %v1390
        %v2631 = vmul.f32 %v2626, %v2626
        %v2632 = vsel %vm553, %v2631, 0.0
        %2633 = vadd.xlane.f32.xlu0 %v2632
        %v2634 = vpop.xlane.xlu0 %2633
        %v2635 = vmul.f32 %v2634, %v1390
        %v2636 = vmul.f32 %v2630, %v2630
        %v2637 = vsub.f32 %v2635, %v2636
        %v2638 = vsub.f32 %v2626, %v2630
        %v2639 = vadd.f32 %v2637, 1e-05
        %v2640 = vrsqrt.pop %v2639
        %v2641 = vmul.f32 %v2638, %v2640
        %v2642 = vmul.f32 %v2641, %v1610
        %v2643 = vadd.f32 %v2642, %v1617
        %2644 = vst.msk [vmem:[%s518] sm:$0xff] %vm553, %v2643
        %s2645 = sand.u32 %s344, 1
        %s2646 = scalar_lea.sflag [#allocation5], %s2645
        %s2647 = sand.u32 %s344, 1
        %s2648 = smul.addr %s2647, 8
        %s2649 = scalar_lea.vmem [#allocation9], %s2648
        // Predicated region
        $region89: #{tpu_custom_call.1} parent=75 // pred_check
          %p2650 = pneg %p354
        $region90: #{tpu_custom_call.1} parent=75 // pred_check_branch
          %2652 = sbr.rel (%p2650) target = $region92
        $region91: #{tpu_custom_call.1} parent=75 // pred_region
          %s2654 = ssub.s32 128, 128
          %2655 = vsyncadd %s2646, %s2654
          %s2656 = smul.addr %s32, 128
          %s2657 = scalar_lea.hbm %s14, %s2656
          %s2659 = sshll.u32 %s2649, 4
          %s2660 = int_to_ptr.vmem [resolvable:$true] %s2659
          %2662 = dma.vmem_to_hbm [thread:$0]  %s2660, 128, %s2657, %s2646
        $region92: #{tpu_custom_call.1} parent=75 // pred_fallthru
          _
      $region76: #{tpu_custom_call.1} parent=5 // pred_fallthru
        _
      %p2663 = scmp.le.s32.totalorder 2, %s27
      // Predicated region
      $region93: #{tpu_custom_call.1} parent=5 // pred_check
        %p2664 = pneg %p2663
      $region94: #{tpu_custom_call.1} parent=5 // pred_check_branch
        %2666 = sbr.rel (%p2664) target = $region96
      $region95: #{tpu_custom_call.1} parent=5 // pred_region
        %s2667 = ssub.s32 %s27, 2
        // Predicated region
        $region97: #{tpu_custom_call.1} parent=95 // pred_check
          %p2668 = pneg %p360
        $region98: #{tpu_custom_call.1} parent=95 // pred_check_branch
          %2670 = sbr.rel (%p2668) target = $region100
        $region99: #{tpu_custom_call.1} parent=95 // pred_region
          %s2671 = sand.u32 %s345, 1
          %s2672 = scalar_lea.sflag [#allocation5], %s2671
          %s2673 = sand.u32 %s345, 1
          %s2674 = smul.addr %s2673, 8
          %s2675 = scalar_lea.vmem [#allocation9], %s2674
          %2676 = dma.done %s2672, 128
        $region100: #{tpu_custom_call.1} parent=95 // pred_fallthru
          _
      $region96: #{tpu_custom_call.1} parent=5 // pred_fallthru
        _
    $region6: #{tpu_custom_call.1} parent=1 // loop_footer
      %s31 = sadd.s32 1, %s27
    $region7: #{tpu_custom_call.1} parent=1 // loop_footer_branch
      %26 = sbr.rel target = $region3
    $region8: #{tpu_custom_call.1} parent=1 // loop_exit
      _
    %2677 = vsyncpa [#allocation4], 1
    %s2678 = scalar_lea.sflag [#allocation4], 1
    %2679 = vsyncpa %s2678, 1
    %2680 = vsyncpa [#allocation7], 1
    %2681 = vsyncpa [#allocation5], 1
    %s2682 = scalar_lea.sflag [#allocation5], 1
    %2683 = vsyncpa %s2682, 1

</llo_original>
